<compile_context>
chip_gen: v6e
topology: v6e:2x2x1
jax: 0.10.0
libtpu: 0.0.40
codegen_flags: <defaults>
</compile_context>

<pallas_src>
import functools
from dataclasses import dataclass

import jax
import jax.numpy as jnp
from jax import lax
from jax.experimental import pallas as pl
from jax.experimental.pallas import tpu as pltpu


@dataclass(frozen=True)
class Config:
    input_size: int = 16
    hidden_size: int = 32
    output_size: int = 8
    num_layers: int = 2
    dropout: float = 0.0


_VMEM_SPEC = pl.BlockSpec(memory_space=pltpu.MemorySpace.VMEM)


# ---------------------------------------------------------------------------
# Fused Pallas kernel: num_layers x LSTM (wavefront-interleaved) + Linear head
# ---------------------------------------------------------------------------
def _fused_lstm_kernel(*refs, num_layers, T, H):
    """refs layout:
        refs[0]                      : x      (B, T, D)   as given by the caller
        refs[1 + 3l .. 3 + 3l]       : layer l wih (Din,4H), whh (H,4H), b (1,4H)
                                       (g-gate columns pre-scaled by 2)
        refs[1 + 3L], refs[2 + 3L]   : lin_w (H, O), lin_b (1, O)
        refs[3 + 3L]                 : y_ref (B, O)   output
    """
    L = num_layers
    x_ref = refs[0]
    wih = [refs[1 + 3 * l][...] for l in range(L)]       # (Din, 4H)
    whh = [refs[2 + 3 * l][...] for l in range(L)]       # (H, 4H)
    bias = [refs[3 + 3 * l][...] for l in range(L)]      # (1, 4H)
    wlin = refs[1 + 3 * L][...]                          # (H, O)
    blin = refs[2 + 3 * L][...]                          # (1, O)
    y_ref = refs[3 + 3 * L]                              # (B, O)

    B = x_ref.shape[0]

    def cell(gates, c):
        # g-gate columns of W/b were pre-scaled by 2, so one full-tile sigmoid
        # (single EUP op) yields i, f, o directly and tanh(g) = 2*sigmoid(2g)-1.
        s = jax.nn.sigmoid(gates)                        # (B, 4H)
        i = s[:, 0 * H:1 * H]
        f = s[:, 1 * H:2 * H]
        g = 2.0 * s[:, 2 * H:3 * H] - 1.0
        o = s[:, 3 * H:4 * H]
        c_new = f * c + i * g
        h_new = o * jnp.tanh(c_new)
        return h_new, c_new

    # Layer-0 input projections: T independent matmuls emitted ahead of the
    # recurrence -- they only depend on x, so the scheduler keeps them off the
    # serial critical path.
    gx0 = [
        jnp.dot(x_ref[:, t, :], wih[0], preferred_element_type=jnp.float32)
        + bias[0]
        for t in range(T)
    ]                                                    # each (B, 4H)

    h = [jnp.zeros((B, H), jnp.float32) for _ in range(L)]
    c = [jnp.zeros((B, H), jnp.float32) for _ in range(L)]

    # Diagonal wavefront: round r computes layer l's step (r - l).  All cell
    # updates inside one round read only round-(r-1) state, so their matmuls
    # and sigmoid/tanh are mutually independent and overlap.  Layers are
    # visited in decreasing order so h[l-1] is read before layer l-1 advances.
    for r in range(T + L - 1):
        for l in reversed(range(L)):
            t = r - l
            if t < 0 or t >= T:
                continue
            rec = jnp.dot(h[l], whh[l], preferred_element_type=jnp.float32)
            if l == 0:
                gates = gx0[t] + rec
            else:
                gates = (jnp.dot(h[l - 1], wih[l],
                                 preferred_element_type=jnp.float32)
                         + rec + bias[l])
            h[l], c[l] = cell(gates, c[l])

    # Linear head on the last time step of the top layer (single 8-lane store).
    y_ref[...] = (jnp.dot(h[L - 1], wlin, preferred_element_type=jnp.float32)
                  + blin)


# ---------------------------------------------------------------------------
# Parameter init (PyTorch layout) and kernel-side preparation
# ---------------------------------------------------------------------------
def init_params(key, cfg: Config):
    """PyTorch-style uniform(-1/sqrt(H), 1/sqrt(H)) init for LSTM + Linear."""
    H, O = cfg.hidden_size, cfg.output_size
    bound = 1.0 / jnp.sqrt(jnp.float32(H))
    params = {"layers": []}
    for layer in range(cfg.num_layers):
        d_in = cfg.input_size if layer == 0 else H
        key, k1, k2, k3, k4 = jax.random.split(key, 5)
        params["layers"].append({
            "w_ih": jax.random.uniform(k1, (4 * H, d_in), jnp.float32, -bound, bound),
            "w_hh": jax.random.uniform(k2, (4 * H, H), jnp.float32, -bound, bound),
            "b_ih": jax.random.uniform(k3, (4 * H,), jnp.float32, -bound, bound),
            "b_hh": jax.random.uniform(k4, (4 * H,), jnp.float32, -bound, bound),
        })
    key, k1, k2 = jax.random.split(key, 3)
    params["lin_w"] = jax.random.uniform(k1, (O, H), jnp.float32, -bound, bound)
    params["lin_b"] = jax.random.uniform(k2, (O,), jnp.float32, -bound, bound)
    return params


def prepare_params(params, cfg: Config):
    """Pre-transpose weights, combine biases, pre-scale g-gate columns by 2."""
    H = cfg.hidden_size
    scale = jnp.concatenate([jnp.ones((2 * H,), jnp.float32),
                             jnp.full((H,), 2.0, jnp.float32),
                             jnp.ones((H,), jnp.float32)])          # (4H,)
    layers = []
    for lp in params["layers"]:
        wih_t = jnp.transpose(lp["w_ih"]) * scale                   # (Din, 4H)
        whh_t = jnp.transpose(lp["w_hh"]) * scale                   # (H, 4H)
        b = ((lp["b_ih"] + lp["b_hh"]) * scale).reshape(1, -1)      # (1, 4H)
        layers.append((wih_t, whh_t, b))
    return {"layers": layers,
            "lin_w": jnp.transpose(params["lin_w"]),                # (H, O)
            "lin_b": params["lin_b"].reshape(1, -1)}                # (1, O)


# ---------------------------------------------------------------------------
# Forward
# ---------------------------------------------------------------------------
@functools.partial(jax.jit, static_argnames=("cfg",))
def lstm_model_forward(prepped, x, cfg: Config):
    """x: (B, T, input_size) -> (B, output_size)  (matches LSTMmodel.forward).

    No wrapper-side transpose/pad/reshape of x: the kernel consumes (B, T, D)
    directly, so the only XLA op around the pallas_call is the call itself.
    """
    B, T, _ = x.shape
    H, O, L = cfg.hidden_size, cfg.output_size, cfg.num_layers

    args = [x]
    for (wih, whh, b) in prepped["layers"]:
        args += [wih, whh, b]
    args += [prepped["lin_w"], prepped["lin_b"]]

    kernel = functools.partial(_fused_lstm_kernel, num_layers=L, T=T, H=H)
    y = pl.pallas_call(
        kernel,
        out_shape=jax.ShapeDtypeStruct((B, O), jnp.float32),
        in_specs=[_VMEM_SPEC] * len(args),
        out_specs=_VMEM_SPEC,
    )(*args)
    return y


# ---------------------------------------------------------------------------
# Pure-JAX reference (uses the original, unscaled PyTorch-layout params)
# ---------------------------------------------------------------------------
def _reference_forward(params, x, cfg: Config):
    H = cfg.hidden_size
    h_seq = jnp.transpose(x, (1, 0, 2))
    for lp in params["layers"]:
        T, B, _ = h_seq.shape
        wih_t = lp["w_ih"].T
        whh_t = lp["w_hh"].T
        bias = lp["b_ih"] + lp["b_hh"]

        def step(carry, x_t):
            h, c = carry
            gates = x_t @ wih_t + h @ whh_t + bias
            i = jax.nn.sigmoid(gates[:, 0 * H:1 * H])
            f = jax.nn.sigmoid(gates[:, 1 * H:2 * H])
            g = jnp.tanh(gates[:, 2 * H:3 * H])
            o = jax.nn.sigmoid(gates[:, 3 * H:4 * H])
            c = f * c + i * g
            h = o * jnp.tanh(c)
            return (h, c), h

        (_, _), h_seq = lax.scan(step, (jnp.zeros((B, H)), jnp.zeros((B, H))), h_seq)
    return h_seq[-1] @ params["lin_w"].T + params["lin_b"]


if __name__ == "__main__":
    cfg = Config(input_size=16, hidden_size=32, output_size=8,
                 num_layers=2, dropout=0.0)
    key = jax.random.PRNGKey(0)
    key, pkey, xkey = jax.random.split(key, 3)

    params = init_params(pkey, cfg)
    prepped = prepare_params(params, cfg)

    batch, seq = 4, 8
    x = jax.random.normal(xkey, (batch, seq, cfg.input_size), jnp.float32)

    y = lstm_model_forward(prepped, x, cfg)
    y = jax.block_until_ready(y)
    assert y.shape == (batch, cfg.output_size)

    y_ref = _reference_forward(params, x, cfg)
    assert jnp.allclose(y, y_ref, atol=1e-4, rtol=1e-4), "mismatch vs reference"

    print("KERNEL_OK")
</pallas_src>

<mosaic_0001>
module attributes {stable_mosaic.version = 11 : i64} {
  func.func @_fused_lstm_kernel(%arg0: memref<4x8x16xf32, #tpu.memory_space<vmem>>, %arg1: memref<16x128xf32, #tpu.memory_space<vmem>>, %arg2: memref<32x128xf32, #tpu.memory_space<vmem>>, %arg3: memref<1x128xf32, #tpu.memory_space<vmem>>, %arg4: memref<32x128xf32, #tpu.memory_space<vmem>>, %arg5: memref<32x128xf32, #tpu.memory_space<vmem>>, %arg6: memref<1x128xf32, #tpu.memory_space<vmem>>, %arg7: memref<32x8xf32, #tpu.memory_space<vmem>>, %arg8: memref<1x8xf32, #tpu.memory_space<vmem>>, %arg9: memref<4x8xf32, #tpu.memory_space<vmem>>) attributes {dimension_semantics = [], scalar_prefetch = 0 : i64, scratch_operands = 0 : i64, tpu.core_type = #tpu.core_type<tc>} {
    %c0 = arith.constant 0 : index
    %c0_0 = arith.constant 0 : index
    %0 = vector.load %arg1[%c0, %c0_0] : memref<16x128xf32, #tpu.memory_space<vmem>>, vector<16x128xf32>
    %c0_1 = arith.constant 0 : index
    %c0_2 = arith.constant 0 : index
    %1 = vector.load %arg4[%c0_1, %c0_2] : memref<32x128xf32, #tpu.memory_space<vmem>>, vector<32x128xf32>
    %c0_3 = arith.constant 0 : index
    %c0_4 = arith.constant 0 : index
    %2 = vector.load %arg2[%c0_3, %c0_4] : memref<32x128xf32, #tpu.memory_space<vmem>>, vector<32x128xf32>
    %c0_5 = arith.constant 0 : index
    %c0_6 = arith.constant 0 : index
    %3 = vector.load %arg5[%c0_5, %c0_6] : memref<32x128xf32, #tpu.memory_space<vmem>>, vector<32x128xf32>
    %c0_7 = arith.constant 0 : index
    %c0_8 = arith.constant 0 : index
    %4 = vector.load %arg3[%c0_7, %c0_8] : memref<1x128xf32, #tpu.memory_space<vmem>>, vector<1x128xf32>
    %c0_9 = arith.constant 0 : index
    %c0_10 = arith.constant 0 : index
    %5 = vector.load %arg6[%c0_9, %c0_10] : memref<1x128xf32, #tpu.memory_space<vmem>>, vector<1x128xf32>
    %c0_11 = arith.constant 0 : index
    %c0_12 = arith.constant 0 : index
    %6 = vector.load %arg7[%c0_11, %c0_12] : memref<32x8xf32, #tpu.memory_space<vmem>>, vector<32x8xf32>
    %c0_13 = arith.constant 0 : index
    %c0_14 = arith.constant 0 : index
    %7 = vector.load %arg8[%c0_13, %c0_14] : memref<1x8xf32, #tpu.memory_space<vmem>>, vector<1x8xf32>
    %c0_15 = arith.constant 0 : index
    %c0_16 = arith.constant 0 : index
    %c0_17 = arith.constant 0 : index
    %8 = vector.load %arg0[%c0_15, %c0_16, %c0_17] : memref<4x8x16xf32, #tpu.memory_space<vmem>>, vector<4x1x16xf32>
    %9 = vector.shape_cast %8 : vector<4x1x16xf32> to vector<4x16xf32>
    %cst = arith.constant dense<0.000000e+00> : vector<4x128xf32>
    %10 = tpu.matmul %9, %0, %cst {dimension_numbers = #tpu.dot_dimension_numbers<[1], [0], [0], [1], [0, 0, 1, 1], [], []>} : vector<4x16xf32>, vector<16x128xf32>, vector<4x128xf32> -> vector<4x128xf32>
    %11 = vector.broadcast %4 : vector<1x128xf32> to vector<4x128xf32>
    %12 = arith.addf %10, %11 : vector<4x128xf32>
    %c0_18 = arith.constant 0 : index
    %c1 = arith.constant 1 : index
    %c0_19 = arith.constant 0 : index
    %13 = vector.load %arg0[%c0_18, %c1, %c0_19] : memref<4x8x16xf32, #tpu.memory_space<vmem>>, vector<4x1x16xf32>
    %14 = vector.shape_cast %13 : vector<4x1x16xf32> to vector<4x16xf32>
    %cst_20 = arith.constant dense<0.000000e+00> : vector<4x128xf32>
    %15 = tpu.matmul %14, %0, %cst_20 {dimension_numbers = #tpu.dot_dimension_numbers<[1], [0], [0], [1], [0, 0, 1, 1], [], []>} : vector<4x16xf32>, vector<16x128xf32>, vector<4x128xf32> -> vector<4x128xf32>
    %16 = vector.broadcast %4 : vector<1x128xf32> to vector<4x128xf32>
    %17 = arith.addf %15, %16 : vector<4x128xf32>
    %c0_21 = arith.constant 0 : index
    %c2 = arith.constant 2 : index
    %c0_22 = arith.constant 0 : index
    %18 = vector.load %arg0[%c0_21, %c2, %c0_22] : memref<4x8x16xf32, #tpu.memory_space<vmem>>, vector<4x1x16xf32>
    %19 = vector.shape_cast %18 : vector<4x1x16xf32> to vector<4x16xf32>
    %cst_23 = arith.constant dense<0.000000e+00> : vector<4x128xf32>
    %20 = tpu.matmul %19, %0, %cst_23 {dimension_numbers = #tpu.dot_dimension_numbers<[1], [0], [0], [1], [0, 0, 1, 1], [], []>} : vector<4x16xf32>, vector<16x128xf32>, vector<4x128xf32> -> vector<4x128xf32>
    %21 = vector.broadcast %4 : vector<1x128xf32> to vector<4x128xf32>
    %22 = arith.addf %20, %21 : vector<4x128xf32>
    %c0_24 = arith.constant 0 : index
    %c3 = arith.constant 3 : index
    %c0_25 = arith.constant 0 : index
    %23 = vector.load %arg0[%c0_24, %c3, %c0_25] : memref<4x8x16xf32, #tpu.memory_space<vmem>>, vector<4x1x16xf32>
    %24 = vector.shape_cast %23 : vector<4x1x16xf32> to vector<4x16xf32>
    %cst_26 = arith.constant dense<0.000000e+00> : vector<4x128xf32>
    %25 = tpu.matmul %24, %0, %cst_26 {dimension_numbers = #tpu.dot_dimension_numbers<[1], [0], [0], [1], [0, 0, 1, 1], [], []>} : vector<4x16xf32>, vector<16x128xf32>, vector<4x128xf32> -> vector<4x128xf32>
    %26 = vector.broadcast %4 : vector<1x128xf32> to vector<4x128xf32>
    %27 = arith.addf %25, %26 : vector<4x128xf32>
    %c0_27 = arith.constant 0 : index
    %c4 = arith.constant 4 : index
    %c0_28 = arith.constant 0 : index
    %28 = vector.load %arg0[%c0_27, %c4, %c0_28] : memref<4x8x16xf32, #tpu.memory_space<vmem>>, vector<4x1x16xf32>
    %29 = vector.shape_cast %28 : vector<4x1x16xf32> to vector<4x16xf32>
    %cst_29 = arith.constant dense<0.000000e+00> : vector<4x128xf32>
    %30 = tpu.matmul %29, %0, %cst_29 {dimension_numbers = #tpu.dot_dimension_numbers<[1], [0], [0], [1], [0, 0, 1, 1], [], []>} : vector<4x16xf32>, vector<16x128xf32>, vector<4x128xf32> -> vector<4x128xf32>
    %31 = vector.broadcast %4 : vector<1x128xf32> to vector<4x128xf32>
    %32 = arith.addf %30, %31 : vector<4x128xf32>
    %c0_30 = arith.constant 0 : index
    %c5 = arith.constant 5 : index
    %c0_31 = arith.constant 0 : index
    %33 = vector.load %arg0[%c0_30, %c5, %c0_31] : memref<4x8x16xf32, #tpu.memory_space<vmem>>, vector<4x1x16xf32>
    %34 = vector.shape_cast %33 : vector<4x1x16xf32> to vector<4x16xf32>
    %cst_32 = arith.constant dense<0.000000e+00> : vector<4x128xf32>
    %35 = tpu.matmul %34, %0, %cst_32 {dimension_numbers = #tpu.dot_dimension_numbers<[1], [0], [0], [1], [0, 0, 1, 1], [], []>} : vector<4x16xf32>, vector<16x128xf32>, vector<4x128xf32> -> vector<4x128xf32>
    %36 = vector.broadcast %4 : vector<1x128xf32> to vector<4x128xf32>
    %37 = arith.addf %35, %36 : vector<4x128xf32>
    %c0_33 = arith.constant 0 : index
    %c6 = arith.constant 6 : index
    %c0_34 = arith.constant 0 : index
    %38 = vector.load %arg0[%c0_33, %c6, %c0_34] : memref<4x8x16xf32, #tpu.memory_space<vmem>>, vector<4x1x16xf32>
    %39 = vector.shape_cast %38 : vector<4x1x16xf32> to vector<4x16xf32>
    %cst_35 = arith.constant dense<0.000000e+00> : vector<4x128xf32>
    %40 = tpu.matmul %39, %0, %cst_35 {dimension_numbers = #tpu.dot_dimension_numbers<[1], [0], [0], [1], [0, 0, 1, 1], [], []>} : vector<4x16xf32>, vector<16x128xf32>, vector<4x128xf32> -> vector<4x128xf32>
    %41 = vector.broadcast %4 : vector<1x128xf32> to vector<4x128xf32>
    %42 = arith.addf %40, %41 : vector<4x128xf32>
    %c0_36 = arith.constant 0 : index
    %c7 = arith.constant 7 : index
    %c0_37 = arith.constant 0 : index
    %43 = vector.load %arg0[%c0_36, %c7, %c0_37] : memref<4x8x16xf32, #tpu.memory_space<vmem>>, vector<4x1x16xf32>
    %44 = vector.shape_cast %43 : vector<4x1x16xf32> to vector<4x16xf32>
    %cst_38 = arith.constant dense<0.000000e+00> : vector<4x128xf32>
    %45 = tpu.matmul %44, %0, %cst_38 {dimension_numbers = #tpu.dot_dimension_numbers<[1], [0], [0], [1], [0, 0, 1, 1], [], []>} : vector<4x16xf32>, vector<16x128xf32>, vector<4x128xf32> -> vector<4x128xf32>
    %46 = vector.broadcast %4 : vector<1x128xf32> to vector<4x128xf32>
    %47 = arith.addf %45, %46 : vector<4x128xf32>
    %cst_39 = arith.constant 0.000000e+00 : f32
    %48 = vector.broadcast %cst_39 : f32 to vector<4x32xf32>
    %cst_40 = arith.constant 0.000000e+00 : f32
    %49 = vector.broadcast %cst_40 : f32 to vector<4x32xf32>
    %cst_41 = arith.constant 0.000000e+00 : f32
    %50 = vector.broadcast %cst_41 : f32 to vector<4x32xf32>
    %cst_42 = arith.constant 0.000000e+00 : f32
    %51 = vector.broadcast %cst_42 : f32 to vector<4x32xf32>
    %cst_43 = arith.constant dense<0.000000e+00> : vector<4x128xf32>
    %52 = tpu.matmul %48, %2, %cst_43 {dimension_numbers = #tpu.dot_dimension_numbers<[1], [0], [0], [1], [0, 0, 1, 1], [], []>} : vector<4x32xf32>, vector<32x128xf32>, vector<4x128xf32> -> vector<4x128xf32>
    %53 = arith.addf %12, %52 : vector<4x128xf32>
    %54 = arith.negf %53 : vector<4x128xf32>
    %55 = math.exp %54 : vector<4x128xf32>
    %cst_44 = arith.constant 1.000000e+00 : f32
    %56 = vector.broadcast %cst_44 : f32 to vector<4x128xf32>
    %57 = arith.addf %56, %55 : vector<4x128xf32>
    %58 = arith.divf %56, %57 : vector<4x128xf32>
    %59 = vector.extract_strided_slice %58 {offsets = [0, 0], sizes = [4, 32], strides = [1, 1]} : vector<4x128xf32> to vector<4x32xf32>
    %60 = vector.extract_strided_slice %58 {offsets = [0, 32], sizes = [4, 32], strides = [1, 1]} : vector<4x128xf32> to vector<4x32xf32>
    %61 = vector.extract_strided_slice %58 {offsets = [0, 64], sizes = [4, 32], strides = [1, 1]} : vector<4x128xf32> to vector<4x32xf32>
    %cst_45 = arith.constant 2.000000e+00 : f32
    %62 = vector.broadcast %cst_45 : f32 to vector<4x32xf32>
    %63 = arith.mulf %62, %61 : vector<4x32xf32>
    %cst_46 = arith.constant 1.000000e+00 : f32
    %64 = vector.broadcast %cst_46 : f32 to vector<4x32xf32>
    %65 = arith.subf %63, %64 : vector<4x32xf32>
    %66 = vector.extract_strided_slice %58 {offsets = [0, 96], sizes = [4, 32], strides = [1, 1]} : vector<4x128xf32> to vector<4x32xf32>
    %67 = arith.mulf %60, %50 : vector<4x32xf32>
    %68 = arith.mulf %59, %65 : vector<4x32xf32>
    %69 = arith.addf %67, %68 : vector<4x32xf32>
    %70 = math.tanh %69 : vector<4x32xf32>
    %71 = arith.mulf %66, %70 : vector<4x32xf32>
    %cst_47 = arith.constant dense<0.000000e+00> : vector<4x128xf32>
    %72 = tpu.matmul %49, %3, %cst_47 {dimension_numbers = #tpu.dot_dimension_numbers<[1], [0], [0], [1], [0, 0, 1, 1], [], []>} : vector<4x32xf32>, vector<32x128xf32>, vector<4x128xf32> -> vector<4x128xf32>
    %cst_48 = arith.constant dense<0.000000e+00> : vector<4x128xf32>
    %73 = tpu.matmul %71, %1, %cst_48 {dimension_numbers = #tpu.dot_dimension_numbers<[1], [0], [0], [1], [0, 0, 1, 1], [], []>} : vector<4x32xf32>, vector<32x128xf32>, vector<4x128xf32> -> vector<4x128xf32>
    %74 = arith.addf %73, %72 : vector<4x128xf32>
    %75 = vector.broadcast %5 : vector<1x128xf32> to vector<4x128xf32>
    %76 = arith.addf %74, %75 : vector<4x128xf32>
    %77 = arith.negf %76 : vector<4x128xf32>
    %78 = math.exp %77 : vector<4x128xf32>
    %cst_49 = arith.constant 1.000000e+00 : f32
    %79 = vector.broadcast %cst_49 : f32 to vector<4x128xf32>
    %80 = arith.addf %79, %78 : vector<4x128xf32>
    %81 = arith.divf %79, %80 : vector<4x128xf32>
    %82 = vector.extract_strided_slice %81 {offsets = [0, 0], sizes = [4, 32], strides = [1, 1]} : vector<4x128xf32> to vector<4x32xf32>
    %83 = vector.extract_strided_slice %81 {offsets = [0, 32], sizes = [4, 32], strides = [1, 1]} : vector<4x128xf32> to vector<4x32xf32>
    %84 = vector.extract_strided_slice %81 {offsets = [0, 64], sizes = [4, 32], strides = [1, 1]} : vector<4x128xf32> to vector<4x32xf32>
    %cst_50 = arith.constant 2.000000e+00 : f32
    %85 = vector.broadcast %cst_50 : f32 to vector<4x32xf32>
    %86 = arith.mulf %85, %84 : vector<4x32xf32>
    %cst_51 = arith.constant 1.000000e+00 : f32
    %87 = vector.broadcast %cst_51 : f32 to vector<4x32xf32>
    %88 = arith.subf %86, %87 : vector<4x32xf32>
    %89 = vector.extract_strided_slice %81 {offsets = [0, 96], sizes = [4, 32], strides = [1, 1]} : vector<4x128xf32> to vector<4x32xf32>
    %90 = arith.mulf %83, %51 : vector<4x32xf32>
    %91 = arith.mulf %82, %88 : vector<4x32xf32>
    %92 = arith.addf %90, %91 : vector<4x32xf32>
    %93 = math.tanh %92 : vector<4x32xf32>
    %94 = arith.mulf %89, %93 : vector<4x32xf32>
    %cst_52 = arith.constant dense<0.000000e+00> : vector<4x128xf32>
    %95 = tpu.matmul %71, %2, %cst_52 {dimension_numbers = #tpu.dot_dimension_numbers<[1], [0], [0], [1], [0, 0, 1, 1], [], []>} : vector<4x32xf32>, vector<32x128xf32>, vector<4x128xf32> -> vector<4x128xf32>
    %96 = arith.addf %17, %95 : vector<4x128xf32>
    %97 = arith.negf %96 : vector<4x128xf32>
    %98 = math.exp %97 : vector<4x128xf32>
    %cst_53 = arith.constant 1.000000e+00 : f32
    %99 = vector.broadcast %cst_53 : f32 to vector<4x128xf32>
    %100 = arith.addf %99, %98 : vector<4x128xf32>
    %101 = arith.divf %99, %100 : vector<4x128xf32>
    %102 = vector.extract_strided_slice %101 {offsets = [0, 0], sizes = [4, 32], strides = [1, 1]} : vector<4x128xf32> to vector<4x32xf32>
    %103 = vector.extract_strided_slice %101 {offsets = [0, 32], sizes = [4, 32], strides = [1, 1]} : vector<4x128xf32> to vector<4x32xf32>
    %104 = vector.extract_strided_slice %101 {offsets = [0, 64], sizes = [4, 32], strides = [1, 1]} : vector<4x128xf32> to vector<4x32xf32>
    %cst_54 = arith.constant 2.000000e+00 : f32
    %105 = vector.broadcast %cst_54 : f32 to vector<4x32xf32>
    %106 = arith.mulf %105, %104 : vector<4x32xf32>
    %cst_55 = arith.constant 1.000000e+00 : f32
    %107 = vector.broadcast %cst_55 : f32 to vector<4x32xf32>
    %108 = arith.subf %106, %107 : vector<4x32xf32>
    %109 = vector.extract_strided_slice %101 {offsets = [0, 96], sizes = [4, 32], strides = [1, 1]} : vector<4x128xf32> to vector<4x32xf32>
    %110 = arith.mulf %103, %69 : vector<4x32xf32>
    %111 = arith.mulf %102, %108 : vector<4x32xf32>
    %112 = arith.addf %110, %111 : vector<4x32xf32>
    %113 = math.tanh %112 : vector<4x32xf32>
    %114 = arith.mulf %109, %113 : vector<4x32xf32>
    %cst_56 = arith.constant dense<0.000000e+00> : vector<4x128xf32>
    %115 = tpu.matmul %94, %3, %cst_56 {dimension_numbers = #tpu.dot_dimension_numbers<[1], [0], [0], [1], [0, 0, 1, 1], [], []>} : vector<4x32xf32>, vector<32x128xf32>, vector<4x128xf32> -> vector<4x128xf32>
    %cst_57 = arith.constant dense<0.000000e+00> : vector<4x128xf32>
    %116 = tpu.matmul %114, %1, %cst_57 {dimension_numbers = #tpu.dot_dimension_numbers<[1], [0], [0], [1], [0, 0, 1, 1], [], []>} : vector<4x32xf32>, vector<32x128xf32>, vector<4x128xf32> -> vector<4x128xf32>
    %117 = arith.addf %116, %115 : vector<4x128xf32>
    %118 = vector.broadcast %5 : vector<1x128xf32> to vector<4x128xf32>
    %119 = arith.addf %117, %118 : vector<4x128xf32>
    %120 = arith.negf %119 : vector<4x128xf32>
    %121 = math.exp %120 : vector<4x128xf32>
    %cst_58 = arith.constant 1.000000e+00 : f32
    %122 = vector.broadcast %cst_58 : f32 to vector<4x128xf32>
    %123 = arith.addf %122, %121 : vector<4x128xf32>
    %124 = arith.divf %122, %123 : vector<4x128xf32>
    %125 = vector.extract_strided_slice %124 {offsets = [0, 0], sizes = [4, 32], strides = [1, 1]} : vector<4x128xf32> to vector<4x32xf32>
    %126 = vector.extract_strided_slice %124 {offsets = [0, 32], sizes = [4, 32], strides = [1, 1]} : vector<4x128xf32> to vector<4x32xf32>
    %127 = vector.extract_strided_slice %124 {offsets = [0, 64], sizes = [4, 32], strides = [1, 1]} : vector<4x128xf32> to vector<4x32xf32>
    %cst_59 = arith.constant 2.000000e+00 : f32
    %128 = vector.broadcast %cst_59 : f32 to vector<4x32xf32>
    %129 = arith.mulf %128, %127 : vector<4x32xf32>
    %cst_60 = arith.constant 1.000000e+00 : f32
    %130 = vector.broadcast %cst_60 : f32 to vector<4x32xf32>
    %131 = arith.subf %129, %130 : vector<4x32xf32>
    %132 = vector.extract_strided_slice %124 {offsets = [0, 96], sizes = [4, 32], strides = [1, 1]} : vector<4x128xf32> to vector<4x32xf32>
    %133 = arith.mulf %126, %92 : vector<4x32xf32>
    %134 = arith.mulf %125, %131 : vector<4x32xf32>
    %135 = arith.addf %133, %134 : vector<4x32xf32>
    %136 = math.tanh %135 : vector<4x32xf32>
    %137 = arith.mulf %132, %136 : vector<4x32xf32>
    %cst_61 = arith.constant dense<0.000000e+00> : vector<4x128xf32>
    %138 = tpu.matmul %114, %2, %cst_61 {dimension_numbers = #tpu.dot_dimension_numbers<[1], [0], [0], [1], [0, 0, 1, 1], [], []>} : vector<4x32xf32>, vector<32x128xf32>, vector<4x128xf32> -> vector<4x128xf32>
    %139 = arith.addf %22, %138 : vector<4x128xf32>
    %140 = arith.negf %139 : vector<4x128xf32>
    %141 = math.exp %140 : vector<4x128xf32>
    %cst_62 = arith.constant 1.000000e+00 : f32
    %142 = vector.broadcast %cst_62 : f32 to vector<4x128xf32>
    %143 = arith.addf %142, %141 : vector<4x128xf32>
    %144 = arith.divf %142, %143 : vector<4x128xf32>
    %145 = vector.extract_strided_slice %144 {offsets = [0, 0], sizes = [4, 32], strides = [1, 1]} : vector<4x128xf32> to vector<4x32xf32>
    %146 = vector.extract_strided_slice %144 {offsets = [0, 32], sizes = [4, 32], strides = [1, 1]} : vector<4x128xf32> to vector<4x32xf32>
    %147 = vector.extract_strided_slice %144 {offsets = [0, 64], sizes = [4, 32], strides = [1, 1]} : vector<4x128xf32> to vector<4x32xf32>
    %cst_63 = arith.constant 2.000000e+00 : f32
    %148 = vector.broadcast %cst_63 : f32 to vector<4x32xf32>
    %149 = arith.mulf %148, %147 : vector<4x32xf32>
    %cst_64 = arith.constant 1.000000e+00 : f32
    %150 = vector.broadcast %cst_64 : f32 to vector<4x32xf32>
    %151 = arith.subf %149, %150 : vector<4x32xf32>
    %152 = vector.extract_strided_slice %144 {offsets = [0, 96], sizes = [4, 32], strides = [1, 1]} : vector<4x128xf32> to vector<4x32xf32>
    %153 = arith.mulf %146, %112 : vector<4x32xf32>
    %154 = arith.mulf %145, %151 : vector<4x32xf32>
    %155 = arith.addf %153, %154 : vector<4x32xf32>
    %156 = math.tanh %155 : vector<4x32xf32>
    %157 = arith.mulf %152, %156 : vector<4x32xf32>
    %cst_65 = arith.constant dense<0.000000e+00> : vector<4x128xf32>
    %158 = tpu.matmul %137, %3, %cst_65 {dimension_numbers = #tpu.dot_dimension_numbers<[1], [0], [0], [1], [0, 0, 1, 1], [], []>} : vector<4x32xf32>, vector<32x128xf32>, vector<4x128xf32> -> vector<4x128xf32>
    %cst_66 = arith.constant dense<0.000000e+00> : vector<4x128xf32>
    %159 = tpu.matmul %157, %1, %cst_66 {dimension_numbers = #tpu.dot_dimension_numbers<[1], [0], [0], [1], [0, 0, 1, 1], [], []>} : vector<4x32xf32>, vector<32x128xf32>, vector<4x128xf32> -> vector<4x128xf32>
    %160 = arith.addf %159, %158 : vector<4x128xf32>
    %161 = vector.broadcast %5 : vector<1x128xf32> to vector<4x128xf32>
    %162 = arith.addf %160, %161 : vector<4x128xf32>
    %163 = arith.negf %162 : vector<4x128xf32>
    %164 = math.exp %163 : vector<4x128xf32>
    %cst_67 = arith.constant 1.000000e+00 : f32
    %165 = vector.broadcast %cst_67 : f32 to vector<4x128xf32>
    %166 = arith.addf %165, %164 : vector<4x128xf32>
    %167 = arith.divf %165, %166 : vector<4x128xf32>
    %168 = vector.extract_strided_slice %167 {offsets = [0, 0], sizes = [4, 32], strides = [1, 1]} : vector<4x128xf32> to vector<4x32xf32>
    %169 = vector.extract_strided_slice %167 {offsets = [0, 32], sizes = [4, 32], strides = [1, 1]} : vector<4x128xf32> to vector<4x32xf32>
    %170 = vector.extract_strided_slice %167 {offsets = [0, 64], sizes = [4, 32], strides = [1, 1]} : vector<4x128xf32> to vector<4x32xf32>
    %cst_68 = arith.constant 2.000000e+00 : f32
    %171 = vector.broadcast %cst_68 : f32 to vector<4x32xf32>
    %172 = arith.mulf %171, %170 : vector<4x32xf32>
    %cst_69 = arith.constant 1.000000e+00 : f32
    %173 = vector.broadcast %cst_69 : f32 to vector<4x32xf32>
    %174 = arith.subf %172, %173 : vector<4x32xf32>
    %175 = vector.extract_strided_slice %167 {offsets = [0, 96], sizes = [4, 32], strides = [1, 1]} : vector<4x128xf32> to vector<4x32xf32>
    %176 = arith.mulf %169, %135 : vector<4x32xf32>
    %177 = arith.mulf %168, %174 : vector<4x32xf32>
    %178 = arith.addf %176, %177 : vector<4x32xf32>
    %179 = math.tanh %178 : vector<4x32xf32>
    %180 = arith.mulf %175, %179 : vector<4x32xf32>
    %cst_70 = arith.constant dense<0.000000e+00> : vector<4x128xf32>
    %181 = tpu.matmul %157, %2, %cst_70 {dimension_numbers = #tpu.dot_dimension_numbers<[1], [0], [0], [1], [0, 0, 1, 1], [], []>} : vector<4x32xf32>, vector<32x128xf32>, vector<4x128xf32> -> vector<4x128xf32>
    %182 = arith.addf %27, %181 : vector<4x128xf32>
    %183 = arith.negf %182 : vector<4x128xf32>
    %184 = math.exp %183 : vector<4x128xf32>
    %cst_71 = arith.constant 1.000000e+00 : f32
    %185 = vector.broadcast %cst_71 : f32 to vector<4x128xf32>
    %186 = arith.addf %185, %184 : vector<4x128xf32>
    %187 = arith.divf %185, %186 : vector<4x128xf32>
    %188 = vector.extract_strided_slice %187 {offsets = [0, 0], sizes = [4, 32], strides = [1, 1]} : vector<4x128xf32> to vector<4x32xf32>
    %189 = vector.extract_strided_slice %187 {offsets = [0, 32], sizes = [4, 32], strides = [1, 1]} : vector<4x128xf32> to vector<4x32xf32>
    %190 = vector.extract_strided_slice %187 {offsets = [0, 64], sizes = [4, 32], strides = [1, 1]} : vector<4x128xf32> to vector<4x32xf32>
    %cst_72 = arith.constant 2.000000e+00 : f32
    %191 = vector.broadcast %cst_72 : f32 to vector<4x32xf32>
    %192 = arith.mulf %191, %190 : vector<4x32xf32>
    %cst_73 = arith.constant 1.000000e+00 : f32
    %193 = vector.broadcast %cst_73 : f32 to vector<4x32xf32>
    %194 = arith.subf %192, %193 : vector<4x32xf32>
    %195 = vector.extract_strided_slice %187 {offsets = [0, 96], sizes = [4, 32], strides = [1, 1]} : vector<4x128xf32> to vector<4x32xf32>
    %196 = arith.mulf %189, %155 : vector<4x32xf32>
    %197 = arith.mulf %188, %194 : vector<4x32xf32>
    %198 = arith.addf %196, %197 : vector<4x32xf32>
    %199 = math.tanh %198 : vector<4x32xf32>
    %200 = arith.mulf %195, %199 : vector<4x32xf32>
    %cst_74 = arith.constant dense<0.000000e+00> : vector<4x128xf32>
    %201 = tpu.matmul %180, %3, %cst_74 {dimension_numbers = #tpu.dot_dimension_numbers<[1], [0], [0], [1], [0, 0, 1, 1], [], []>} : vector<4x32xf32>, vector<32x128xf32>, vector<4x128xf32> -> vector<4x128xf32>
    %cst_75 = arith.constant dense<0.000000e+00> : vector<4x128xf32>
    %202 = tpu.matmul %200, %1, %cst_75 {dimension_numbers = #tpu.dot_dimension_numbers<[1], [0], [0], [1], [0, 0, 1, 1], [], []>} : vector<4x32xf32>, vector<32x128xf32>, vector<4x128xf32> -> vector<4x128xf32>
    %203 = arith.addf %202, %201 : vector<4x128xf32>
    %204 = vector.broadcast %5 : vector<1x128xf32> to vector<4x128xf32>
    %205 = arith.addf %203, %204 : vector<4x128xf32>
    %206 = arith.negf %205 : vector<4x128xf32>
    %207 = math.exp %206 : vector<4x128xf32>
    %cst_76 = arith.constant 1.000000e+00 : f32
    %208 = vector.broadcast %cst_76 : f32 to vector<4x128xf32>
    %209 = arith.addf %208, %207 : vector<4x128xf32>
    %210 = arith.divf %208, %209 : vector<4x128xf32>
    %211 = vector.extract_strided_slice %210 {offsets = [0, 0], sizes = [4, 32], strides = [1, 1]} : vector<4x128xf32> to vector<4x32xf32>
    %212 = vector.extract_strided_slice %210 {offsets = [0, 32], sizes = [4, 32], strides = [1, 1]} : vector<4x128xf32> to vector<4x32xf32>
    %213 = vector.extract_strided_slice %210 {offsets = [0, 64], sizes = [4, 32], strides = [1, 1]} : vector<4x128xf32> to vector<4x32xf32>
    %cst_77 = arith.constant 2.000000e+00 : f32
    %214 = vector.broadcast %cst_77 : f32 to vector<4x32xf32>
    %215 = arith.mulf %214, %213 : vector<4x32xf32>
    %cst_78 = arith.constant 1.000000e+00 : f32
    %216 = vector.broadcast %cst_78 : f32 to vector<4x32xf32>
    %217 = arith.subf %215, %216 : vector<4x32xf32>
    %218 = vector.extract_strided_slice %210 {offsets = [0, 96], sizes = [4, 32], strides = [1, 1]} : vector<4x128xf32> to vector<4x32xf32>
    %219 = arith.mulf %212, %178 : vector<4x32xf32>
    %220 = arith.mulf %211, %217 : vector<4x32xf32>
    %221 = arith.addf %219, %220 : vector<4x32xf32>
    %222 = math.tanh %221 : vector<4x32xf32>
    %223 = arith.mulf %218, %222 : vector<4x32xf32>
    %cst_79 = arith.constant dense<0.000000e+00> : vector<4x128xf32>
    %224 = tpu.matmul %200, %2, %cst_79 {dimension_numbers = #tpu.dot_dimension_numbers<[1], [0], [0], [1], [0, 0, 1, 1], [], []>} : vector<4x32xf32>, vector<32x128xf32>, vector<4x128xf32> -> vector<4x128xf32>
    %225 = arith.addf %32, %224 : vector<4x128xf32>
    %226 = arith.negf %225 : vector<4x128xf32>
    %227 = math.exp %226 : vector<4x128xf32>
    %cst_80 = arith.constant 1.000000e+00 : f32
    %228 = vector.broadcast %cst_80 : f32 to vector<4x128xf32>
    %229 = arith.addf %228, %227 : vector<4x128xf32>
    %230 = arith.divf %228, %229 : vector<4x128xf32>
    %231 = vector.extract_strided_slice %230 {offsets = [0, 0], sizes = [4, 32], strides = [1, 1]} : vector<4x128xf32> to vector<4x32xf32>
    %232 = vector.extract_strided_slice %230 {offsets = [0, 32], sizes = [4, 32], strides = [1, 1]} : vector<4x128xf32> to vector<4x32xf32>
    %233 = vector.extract_strided_slice %230 {offsets = [0, 64], sizes = [4, 32], strides = [1, 1]} : vector<4x128xf32> to vector<4x32xf32>
    %cst_81 = arith.constant 2.000000e+00 : f32
    %234 = vector.broadcast %cst_81 : f32 to vector<4x32xf32>
    %235 = arith.mulf %234, %233 : vector<4x32xf32>
    %cst_82 = arith.constant 1.000000e+00 : f32
    %236 = vector.broadcast %cst_82 : f32 to vector<4x32xf32>
    %237 = arith.subf %235, %236 : vector<4x32xf32>
    %238 = vector.extract_strided_slice %230 {offsets = [0, 96], sizes = [4, 32], strides = [1, 1]} : vector<4x128xf32> to vector<4x32xf32>
    %239 = arith.mulf %232, %198 : vector<4x32xf32>
    %240 = arith.mulf %231, %237 : vector<4x32xf32>
    %241 = arith.addf %239, %240 : vector<4x32xf32>
    %242 = math.tanh %241 : vector<4x32xf32>
    %243 = arith.mulf %238, %242 : vector<4x32xf32>
    %cst_83 = arith.constant dense<0.000000e+00> : vector<4x128xf32>
    %244 = tpu.matmul %223, %3, %cst_83 {dimension_numbers = #tpu.dot_dimension_numbers<[1], [0], [0], [1], [0, 0, 1, 1], [], []>} : vector<4x32xf32>, vector<32x128xf32>, vector<4x128xf32> -> vector<4x128xf32>
    %cst_84 = arith.constant dense<0.000000e+00> : vector<4x128xf32>
    %245 = tpu.matmul %243, %1, %cst_84 {dimension_numbers = #tpu.dot_dimension_numbers<[1], [0], [0], [1], [0, 0, 1, 1], [], []>} : vector<4x32xf32>, vector<32x128xf32>, vector<4x128xf32> -> vector<4x128xf32>
    %246 = arith.addf %245, %244 : vector<4x128xf32>
    %247 = vector.broadcast %5 : vector<1x128xf32> to vector<4x128xf32>
    %248 = arith.addf %246, %247 : vector<4x128xf32>
    %249 = arith.negf %248 : vector<4x128xf32>
    %250 = math.exp %249 : vector<4x128xf32>
    %cst_85 = arith.constant 1.000000e+00 : f32
    %251 = vector.broadcast %cst_85 : f32 to vector<4x128xf32>
    %252 = arith.addf %251, %250 : vector<4x128xf32>
    %253 = arith.divf %251, %252 : vector<4x128xf32>
    %254 = vector.extract_strided_slice %253 {offsets = [0, 0], sizes = [4, 32], strides = [1, 1]} : vector<4x128xf32> to vector<4x32xf32>
    %255 = vector.extract_strided_slice %253 {offsets = [0, 32], sizes = [4, 32], strides = [1, 1]} : vector<4x128xf32> to vector<4x32xf32>
    %256 = vector.extract_strided_slice %253 {offsets = [0, 64], sizes = [4, 32], strides = [1, 1]} : vector<4x128xf32> to vector<4x32xf32>
    %cst_86 = arith.constant 2.000000e+00 : f32
    %257 = vector.broadcast %cst_86 : f32 to vector<4x32xf32>
    %258 = arith.mulf %257, %256 : vector<4x32xf32>
    %cst_87 = arith.constant 1.000000e+00 : f32
    %259 = vector.broadcast %cst_87 : f32 to vector<4x32xf32>
    %260 = arith.subf %258, %259 : vector<4x32xf32>
    %261 = vector.extract_strided_slice %253 {offsets = [0, 96], sizes = [4, 32], strides = [1, 1]} : vector<4x128xf32> to vector<4x32xf32>
    %262 = arith.mulf %255, %221 : vector<4x32xf32>
    %263 = arith.mulf %254, %260 : vector<4x32xf32>
    %264 = arith.addf %262, %263 : vector<4x32xf32>
    %265 = math.tanh %264 : vector<4x32xf32>
    %266 = arith.mulf %261, %265 : vector<4x32xf32>
    %cst_88 = arith.constant dense<0.000000e+00> : vector<4x128xf32>
    %267 = tpu.matmul %243, %2, %cst_88 {dimension_numbers = #tpu.dot_dimension_numbers<[1], [0], [0], [1], [0, 0, 1, 1], [], []>} : vector<4x32xf32>, vector<32x128xf32>, vector<4x128xf32> -> vector<4x128xf32>
    %268 = arith.addf %37, %267 : vector<4x128xf32>
    %269 = arith.negf %268 : vector<4x128xf32>
    %270 = math.exp %269 : vector<4x128xf32>
    %cst_89 = arith.constant 1.000000e+00 : f32
    %271 = vector.broadcast %cst_89 : f32 to vector<4x128xf32>
    %272 = arith.addf %271, %270 : vector<4x128xf32>
    %273 = arith.divf %271, %272 : vector<4x128xf32>
    %274 = vector.extract_strided_slice %273 {offsets = [0, 0], sizes = [4, 32], strides = [1, 1]} : vector<4x128xf32> to vector<4x32xf32>
    %275 = vector.extract_strided_slice %273 {offsets = [0, 32], sizes = [4, 32], strides = [1, 1]} : vector<4x128xf32> to vector<4x32xf32>
    %276 = vector.extract_strided_slice %273 {offsets = [0, 64], sizes = [4, 32], strides = [1, 1]} : vector<4x128xf32> to vector<4x32xf32>
    %cst_90 = arith.constant 2.000000e+00 : f32
    %277 = vector.broadcast %cst_90 : f32 to vector<4x32xf32>
    %278 = arith.mulf %277, %276 : vector<4x32xf32>
    %cst_91 = arith.constant 1.000000e+00 : f32
    %279 = vector.broadcast %cst_91 : f32 to vector<4x32xf32>
    %280 = arith.subf %278, %279 : vector<4x32xf32>
    %281 = vector.extract_strided_slice %273 {offsets = [0, 96], sizes = [4, 32], strides = [1, 1]} : vector<4x128xf32> to vector<4x32xf32>
    %282 = arith.mulf %275, %241 : vector<4x32xf32>
    %283 = arith.mulf %274, %280 : vector<4x32xf32>
    %284 = arith.addf %282, %283 : vector<4x32xf32>
    %285 = math.tanh %284 : vector<4x32xf32>
    %286 = arith.mulf %281, %285 : vector<4x32xf32>
    %cst_92 = arith.constant dense<0.000000e+00> : vector<4x128xf32>
    %287 = tpu.matmul %266, %3, %cst_92 {dimension_numbers = #tpu.dot_dimension_numbers<[1], [0], [0], [1], [0, 0, 1, 1], [], []>} : vector<4x32xf32>, vector<32x128xf32>, vector<4x128xf32> -> vector<4x128xf32>
    %cst_93 = arith.constant dense<0.000000e+00> : vector<4x128xf32>
    %288 = tpu.matmul %286, %1, %cst_93 {dimension_numbers = #tpu.dot_dimension_numbers<[1], [0], [0], [1], [0, 0, 1, 1], [], []>} : vector<4x32xf32>, vector<32x128xf32>, vector<4x128xf32> -> vector<4x128xf32>
    %289 = arith.addf %288, %287 : vector<4x128xf32>
    %290 = vector.broadcast %5 : vector<1x128xf32> to vector<4x128xf32>
    %291 = arith.addf %289, %290 : vector<4x128xf32>
    %292 = arith.negf %291 : vector<4x128xf32>
    %293 = math.exp %292 : vector<4x128xf32>
    %cst_94 = arith.constant 1.000000e+00 : f32
    %294 = vector.broadcast %cst_94 : f32 to vector<4x128xf32>
    %295 = arith.addf %294, %293 : vector<4x128xf32>
    %296 = arith.divf %294, %295 : vector<4x128xf32>
    %297 = vector.extract_strided_slice %296 {offsets = [0, 0], sizes = [4, 32], strides = [1, 1]} : vector<4x128xf32> to vector<4x32xf32>
    %298 = vector.extract_strided_slice %296 {offsets = [0, 32], sizes = [4, 32], strides = [1, 1]} : vector<4x128xf32> to vector<4x32xf32>
    %299 = vector.extract_strided_slice %296 {offsets = [0, 64], sizes = [4, 32], strides = [1, 1]} : vector<4x128xf32> to vector<4x32xf32>
    %cst_95 = arith.constant 2.000000e+00 : f32
    %300 = vector.broadcast %cst_95 : f32 to vector<4x32xf32>
    %301 = arith.mulf %300, %299 : vector<4x32xf32>
    %cst_96 = arith.constant 1.000000e+00 : f32
    %302 = vector.broadcast %cst_96 : f32 to vector<4x32xf32>
    %303 = arith.subf %301, %302 : vector<4x32xf32>
    %304 = vector.extract_strided_slice %296 {offsets = [0, 96], sizes = [4, 32], strides = [1, 1]} : vector<4x128xf32> to vector<4x32xf32>
    %305 = arith.mulf %298, %264 : vector<4x32xf32>
    %306 = arith.mulf %297, %303 : vector<4x32xf32>
    %307 = arith.addf %305, %306 : vector<4x32xf32>
    %308 = math.tanh %307 : vector<4x32xf32>
    %309 = arith.mulf %304, %308 : vector<4x32xf32>
    %cst_97 = arith.constant dense<0.000000e+00> : vector<4x128xf32>
    %310 = tpu.matmul %286, %2, %cst_97 {dimension_numbers = #tpu.dot_dimension_numbers<[1], [0], [0], [1], [0, 0, 1, 1], [], []>} : vector<4x32xf32>, vector<32x128xf32>, vector<4x128xf32> -> vector<4x128xf32>
    %311 = arith.addf %42, %310 : vector<4x128xf32>
    %312 = arith.negf %311 : vector<4x128xf32>
    %313 = math.exp %312 : vector<4x128xf32>
    %cst_98 = arith.constant 1.000000e+00 : f32
    %314 = vector.broadcast %cst_98 : f32 to vector<4x128xf32>
    %315 = arith.addf %314, %313 : vector<4x128xf32>
    %316 = arith.divf %314, %315 : vector<4x128xf32>
    %317 = vector.extract_strided_slice %316 {offsets = [0, 0], sizes = [4, 32], strides = [1, 1]} : vector<4x128xf32> to vector<4x32xf32>
    %318 = vector.extract_strided_slice %316 {offsets = [0, 32], sizes = [4, 32], strides = [1, 1]} : vector<4x128xf32> to vector<4x32xf32>
    %319 = vector.extract_strided_slice %316 {offsets = [0, 64], sizes = [4, 32], strides = [1, 1]} : vector<4x128xf32> to vector<4x32xf32>
    %cst_99 = arith.constant 2.000000e+00 : f32
    %320 = vector.broadcast %cst_99 : f32 to vector<4x32xf32>
    %321 = arith.mulf %320, %319 : vector<4x32xf32>
    %cst_100 = arith.constant 1.000000e+00 : f32
    %322 = vector.broadcast %cst_100 : f32 to vector<4x32xf32>
    %323 = arith.subf %321, %322 : vector<4x32xf32>
    %324 = vector.extract_strided_slice %316 {offsets = [0, 96], sizes = [4, 32], strides = [1, 1]} : vector<4x128xf32> to vector<4x32xf32>
    %325 = arith.mulf %318, %284 : vector<4x32xf32>
    %326 = arith.mulf %317, %323 : vector<4x32xf32>
    %327 = arith.addf %325, %326 : vector<4x32xf32>
    %328 = math.tanh %327 : vector<4x32xf32>
    %329 = arith.mulf %324, %328 : vector<4x32xf32>
    %cst_101 = arith.constant dense<0.000000e+00> : vector<4x128xf32>
    %330 = tpu.matmul %309, %3, %cst_101 {dimension_numbers = #tpu.dot_dimension_numbers<[1], [0], [0], [1], [0, 0, 1, 1], [], []>} : vector<4x32xf32>, vector<32x128xf32>, vector<4x128xf32> -> vector<4x128xf32>
    %cst_102 = arith.constant dense<0.000000e+00> : vector<4x128xf32>
    %331 = tpu.matmul %329, %1, %cst_102 {dimension_numbers = #tpu.dot_dimension_numbers<[1], [0], [0], [1], [0, 0, 1, 1], [], []>} : vector<4x32xf32>, vector<32x128xf32>, vector<4x128xf32> -> vector<4x128xf32>
    %332 = arith.addf %331, %330 : vector<4x128xf32>
    %333 = vector.broadcast %5 : vector<1x128xf32> to vector<4x128xf32>
    %334 = arith.addf %332, %333 : vector<4x128xf32>
    %335 = arith.negf %334 : vector<4x128xf32>
    %336 = math.exp %335 : vector<4x128xf32>
    %cst_103 = arith.constant 1.000000e+00 : f32
    %337 = vector.broadcast %cst_103 : f32 to vector<4x128xf32>
    %338 = arith.addf %337, %336 : vector<4x128xf32>
    %339 = arith.divf %337, %338 : vector<4x128xf32>
    %340 = vector.extract_strided_slice %339 {offsets = [0, 0], sizes = [4, 32], strides = [1, 1]} : vector<4x128xf32> to vector<4x32xf32>
    %341 = vector.extract_strided_slice %339 {offsets = [0, 32], sizes = [4, 32], strides = [1, 1]} : vector<4x128xf32> to vector<4x32xf32>
    %342 = vector.extract_strided_slice %339 {offsets = [0, 64], sizes = [4, 32], strides = [1, 1]} : vector<4x128xf32> to vector<4x32xf32>
    %cst_104 = arith.constant 2.000000e+00 : f32
    %343 = vector.broadcast %cst_104 : f32 to vector<4x32xf32>
    %344 = arith.mulf %343, %342 : vector<4x32xf32>
    %cst_105 = arith.constant 1.000000e+00 : f32
    %345 = vector.broadcast %cst_105 : f32 to vector<4x32xf32>
    %346 = arith.subf %344, %345 : vector<4x32xf32>
    %347 = vector.extract_strided_slice %339 {offsets = [0, 96], sizes = [4, 32], strides = [1, 1]} : vector<4x128xf32> to vector<4x32xf32>
    %348 = arith.mulf %341, %307 : vector<4x32xf32>
    %349 = arith.mulf %340, %346 : vector<4x32xf32>
    %350 = arith.addf %348, %349 : vector<4x32xf32>
    %351 = math.tanh %350 : vector<4x32xf32>
    %352 = arith.mulf %347, %351 : vector<4x32xf32>
    %cst_106 = arith.constant dense<0.000000e+00> : vector<4x128xf32>
    %353 = tpu.matmul %329, %2, %cst_106 {dimension_numbers = #tpu.dot_dimension_numbers<[1], [0], [0], [1], [0, 0, 1, 1], [], []>} : vector<4x32xf32>, vector<32x128xf32>, vector<4x128xf32> -> vector<4x128xf32>
    %354 = arith.addf %47, %353 : vector<4x128xf32>
    %355 = arith.negf %354 : vector<4x128xf32>
    %356 = math.exp %355 : vector<4x128xf32>
    %cst_107 = arith.constant 1.000000e+00 : f32
    %357 = vector.broadcast %cst_107 : f32 to vector<4x128xf32>
    %358 = arith.addf %357, %356 : vector<4x128xf32>
    %359 = arith.divf %357, %358 : vector<4x128xf32>
    %360 = vector.extract_strided_slice %359 {offsets = [0, 0], sizes = [4, 32], strides = [1, 1]} : vector<4x128xf32> to vector<4x32xf32>
    %361 = vector.extract_strided_slice %359 {offsets = [0, 32], sizes = [4, 32], strides = [1, 1]} : vector<4x128xf32> to vector<4x32xf32>
    %362 = vector.extract_strided_slice %359 {offsets = [0, 64], sizes = [4, 32], strides = [1, 1]} : vector<4x128xf32> to vector<4x32xf32>
    %cst_108 = arith.constant 2.000000e+00 : f32
    %363 = vector.broadcast %cst_108 : f32 to vector<4x32xf32>
    %364 = arith.mulf %363, %362 : vector<4x32xf32>
    %cst_109 = arith.constant 1.000000e+00 : f32
    %365 = vector.broadcast %cst_109 : f32 to vector<4x32xf32>
    %366 = arith.subf %364, %365 : vector<4x32xf32>
    %367 = vector.extract_strided_slice %359 {offsets = [0, 96], sizes = [4, 32], strides = [1, 1]} : vector<4x128xf32> to vector<4x32xf32>
    %368 = arith.mulf %361, %327 : vector<4x32xf32>
    %369 = arith.mulf %360, %366 : vector<4x32xf32>
    %370 = arith.addf %368, %369 : vector<4x32xf32>
    %371 = math.tanh %370 : vector<4x32xf32>
    %372 = arith.mulf %367, %371 : vector<4x32xf32>
    %cst_110 = arith.constant dense<0.000000e+00> : vector<4x128xf32>
    %373 = tpu.matmul %352, %3, %cst_110 {dimension_numbers = #tpu.dot_dimension_numbers<[1], [0], [0], [1], [0, 0, 1, 1], [], []>} : vector<4x32xf32>, vector<32x128xf32>, vector<4x128xf32> -> vector<4x128xf32>
    %cst_111 = arith.constant dense<0.000000e+00> : vector<4x128xf32>
    %374 = tpu.matmul %372, %1, %cst_111 {dimension_numbers = #tpu.dot_dimension_numbers<[1], [0], [0], [1], [0, 0, 1, 1], [], []>} : vector<4x32xf32>, vector<32x128xf32>, vector<4x128xf32> -> vector<4x128xf32>
    %375 = arith.addf %374, %373 : vector<4x128xf32>
    %376 = vector.broadcast %5 : vector<1x128xf32> to vector<4x128xf32>
    %377 = arith.addf %375, %376 : vector<4x128xf32>
    %378 = arith.negf %377 : vector<4x128xf32>
    %379 = math.exp %378 : vector<4x128xf32>
    %cst_112 = arith.constant 1.000000e+00 : f32
    %380 = vector.broadcast %cst_112 : f32 to vector<4x128xf32>
    %381 = arith.addf %380, %379 : vector<4x128xf32>
    %382 = arith.divf %380, %381 : vector<4x128xf32>
    %383 = vector.extract_strided_slice %382 {offsets = [0, 0], sizes = [4, 32], strides = [1, 1]} : vector<4x128xf32> to vector<4x32xf32>
    %384 = vector.extract_strided_slice %382 {offsets = [0, 32], sizes = [4, 32], strides = [1, 1]} : vector<4x128xf32> to vector<4x32xf32>
    %385 = vector.extract_strided_slice %382 {offsets = [0, 64], sizes = [4, 32], strides = [1, 1]} : vector<4x128xf32> to vector<4x32xf32>
    %cst_113 = arith.constant 2.000000e+00 : f32
    %386 = vector.broadcast %cst_113 : f32 to vector<4x32xf32>
    %387 = arith.mulf %386, %385 : vector<4x32xf32>
    %cst_114 = arith.constant 1.000000e+00 : f32
    %388 = vector.broadcast %cst_114 : f32 to vector<4x32xf32>
    %389 = arith.subf %387, %388 : vector<4x32xf32>
    %390 = vector.extract_strided_slice %382 {offsets = [0, 96], sizes = [4, 32], strides = [1, 1]} : vector<4x128xf32> to vector<4x32xf32>
    %391 = arith.mulf %384, %350 : vector<4x32xf32>
    %392 = arith.mulf %383, %389 : vector<4x32xf32>
    %393 = arith.addf %391, %392 : vector<4x32xf32>
    %394 = math.tanh %393 : vector<4x32xf32>
    %395 = arith.mulf %390, %394 : vector<4x32xf32>
    %cst_115 = arith.constant dense<0.000000e+00> : vector<4x8xf32>
    %396 = tpu.matmul %395, %6, %cst_115 {dimension_numbers = #tpu.dot_dimension_numbers<[1], [0], [0], [1], [0, 0, 1, 1], [], []>} : vector<4x32xf32>, vector<32x8xf32>, vector<4x8xf32> -> vector<4x8xf32>
    %397 = vector.broadcast %7 : vector<1x8xf32> to vector<4x8xf32>
    %398 = arith.addf %396, %397 : vector<4x8xf32>
    %c0_116 = arith.constant 0 : index
    %c0_117 = arith.constant 0 : index
    %399 = vector.load %arg9[%c0_116, %c0_117] : memref<4x8xf32, #tpu.memory_space<vmem>>, vector<4x8xf32>
    tpu.vector_store %arg9[%c0_116, %c0_117], %398 {strides = array<i32>} : memref<4x8xf32, #tpu.memory_space<vmem>>, vector<4x8xf32>,
    return
  }
}

</mosaic_0001>

<llo_original>
// kernel: lstm_model_forward.1
$region0: #{lstm_model_forward.1}
  #allocation0 [shape = 'u32[]', space=smem, size = 0x4, offset = 0x4, fixed_abs, tag = 'smem constant byte address 0x4 - core index']
  #allocation1 [shape = 'u32[144,128]{1,0:T(1,128)}', space=vmem, size = 0x12000, scoped, tag = 'internal scratch']
  %s0 = inlined_call_operand.vmem [shape: f32[4,8,16], index: 0, kind: input, shape index: {}]
  %s1 = inlined_call_operand.vmem [shape: f32[16,128], index: 1, kind: input, shape index: {}]
  %s2 = inlined_call_operand.hbm [shape: f32[32,128], index: 2, kind: input, shape index: {}]
  %s3 = inlined_call_operand.vmem [shape: f32[1,128], index: 3, kind: input, shape index: {}]
  %s4 = inlined_call_operand.hbm [shape: f32[32,128], index: 4, kind: input, shape index: {}]
  %s5 = inlined_call_operand.hbm [shape: f32[32,128], index: 5, kind: input, shape index: {}]
  %s6 = inlined_call_operand.vmem [shape: f32[1,128], index: 6, kind: input, shape index: {}]
  %s7 = inlined_call_operand.vmem [shape: f32[32,8], index: 7, kind: input, shape index: {}]
  %s8 = inlined_call_operand.vmem [shape: f32[1,8], index: 8, kind: input, shape index: {}]
  %s9 = inlined_call_operand.hbm [shape: f32[4,8], index: 9, kind: output, shape index: {}]
  %s10 = sld [smem:[#allocation0]]
  $region58: #{lstm_model_forward.1} parent=0
    _
  %s12 = ssub.s32 1, %s10
  %s13 = scalar_select 0, %s12, %s10
  $region1: #{lstm_model_forward.1} parent=0
    #allocation2 [shape = 'u8[16384]{0}', space=vmem, size = 0x4000, scoped, tag = 'input window, operand 2, single buffered']
    #allocation3 [shape = 's32[1]{0}', space=sflag, size = 0x4, scoped, tag = 'scoped memory for lstm_model_forward.1']
    #allocation4 [shape = 's32[1]{0}', space=sflag, size = 0x4, scoped, tag = 'scoped memory for lstm_model_forward.1']
    #allocation5 [shape = 'u8[16384]{0}', space=vmem, size = 0x4000, scoped, tag = 'input window, operand 4, single buffered']
    #allocation6 [shape = 's32[1]{0}', space=sflag, size = 0x4, scoped, tag = 'scoped memory for lstm_model_forward.1']
    #allocation7 [shape = 'u8[16384]{0}', space=vmem, size = 0x4000, scoped, tag = 'input window, operand 5, single buffered']
    #allocation8 [shape = 'u8[2048]{0}', space=vmem, size = 0x800, scoped, tag = 'output window, operand 0, single buffered']
    %14 = vsyncpa [#allocation3], 0
    %15 = vsyncpa [#allocation6], 0
    %16 = vsyncpa [#allocation4], 0
    // Predicated region
    $region2: #{lstm_model_forward.1} parent=1 // pred_check
      _
    $region3: #{lstm_model_forward.1} parent=1 // pred_check_branch
      %18 = sbr.rel (0) target = $region5
    $region4: #{lstm_model_forward.1} parent=1 // pred_region
      _
    $region5: #{lstm_model_forward.1} parent=1 // pred_fallthru
      _
    // Predicated region
    $region6: #{lstm_model_forward.1} parent=1 // pred_check
      _
    $region7: #{lstm_model_forward.1} parent=1 // pred_check_branch
      %20 = sbr.rel (0) target = $region9
    $region8: #{lstm_model_forward.1} parent=1 // pred_region
      _
    $region9: #{lstm_model_forward.1} parent=1 // pred_fallthru
      _
    // Predicated region
    $region10: #{lstm_model_forward.1} parent=1 // pred_check
      _
    $region11: #{lstm_model_forward.1} parent=1 // pred_check_branch
      %22 = sbr.rel (0) target = $region13
    $region12: #{lstm_model_forward.1} parent=1 // pred_region
      %s24 = ssub.s32 512, 512
      %25 = vsyncadd [#allocation3], %s24
      %s26 = sshll.u32 [#allocation2], 4
      %s27 = int_to_ptr.vmem [resolvable:$true] %s26
      %32 = dma.hbm_to_vmem [thread:$0]  %s2, 512, %s27, [#allocation3], 128, 128, 8
    $region13: #{lstm_model_forward.1} parent=1 // pred_fallthru
      _
    // Predicated region
    $region14: #{lstm_model_forward.1} parent=1 // pred_check
      _
    $region15: #{lstm_model_forward.1} parent=1 // pred_check_branch
      %34 = sbr.rel (0) target = $region17
    $region16: #{lstm_model_forward.1} parent=1 // pred_region
      _
    $region17: #{lstm_model_forward.1} parent=1 // pred_fallthru
      _
    // Predicated region
    $region18: #{lstm_model_forward.1} parent=1 // pred_check
      _
    $region19: #{lstm_model_forward.1} parent=1 // pred_check_branch
      %36 = sbr.rel (0) target = $region21
    $region20: #{lstm_model_forward.1} parent=1 // pred_region
      %s38 = ssub.s32 512, 512
      %39 = vsyncadd [#allocation6], %s38
      %s40 = sshll.u32 [#allocation5], 4
      %s41 = int_to_ptr.vmem [resolvable:$true] %s40
      %46 = dma.hbm_to_vmem [thread:$0]  %s4, 512, %s41, [#allocation6], 128, 128, 8
    $region21: #{lstm_model_forward.1} parent=1 // pred_fallthru
      _
    // Predicated region
    $region22: #{lstm_model_forward.1} parent=1 // pred_check
      _
    $region23: #{lstm_model_forward.1} parent=1 // pred_check_branch
      %48 = sbr.rel (0) target = $region25
    $region24: #{lstm_model_forward.1} parent=1 // pred_region
      %s50 = ssub.s32 512, 512
      %51 = vsyncadd [#allocation6], %s50
      %s52 = sshll.u32 [#allocation7], 4
      %s53 = int_to_ptr.vmem [resolvable:$true] %s52
      %58 = dma.hbm_to_vmem [thread:$0]  %s5, 512, %s53, [#allocation6], 128, 128, 8
    $region25: #{lstm_model_forward.1} parent=1 // pred_fallthru
      _
    // Predicated region
    $region26: #{lstm_model_forward.1} parent=1 // pred_check
      _
    $region27: #{lstm_model_forward.1} parent=1 // pred_check_branch
      %60 = sbr.rel (0) target = $region29
    $region28: #{lstm_model_forward.1} parent=1 // pred_region
      _
    $region29: #{lstm_model_forward.1} parent=1 // pred_fallthru
      _
    // Predicated region
    $region30: #{lstm_model_forward.1} parent=1 // pred_check
      _
    $region31: #{lstm_model_forward.1} parent=1 // pred_check_branch
      %62 = sbr.rel (0) target = $region33
    $region32: #{lstm_model_forward.1} parent=1 // pred_region
      _
    $region33: #{lstm_model_forward.1} parent=1 // pred_fallthru
      _
    // Predicated region
    $region34: #{lstm_model_forward.1} parent=1 // pred_check
      _
    $region35: #{lstm_model_forward.1} parent=1 // pred_check_branch
      %64 = sbr.rel (0) target = $region37
    $region36: #{lstm_model_forward.1} parent=1 // pred_region
      _
    $region37: #{lstm_model_forward.1} parent=1 // pred_fallthru
      _
    // Predicated region
    $region38: #{lstm_model_forward.1} parent=1 // pred_check
      _
    $region39: #{lstm_model_forward.1} parent=1 // pred_check_branch
      %66 = sbr.rel (0) target = $region41
    $region40: #{lstm_model_forward.1} parent=1 // pred_region
      %67 = dma.done [#allocation3], 512
    $region41: #{lstm_model_forward.1} parent=1 // pred_fallthru
      _
    // Predicated region
    $region42: #{lstm_model_forward.1} parent=1 // pred_check
      _
    $region43: #{lstm_model_forward.1} parent=1 // pred_check_branch
      %69 = sbr.rel (0) target = $region45
    $region44: #{lstm_model_forward.1} parent=1 // pred_region
      %70 = dma.done [#allocation6], 512
    $region45: #{lstm_model_forward.1} parent=1 // pred_fallthru
      _
    // Predicated region
    $region46: #{lstm_model_forward.1} parent=1 // pred_check
      _
    $region47: #{lstm_model_forward.1} parent=1 // pred_check_branch
      %72 = sbr.rel (0) target = $region49
    $region48: #{lstm_model_forward.1} parent=1 // pred_region
      %73 = dma.done [#allocation6], 512
    $region49: #{lstm_model_forward.1} parent=1 // pred_fallthru
      _
    %v74 = vld [vmem:[%s1] sm:$0xff]
    %v75 = vld [vmem:[%s1 + $0x8] sm:$0xff]
    %v76 = vld [vmem:[#allocation5] sm:$0xff]
    %v77 = vld [vmem:[#allocation5 + $0x8] sm:$0xff]
    %v78 = vld [vmem:[#allocation5 + $0x10] sm:$0xff]
    %v79 = vld [vmem:[#allocation5 + $0x18] sm:$0xff]
    %v80 = vld [vmem:[#allocation2] sm:$0xff]
    %v81 = vld [vmem:[#allocation2 + $0x8] sm:$0xff]
    %v82 = vld [vmem:[#allocation2 + $0x10] sm:$0xff]
    %v83 = vld [vmem:[#allocation2 + $0x18] sm:$0xff]
    %v84 = vld [vmem:[#allocation7] sm:$0xff]
    %v85 = vld [vmem:[#allocation7 + $0x8] sm:$0xff]
    %v86 = vld [vmem:[#allocation7 + $0x10] sm:$0xff]
    %v87 = vld [vmem:[#allocation7 + $0x18] sm:$0xff]
    %v88 = vld [vmem:[%s3] sm:$0x1]
    %v89 = vld [vmem:[%s6] sm:$0x1]
    %v90 = vld [vmem:[%s7] sm:$0xff]
    %v91 = vld [vmem:[%s7 + $0x8] sm:$0xff]
    %v92 = vld [vmem:[%s7 + $0x10] sm:$0xff]
    %v93 = vld [vmem:[%s7 + $0x18] sm:$0xff]
    %v94 = vld [vmem:[%s8] sm:$0x1]
    %v95 = vld [vmem:[%s0] sm:$0x1]
    %v96 = vld [vmem:[%s0 + $0x8] sm:$0x1]
    %v97 = vld [vmem:[%s0 + $0x10] sm:$0x1]
    %v98 = vld [vmem:[%s0 + $0x18] sm:$0x1]
    %v100 = vlaneseq
    %v101 = vshrl.u32 %v100, 7
    %v102 = vsub.s32 0, %v101
    %v103 = vrot.slane %v88, %v102
    %v109 = vrot.slane %v96, 7
    %vm110 = vcmask 1041409
    %v111 = vsel %vm110, %v109, %v95
    %v112 = vrot.slane %v97, 6
    %vm113 = vcmask 1042434
    %v114 = vsel %vm113, %v112, %v111
    %v115 = vrot.slane %v98, 5
    %vm116 = vcmask 1043459
    %v117 = vsel %vm116, %v115, %v114
    %vm118 = vcmask 130048
    %v119 = vsel %vm118, %v117, 0
    %121 = vmatprep.subr.mxu0 0.0
    %122 = vmatpush1.msra.mxu0 0.0
    %123 = vmatprep.subr.mxu0 0.0
    %124 = vmatpush1.msra.mxu0 0.0
    %125 = vmatprep.subr.mxu0 0.0
    %126 = vmatpush1.msra.mxu0 0.0
    %127 = vmatprep.subr.mxu0 0.0
    %128 = vmatpush1.msra.mxu0 0.0
    %129 = vmatprep.subr.mxu0 0.0
    %130 = vmatpush1.msra.mxu0 0.0
    %131 = vmatprep.subr.mxu0 0.0
    %132 = vmatpush1.msra.mxu0 0.0
    %133 = vmatprep.subr.mxu0 0.0
    %134 = vmatpush1.msra.mxu0 0.0
    %135 = vmatprep.subr.mxu0 0.0
    %136 = vmatpush1.msra.mxu0 0.0
    %137 = vmatprep.subr.mxu0 0.0
    %138 = vmatpush1.msra.mxu0 0.0
    %139 = vmatprep.subr.mxu0 0.0
    %140 = vmatpush1.msra.mxu0 0.0
    %141 = vmatprep.subr.mxu0 0.0
    %142 = vmatpush1.msra.mxu0 0.0
    %143 = vmatprep.subr.mxu0 0.0
    %144 = vmatpush1.msra.mxu0 0.0
    %145 = vmatprep.subr.mxu0 0.0
    %146 = vmatpush1.msra.mxu0 0.0
    %147 = vmatprep.subr.mxu0 0.0
    %148 = vmatpush1.msra.mxu0 0.0
    %149 = vmatprep.subr.mxu0 0.0
    %150 = vmatpush1.msra.mxu0 %v75
    %151 = vmatprep.subr.mxu0 0.0
    %152 = vmatpush1.msra.mxu0 %v74
    %153 = vmatprep.subr.mxu0 0.0
    %154 = vmatpush2.msra.mxu0 0.0
    %155 = vmatprep.subr.mxu0 0.0
    %156 = vmatpush2.msra.mxu0 0.0
    %157 = vmatprep.subr.mxu0 0.0
    %158 = vmatpush2.msra.mxu0 0.0
    %159 = vmatprep.subr.mxu0 0.0
    %160 = vmatpush2.msra.mxu0 0.0
    %161 = vmatprep.subr.mxu0 0.0
    %162 = vmatpush2.msra.mxu0 0.0
    %163 = vmatprep.subr.mxu0 0.0
    %164 = vmatpush2.msra.mxu0 0.0
    %165 = vmatprep.subr.mxu0 0.0
    %166 = vmatpush2.msra.mxu0 0.0
    %167 = vmatprep.subr.mxu0 0.0
    %168 = vmatpush2.msra.mxu0 0.0
    %169 = vmatprep.subr.mxu0 0.0
    %170 = vmatpush2.msra.mxu0 0.0
    %171 = vmatprep.subr.mxu0 0.0
    %172 = vmatpush2.msra.mxu0 0.0
    %173 = vmatprep.subr.mxu0 0.0
    %174 = vmatpush2.msra.mxu0 0.0
    %175 = vmatprep.subr.mxu0 0.0
    %176 = vmatpush2.msra.mxu0 0.0
    %177 = vmatprep.subr.mxu0 0.0
    %178 = vmatpush2.msra.mxu0 0.0
    %179 = vmatprep.subr.mxu0 0.0
    %180 = vmatpush2.msra.mxu0 0.0
    %181 = vmatprep.subr.mxu0 0.0
    %182 = vmatpush2.msra.mxu0 0.0
    %183 = vmatprep.subr.mxu0 0.0
    %184 = vmatpush2.msra.mxu0 0.0
    %185 = vmatprep.mubr.f32.mxu0 0.0
    %186 = vmatmul.mubr.f32.gmra.mxu0 %v119
    %v187 = vpop.f32.mrf.mxu0
    %v188 = vadd.f32 %v103, %v187
    %v189 = vpop.f32.mrf.mxu0
    %190 = vdwg.mxu0
    %v191 = vld [vmem:[%s0 + $0x1] sm:$0x1]
    %v192 = vld [vmem:[%s0 + $0x9] sm:$0x1]
    %v193 = vld [vmem:[%s0 + $0x11] sm:$0x1]
    %v194 = vld [vmem:[%s0 + $0x19] sm:$0x1]
    %v199 = vrot.slane %v192, 7
    %v200 = vsel %vm110, %v199, %v191
    %v201 = vrot.slane %v193, 6
    %v202 = vsel %vm113, %v201, %v200
    %v203 = vrot.slane %v194, 5
    %v204 = vsel %vm116, %v203, %v202
    %v205 = vsel %vm118, %v204, 0
    %207 = vmatprep.subr.mxu0 0.0
    %208 = vmatpush1.msra.mxu0 0.0
    %209 = vmatprep.subr.mxu0 0.0
    %210 = vmatpush1.msra.mxu0 0.0
    %211 = vmatprep.subr.mxu0 0.0
    %212 = vmatpush1.msra.mxu0 0.0
    %213 = vmatprep.subr.mxu0 0.0
    %214 = vmatpush1.msra.mxu0 0.0
    %215 = vmatprep.subr.mxu0 0.0
    %216 = vmatpush1.msra.mxu0 0.0
    %217 = vmatprep.subr.mxu0 0.0
    %218 = vmatpush1.msra.mxu0 0.0
    %219 = vmatprep.subr.mxu0 0.0
    %220 = vmatpush1.msra.mxu0 0.0
    %221 = vmatprep.subr.mxu0 0.0
    %222 = vmatpush1.msra.mxu0 0.0
    %223 = vmatprep.subr.mxu0 0.0
    %224 = vmatpush1.msra.mxu0 0.0
    %225 = vmatprep.subr.mxu0 0.0
    %226 = vmatpush1.msra.mxu0 0.0
    %227 = vmatprep.subr.mxu0 0.0
    %228 = vmatpush1.msra.mxu0 0.0
    %229 = vmatprep.subr.mxu0 0.0
    %230 = vmatpush1.msra.mxu0 0.0
    %231 = vmatprep.subr.mxu0 0.0
    %232 = vmatpush1.msra.mxu0 0.0
    %233 = vmatprep.subr.mxu0 0.0
    %234 = vmatpush1.msra.mxu0 0.0
    %235 = vmatprep.subr.mxu0 0.0
    %236 = vmatpush1.msra.mxu0 %v75
    %237 = vmatprep.subr.mxu0 0.0
    %238 = vmatpush1.msra.mxu0 %v74
    %239 = vmatprep.subr.mxu0 0.0
    %240 = vmatpush2.msra.mxu0 0.0
    %241 = vmatprep.subr.mxu0 0.0
    %242 = vmatpush2.msra.mxu0 0.0
    %243 = vmatprep.subr.mxu0 0.0
    %244 = vmatpush2.msra.mxu0 0.0
    %245 = vmatprep.subr.mxu0 0.0
    %246 = vmatpush2.msra.mxu0 0.0
    %247 = vmatprep.subr.mxu0 0.0
    %248 = vmatpush2.msra.mxu0 0.0
    %249 = vmatprep.subr.mxu0 0.0
    %250 = vmatpush2.msra.mxu0 0.0
    %251 = vmatprep.subr.mxu0 0.0
    %252 = vmatpush2.msra.mxu0 0.0
    %253 = vmatprep.subr.mxu0 0.0
    %254 = vmatpush2.msra.mxu0 0.0
    %255 = vmatprep.subr.mxu0 0.0
    %256 = vmatpush2.msra.mxu0 0.0
    %257 = vmatprep.subr.mxu0 0.0
    %258 = vmatpush2.msra.mxu0 0.0
    %259 = vmatprep.subr.mxu0 0.0
    %260 = vmatpush2.msra.mxu0 0.0
    %261 = vmatprep.subr.mxu0 0.0
    %262 = vmatpush2.msra.mxu0 0.0
    %263 = vmatprep.subr.mxu0 0.0
    %264 = vmatpush2.msra.mxu0 0.0
    %265 = vmatprep.subr.mxu0 0.0
    %266 = vmatpush2.msra.mxu0 0.0
    %267 = vmatprep.subr.mxu0 0.0
    %268 = vmatpush2.msra.mxu0 0.0
    %269 = vmatprep.subr.mxu0 0.0
    %270 = vmatpush2.msra.mxu0 0.0
    %271 = vmatprep.mubr.f32.mxu0 0.0
    %272 = vmatmul.mubr.f32.gmra.mxu0 %v205
    %v273 = vpop.f32.mrf.mxu0
    %v274 = vadd.f32 %v103, %v273
    %v275 = vpop.f32.mrf.mxu0
    %276 = vdwg.mxu0
    %v277 = vld [vmem:[%s0 + $0x2] sm:$0x1]
    %v278 = vld [vmem:[%s0 + $0xa] sm:$0x1]
    %v279 = vld [vmem:[%s0 + $0x12] sm:$0x1]
    %v280 = vld [vmem:[%s0 + $0x1a] sm:$0x1]
    %v285 = vrot.slane %v278, 7
    %v286 = vsel %vm110, %v285, %v277
    %v287 = vrot.slane %v279, 6
    %v288 = vsel %vm113, %v287, %v286
    %v289 = vrot.slane %v280, 5
    %v290 = vsel %vm116, %v289, %v288
    %v291 = vsel %vm118, %v290, 0
    %293 = vmatprep.subr.mxu0 0.0
    %294 = vmatpush1.msra.mxu0 0.0
    %295 = vmatprep.subr.mxu0 0.0
    %296 = vmatpush1.msra.mxu0 0.0
    %297 = vmatprep.subr.mxu0 0.0
    %298 = vmatpush1.msra.mxu0 0.0
    %299 = vmatprep.subr.mxu0 0.0
    %300 = vmatpush1.msra.mxu0 0.0
    %301 = vmatprep.subr.mxu0 0.0
    %302 = vmatpush1.msra.mxu0 0.0
    %303 = vmatprep.subr.mxu0 0.0
    %304 = vmatpush1.msra.mxu0 0.0
    %305 = vmatprep.subr.mxu0 0.0
    %306 = vmatpush1.msra.mxu0 0.0
    %307 = vmatprep.subr.mxu0 0.0
    %308 = vmatpush1.msra.mxu0 0.0
    %309 = vmatprep.subr.mxu0 0.0
    %310 = vmatpush1.msra.mxu0 0.0
    %311 = vmatprep.subr.mxu0 0.0
    %312 = vmatpush1.msra.mxu0 0.0
    %313 = vmatprep.subr.mxu0 0.0
    %314 = vmatpush1.msra.mxu0 0.0
    %315 = vmatprep.subr.mxu0 0.0
    %316 = vmatpush1.msra.mxu0 0.0
    %317 = vmatprep.subr.mxu0 0.0
    %318 = vmatpush1.msra.mxu0 0.0
    %319 = vmatprep.subr.mxu0 0.0
    %320 = vmatpush1.msra.mxu0 0.0
    %321 = vmatprep.subr.mxu0 0.0
    %322 = vmatpush1.msra.mxu0 %v75
    %323 = vmatprep.subr.mxu0 0.0
    %324 = vmatpush1.msra.mxu0 %v74
    %325 = vmatprep.subr.mxu0 0.0
    %326 = vmatpush2.msra.mxu0 0.0
    %327 = vmatprep.subr.mxu0 0.0
    %328 = vmatpush2.msra.mxu0 0.0
    %329 = vmatprep.subr.mxu0 0.0
    %330 = vmatpush2.msra.mxu0 0.0
    %331 = vmatprep.subr.mxu0 0.0
    %332 = vmatpush2.msra.mxu0 0.0
    %333 = vmatprep.subr.mxu0 0.0
    %334 = vmatpush2.msra.mxu0 0.0
    %335 = vmatprep.subr.mxu0 0.0
    %336 = vmatpush2.msra.mxu0 0.0
    %337 = vmatprep.subr.mxu0 0.0
    %338 = vmatpush2.msra.mxu0 0.0
    %339 = vmatprep.subr.mxu0 0.0
    %340 = vmatpush2.msra.mxu0 0.0
    %341 = vmatprep.subr.mxu0 0.0
    %342 = vmatpush2.msra.mxu0 0.0
    %343 = vmatprep.subr.mxu0 0.0
    %344 = vmatpush2.msra.mxu0 0.0
    %345 = vmatprep.subr.mxu0 0.0
    %346 = vmatpush2.msra.mxu0 0.0
    %347 = vmatprep.subr.mxu0 0.0
    %348 = vmatpush2.msra.mxu0 0.0
    %349 = vmatprep.subr.mxu0 0.0
    %350 = vmatpush2.msra.mxu0 0.0
    %351 = vmatprep.subr.mxu0 0.0
    %352 = vmatpush2.msra.mxu0 0.0
    %353 = vmatprep.subr.mxu0 0.0
    %354 = vmatpush2.msra.mxu0 0.0
    %355 = vmatprep.subr.mxu0 0.0
    %356 = vmatpush2.msra.mxu0 0.0
    %357 = vmatprep.mubr.f32.mxu0 0.0
    %358 = vmatmul.mubr.f32.gmra.mxu0 %v291
    %v359 = vpop.f32.mrf.mxu0
    %v360 = vadd.f32 %v103, %v359
    %v361 = vpop.f32.mrf.mxu0
    %362 = vdwg.mxu0
    %v363 = vld [vmem:[%s0 + $0x3] sm:$0x1]
    %v364 = vld [vmem:[%s0 + $0xb] sm:$0x1]
    %v365 = vld [vmem:[%s0 + $0x13] sm:$0x1]
    %v366 = vld [vmem:[%s0 + $0x1b] sm:$0x1]
    %v371 = vrot.slane %v364, 7
    %v372 = vsel %vm110, %v371, %v363
    %v373 = vrot.slane %v365, 6
    %v374 = vsel %vm113, %v373, %v372
    %v375 = vrot.slane %v366, 5
    %v376 = vsel %vm116, %v375, %v374
    %v377 = vsel %vm118, %v376, 0
    %379 = vmatprep.subr.mxu0 0.0
    %380 = vmatpush1.msra.mxu0 0.0
    %381 = vmatprep.subr.mxu0 0.0
    %382 = vmatpush1.msra.mxu0 0.0
    %383 = vmatprep.subr.mxu0 0.0
    %384 = vmatpush1.msra.mxu0 0.0
    %385 = vmatprep.subr.mxu0 0.0
    %386 = vmatpush1.msra.mxu0 0.0
    %387 = vmatprep.subr.mxu0 0.0
    %388 = vmatpush1.msra.mxu0 0.0
    %389 = vmatprep.subr.mxu0 0.0
    %390 = vmatpush1.msra.mxu0 0.0
    %391 = vmatprep.subr.mxu0 0.0
    %392 = vmatpush1.msra.mxu0 0.0
    %393 = vmatprep.subr.mxu0 0.0
    %394 = vmatpush1.msra.mxu0 0.0
    %395 = vmatprep.subr.mxu0 0.0
    %396 = vmatpush1.msra.mxu0 0.0
    %397 = vmatprep.subr.mxu0 0.0
    %398 = vmatpush1.msra.mxu0 0.0
    %399 = vmatprep.subr.mxu0 0.0
    %400 = vmatpush1.msra.mxu0 0.0
    %401 = vmatprep.subr.mxu0 0.0
    %402 = vmatpush1.msra.mxu0 0.0
    %403 = vmatprep.subr.mxu0 0.0
    %404 = vmatpush1.msra.mxu0 0.0
    %405 = vmatprep.subr.mxu0 0.0
    %406 = vmatpush1.msra.mxu0 0.0
    %407 = vmatprep.subr.mxu0 0.0
    %408 = vmatpush1.msra.mxu0 %v75
    %409 = vmatprep.subr.mxu0 0.0
    %410 = vmatpush1.msra.mxu0 %v74
    %411 = vmatprep.subr.mxu0 0.0
    %412 = vmatpush2.msra.mxu0 0.0
    %413 = vmatprep.subr.mxu0 0.0
    %414 = vmatpush2.msra.mxu0 0.0
    %415 = vmatprep.subr.mxu0 0.0
    %416 = vmatpush2.msra.mxu0 0.0
    %417 = vmatprep.subr.mxu0 0.0
    %418 = vmatpush2.msra.mxu0 0.0
    %419 = vmatprep.subr.mxu0 0.0
    %420 = vmatpush2.msra.mxu0 0.0
    %421 = vmatprep.subr.mxu0 0.0
    %422 = vmatpush2.msra.mxu0 0.0
    %423 = vmatprep.subr.mxu0 0.0
    %424 = vmatpush2.msra.mxu0 0.0
    %425 = vmatprep.subr.mxu0 0.0
    %426 = vmatpush2.msra.mxu0 0.0
    %427 = vmatprep.subr.mxu0 0.0
    %428 = vmatpush2.msra.mxu0 0.0
    %429 = vmatprep.subr.mxu0 0.0
    %430 = vmatpush2.msra.mxu0 0.0
    %431 = vmatprep.subr.mxu0 0.0
    %432 = vmatpush2.msra.mxu0 0.0
    %433 = vmatprep.subr.mxu0 0.0
    %434 = vmatpush2.msra.mxu0 0.0
    %435 = vmatprep.subr.mxu0 0.0
    %436 = vmatpush2.msra.mxu0 0.0
    %437 = vmatprep.subr.mxu0 0.0
    %438 = vmatpush2.msra.mxu0 0.0
    %439 = vmatprep.subr.mxu0 0.0
    %440 = vmatpush2.msra.mxu0 0.0
    %441 = vmatprep.subr.mxu0 0.0
    %442 = vmatpush2.msra.mxu0 0.0
    %443 = vmatprep.mubr.f32.mxu0 0.0
    %444 = vmatmul.mubr.f32.gmra.mxu0 %v377
    %v445 = vpop.f32.mrf.mxu0
    %v446 = vadd.f32 %v103, %v445
    %v447 = vpop.f32.mrf.mxu0
    %448 = vdwg.mxu0
    %v449 = vld [vmem:[%s0 + $0x4] sm:$0x1]
    %v450 = vld [vmem:[%s0 + $0xc] sm:$0x1]
    %v451 = vld [vmem:[%s0 + $0x14] sm:$0x1]
    %v452 = vld [vmem:[%s0 + $0x1c] sm:$0x1]
    %v457 = vrot.slane %v450, 7
    %v458 = vsel %vm110, %v457, %v449
    %v459 = vrot.slane %v451, 6
    %v460 = vsel %vm113, %v459, %v458
    %v461 = vrot.slane %v452, 5
    %v462 = vsel %vm116, %v461, %v460
    %v463 = vsel %vm118, %v462, 0
    %465 = vmatprep.subr.mxu0 0.0
    %466 = vmatpush1.msra.mxu0 0.0
    %467 = vmatprep.subr.mxu0 0.0
    %468 = vmatpush1.msra.mxu0 0.0
    %469 = vmatprep.subr.mxu0 0.0
    %470 = vmatpush1.msra.mxu0 0.0
    %471 = vmatprep.subr.mxu0 0.0
    %472 = vmatpush1.msra.mxu0 0.0
    %473 = vmatprep.subr.mxu0 0.0
    %474 = vmatpush1.msra.mxu0 0.0
    %475 = vmatprep.subr.mxu0 0.0
    %476 = vmatpush1.msra.mxu0 0.0
    %477 = vmatprep.subr.mxu0 0.0
    %478 = vmatpush1.msra.mxu0 0.0
    %479 = vmatprep.subr.mxu0 0.0
    %480 = vmatpush1.msra.mxu0 0.0
    %481 = vmatprep.subr.mxu0 0.0
    %482 = vmatpush1.msra.mxu0 0.0
    %483 = vmatprep.subr.mxu0 0.0
    %484 = vmatpush1.msra.mxu0 0.0
    %485 = vmatprep.subr.mxu0 0.0
    %486 = vmatpush1.msra.mxu0 0.0
    %487 = vmatprep.subr.mxu0 0.0
    %488 = vmatpush1.msra.mxu0 0.0
    %489 = vmatprep.subr.mxu0 0.0
    %490 = vmatpush1.msra.mxu0 0.0
    %491 = vmatprep.subr.mxu0 0.0
    %492 = vmatpush1.msra.mxu0 0.0
    %493 = vmatprep.subr.mxu0 0.0
    %494 = vmatpush1.msra.mxu0 %v75
    %495 = vmatprep.subr.mxu0 0.0
    %496 = vmatpush1.msra.mxu0 %v74
    %497 = vmatprep.subr.mxu0 0.0
    %498 = vmatpush2.msra.mxu0 0.0
    %499 = vmatprep.subr.mxu0 0.0
    %500 = vmatpush2.msra.mxu0 0.0
    %501 = vmatprep.subr.mxu0 0.0
    %502 = vmatpush2.msra.mxu0 0.0
    %503 = vmatprep.subr.mxu0 0.0
    %504 = vmatpush2.msra.mxu0 0.0
    %505 = vmatprep.subr.mxu0 0.0
    %506 = vmatpush2.msra.mxu0 0.0
    %507 = vmatprep.subr.mxu0 0.0
    %508 = vmatpush2.msra.mxu0 0.0
    %509 = vmatprep.subr.mxu0 0.0
    %510 = vmatpush2.msra.mxu0 0.0
    %511 = vmatprep.subr.mxu0 0.0
    %512 = vmatpush2.msra.mxu0 0.0
    %513 = vmatprep.subr.mxu0 0.0
    %514 = vmatpush2.msra.mxu0 0.0
    %515 = vmatprep.subr.mxu0 0.0
    %516 = vmatpush2.msra.mxu0 0.0
    %517 = vmatprep.subr.mxu0 0.0
    %518 = vmatpush2.msra.mxu0 0.0
    %519 = vmatprep.subr.mxu0 0.0
    %520 = vmatpush2.msra.mxu0 0.0
    %521 = vmatprep.subr.mxu0 0.0
    %522 = vmatpush2.msra.mxu0 0.0
    %523 = vmatprep.subr.mxu0 0.0
    %524 = vmatpush2.msra.mxu0 0.0
    %525 = vmatprep.subr.mxu0 0.0
    %526 = vmatpush2.msra.mxu0 0.0
    %527 = vmatprep.subr.mxu0 0.0
    %528 = vmatpush2.msra.mxu0 0.0
    %529 = vmatprep.mubr.f32.mxu0 0.0
    %530 = vmatmul.mubr.f32.gmra.mxu0 %v463
    %v531 = vpop.f32.mrf.mxu0
    %v532 = vadd.f32 %v103, %v531
    %v533 = vpop.f32.mrf.mxu0
    %534 = vdwg.mxu0
    %v535 = vld [vmem:[%s0 + $0x5] sm:$0x1]
    %v536 = vld [vmem:[%s0 + $0xd] sm:$0x1]
    %v537 = vld [vmem:[%s0 + $0x15] sm:$0x1]
    %v538 = vld [vmem:[%s0 + $0x1d] sm:$0x1]
    %v543 = vrot.slane %v536, 7
    %v544 = vsel %vm110, %v543, %v535
    %v545 = vrot.slane %v537, 6
    %v546 = vsel %vm113, %v545, %v544
    %v547 = vrot.slane %v538, 5
    %v548 = vsel %vm116, %v547, %v546
    %v549 = vsel %vm118, %v548, 0
    %551 = vmatprep.subr.mxu0 0.0
    %552 = vmatpush1.msra.mxu0 0.0
    %553 = vmatprep.subr.mxu0 0.0
    %554 = vmatpush1.msra.mxu0 0.0
    %555 = vmatprep.subr.mxu0 0.0
    %556 = vmatpush1.msra.mxu0 0.0
    %557 = vmatprep.subr.mxu0 0.0
    %558 = vmatpush1.msra.mxu0 0.0
    %559 = vmatprep.subr.mxu0 0.0
    %560 = vmatpush1.msra.mxu0 0.0
    %561 = vmatprep.subr.mxu0 0.0
    %562 = vmatpush1.msra.mxu0 0.0
    %563 = vmatprep.subr.mxu0 0.0
    %564 = vmatpush1.msra.mxu0 0.0
    %565 = vmatprep.subr.mxu0 0.0
    %566 = vmatpush1.msra.mxu0 0.0
    %567 = vmatprep.subr.mxu0 0.0
    %568 = vmatpush1.msra.mxu0 0.0
    %569 = vmatprep.subr.mxu0 0.0
    %570 = vmatpush1.msra.mxu0 0.0
    %571 = vmatprep.subr.mxu0 0.0
    %572 = vmatpush1.msra.mxu0 0.0
    %573 = vmatprep.subr.mxu0 0.0
    %574 = vmatpush1.msra.mxu0 0.0
    %575 = vmatprep.subr.mxu0 0.0
    %576 = vmatpush1.msra.mxu0 0.0
    %577 = vmatprep.subr.mxu0 0.0
    %578 = vmatpush1.msra.mxu0 0.0
    %579 = vmatprep.subr.mxu0 0.0
    %580 = vmatpush1.msra.mxu0 %v75
    %581 = vmatprep.subr.mxu0 0.0
    %582 = vmatpush1.msra.mxu0 %v74
    %583 = vmatprep.subr.mxu0 0.0
    %584 = vmatpush2.msra.mxu0 0.0
    %585 = vmatprep.subr.mxu0 0.0
    %586 = vmatpush2.msra.mxu0 0.0
    %587 = vmatprep.subr.mxu0 0.0
    %588 = vmatpush2.msra.mxu0 0.0
    %589 = vmatprep.subr.mxu0 0.0
    %590 = vmatpush2.msra.mxu0 0.0
    %591 = vmatprep.subr.mxu0 0.0
    %592 = vmatpush2.msra.mxu0 0.0
    %593 = vmatprep.subr.mxu0 0.0
    %594 = vmatpush2.msra.mxu0 0.0
    %595 = vmatprep.subr.mxu0 0.0
    %596 = vmatpush2.msra.mxu0 0.0
    %597 = vmatprep.subr.mxu0 0.0
    %598 = vmatpush2.msra.mxu0 0.0
    %599 = vmatprep.subr.mxu0 0.0
    %600 = vmatpush2.msra.mxu0 0.0
    %601 = vmatprep.subr.mxu0 0.0
    %602 = vmatpush2.msra.mxu0 0.0
    %603 = vmatprep.subr.mxu0 0.0
    %604 = vmatpush2.msra.mxu0 0.0
    %605 = vmatprep.subr.mxu0 0.0
    %606 = vmatpush2.msra.mxu0 0.0
    %607 = vmatprep.subr.mxu0 0.0
    %608 = vmatpush2.msra.mxu0 0.0
    %609 = vmatprep.subr.mxu0 0.0
    %610 = vmatpush2.msra.mxu0 0.0
    %611 = vmatprep.subr.mxu0 0.0
    %612 = vmatpush2.msra.mxu0 0.0
    %613 = vmatprep.subr.mxu0 0.0
    %614 = vmatpush2.msra.mxu0 0.0
    %615 = vmatprep.mubr.f32.mxu0 0.0
    %616 = vmatmul.mubr.f32.gmra.mxu0 %v549
    %v617 = vpop.f32.mrf.mxu0
    %v618 = vadd.f32 %v103, %v617
    %v619 = vpop.f32.mrf.mxu0
    %620 = vdwg.mxu0
    %v621 = vld [vmem:[%s0 + $0x6] sm:$0x1]
    %v622 = vld [vmem:[%s0 + $0xe] sm:$0x1]
    %v623 = vld [vmem:[%s0 + $0x16] sm:$0x1]
    %v624 = vld [vmem:[%s0 + $0x1e] sm:$0x1]
    %v629 = vrot.slane %v622, 7
    %v630 = vsel %vm110, %v629, %v621
    %v631 = vrot.slane %v623, 6
    %v632 = vsel %vm113, %v631, %v630
    %v633 = vrot.slane %v624, 5
    %v634 = vsel %vm116, %v633, %v632
    %v635 = vsel %vm118, %v634, 0
    %637 = vmatprep.subr.mxu0 0.0
    %638 = vmatpush1.msra.mxu0 0.0
    %639 = vmatprep.subr.mxu0 0.0
    %640 = vmatpush1.msra.mxu0 0.0
    %641 = vmatprep.subr.mxu0 0.0
    %642 = vmatpush1.msra.mxu0 0.0
    %643 = vmatprep.subr.mxu0 0.0
    %644 = vmatpush1.msra.mxu0 0.0
    %645 = vmatprep.subr.mxu0 0.0
    %646 = vmatpush1.msra.mxu0 0.0
    %647 = vmatprep.subr.mxu0 0.0
    %648 = vmatpush1.msra.mxu0 0.0
    %649 = vmatprep.subr.mxu0 0.0
    %650 = vmatpush1.msra.mxu0 0.0
    %651 = vmatprep.subr.mxu0 0.0
    %652 = vmatpush1.msra.mxu0 0.0
    %653 = vmatprep.subr.mxu0 0.0
    %654 = vmatpush1.msra.mxu0 0.0
    %655 = vmatprep.subr.mxu0 0.0
    %656 = vmatpush1.msra.mxu0 0.0
    %657 = vmatprep.subr.mxu0 0.0
    %658 = vmatpush1.msra.mxu0 0.0
    %659 = vmatprep.subr.mxu0 0.0
    %660 = vmatpush1.msra.mxu0 0.0
    %661 = vmatprep.subr.mxu0 0.0
    %662 = vmatpush1.msra.mxu0 0.0
    %663 = vmatprep.subr.mxu0 0.0
    %664 = vmatpush1.msra.mxu0 0.0
    %665 = vmatprep.subr.mxu0 0.0
    %666 = vmatpush1.msra.mxu0 %v75
    %667 = vmatprep.subr.mxu0 0.0
    %668 = vmatpush1.msra.mxu0 %v74
    %669 = vmatprep.subr.mxu0 0.0
    %670 = vmatpush2.msra.mxu0 0.0
    %671 = vmatprep.subr.mxu0 0.0
    %672 = vmatpush2.msra.mxu0 0.0
    %673 = vmatprep.subr.mxu0 0.0
    %674 = vmatpush2.msra.mxu0 0.0
    %675 = vmatprep.subr.mxu0 0.0
    %676 = vmatpush2.msra.mxu0 0.0
    %677 = vmatprep.subr.mxu0 0.0
    %678 = vmatpush2.msra.mxu0 0.0
    %679 = vmatprep.subr.mxu0 0.0
    %680 = vmatpush2.msra.mxu0 0.0
    %681 = vmatprep.subr.mxu0 0.0
    %682 = vmatpush2.msra.mxu0 0.0
    %683 = vmatprep.subr.mxu0 0.0
    %684 = vmatpush2.msra.mxu0 0.0
    %685 = vmatprep.subr.mxu0 0.0
    %686 = vmatpush2.msra.mxu0 0.0
    %687 = vmatprep.subr.mxu0 0.0
    %688 = vmatpush2.msra.mxu0 0.0
    %689 = vmatprep.subr.mxu0 0.0
    %690 = vmatpush2.msra.mxu0 0.0
    %691 = vmatprep.subr.mxu0 0.0
    %692 = vmatpush2.msra.mxu0 0.0
    %693 = vmatprep.subr.mxu0 0.0
    %694 = vmatpush2.msra.mxu0 0.0
    %695 = vmatprep.subr.mxu0 0.0
    %696 = vmatpush2.msra.mxu0 0.0
    %697 = vmatprep.subr.mxu0 0.0
    %698 = vmatpush2.msra.mxu0 0.0
    %699 = vmatprep.subr.mxu0 0.0
    %700 = vmatpush2.msra.mxu0 0.0
    %701 = vmatprep.mubr.f32.mxu0 0.0
    %702 = vmatmul.mubr.f32.gmra.mxu0 %v635
    %v703 = vpop.f32.mrf.mxu0
    %v704 = vadd.f32 %v103, %v703
    %v705 = vpop.f32.mrf.mxu0
    %706 = vdwg.mxu0
    %v707 = vld [vmem:[%s0 + $0x7] sm:$0x1]
    %v708 = vld [vmem:[%s0 + $0xf] sm:$0x1]
    %v709 = vld [vmem:[%s0 + $0x17] sm:$0x1]
    %v710 = vld [vmem:[%s0 + $0x1f] sm:$0x1]
    %v715 = vrot.slane %v708, 7
    %v716 = vsel %vm110, %v715, %v707
    %v717 = vrot.slane %v709, 6
    %v718 = vsel %vm113, %v717, %v716
    %v719 = vrot.slane %v710, 5
    %v720 = vsel %vm116, %v719, %v718
    %v721 = vsel %vm118, %v720, 0
    %723 = vmatprep.subr.mxu0 0.0
    %724 = vmatpush1.msra.mxu0 0.0
    %725 = vmatprep.subr.mxu0 0.0
    %726 = vmatpush1.msra.mxu0 0.0
    %727 = vmatprep.subr.mxu0 0.0
    %728 = vmatpush1.msra.mxu0 0.0
    %729 = vmatprep.subr.mxu0 0.0
    %730 = vmatpush1.msra.mxu0 0.0
    %731 = vmatprep.subr.mxu0 0.0
    %732 = vmatpush1.msra.mxu0 0.0
    %733 = vmatprep.subr.mxu0 0.0
    %734 = vmatpush1.msra.mxu0 0.0
    %735 = vmatprep.subr.mxu0 0.0
    %736 = vmatpush1.msra.mxu0 0.0
    %737 = vmatprep.subr.mxu0 0.0
    %738 = vmatpush1.msra.mxu0 0.0
    %739 = vmatprep.subr.mxu0 0.0
    %740 = vmatpush1.msra.mxu0 0.0
    %741 = vmatprep.subr.mxu0 0.0
    %742 = vmatpush1.msra.mxu0 0.0
    %743 = vmatprep.subr.mxu0 0.0
    %744 = vmatpush1.msra.mxu0 0.0
    %745 = vmatprep.subr.mxu0 0.0
    %746 = vmatpush1.msra.mxu0 0.0
    %747 = vmatprep.subr.mxu0 0.0
    %748 = vmatpush1.msra.mxu0 0.0
    %749 = vmatprep.subr.mxu0 0.0
    %750 = vmatpush1.msra.mxu0 0.0
    %751 = vmatprep.subr.mxu0 0.0
    %752 = vmatpush1.msra.mxu0 %v75
    %753 = vmatprep.subr.mxu0 0.0
    %754 = vmatpush1.msra.mxu0 %v74
    %755 = vmatprep.subr.mxu0 0.0
    %756 = vmatpush2.msra.mxu0 0.0
    %757 = vmatprep.subr.mxu0 0.0
    %758 = vmatpush2.msra.mxu0 0.0
    %759 = vmatprep.subr.mxu0 0.0
    %760 = vmatpush2.msra.mxu0 0.0
    %761 = vmatprep.subr.mxu0 0.0
    %762 = vmatpush2.msra.mxu0 0.0
    %763 = vmatprep.subr.mxu0 0.0
    %764 = vmatpush2.msra.mxu0 0.0
    %765 = vmatprep.subr.mxu0 0.0
    %766 = vmatpush2.msra.mxu0 0.0
    %767 = vmatprep.subr.mxu0 0.0
    %768 = vmatpush2.msra.mxu0 0.0
    %769 = vmatprep.subr.mxu0 0.0
    %770 = vmatpush2.msra.mxu0 0.0
    %771 = vmatprep.subr.mxu0 0.0
    %772 = vmatpush2.msra.mxu0 0.0
    %773 = vmatprep.subr.mxu0 0.0
    %774 = vmatpush2.msra.mxu0 0.0
    %775 = vmatprep.subr.mxu0 0.0
    %776 = vmatpush2.msra.mxu0 0.0
    %777 = vmatprep.subr.mxu0 0.0
    %778 = vmatpush2.msra.mxu0 0.0
    %779 = vmatprep.subr.mxu0 0.0
    %780 = vmatpush2.msra.mxu0 0.0
    %781 = vmatprep.subr.mxu0 0.0
    %782 = vmatpush2.msra.mxu0 0.0
    %783 = vmatprep.subr.mxu0 0.0
    %784 = vmatpush2.msra.mxu0 0.0
    %785 = vmatprep.subr.mxu0 0.0
    %786 = vmatpush2.msra.mxu0 0.0
    %787 = vmatprep.mubr.f32.mxu0 0.0
    %788 = vmatmul.mubr.f32.gmra.mxu0 %v721
    %v789 = vpop.f32.mrf.mxu0
    %v790 = vadd.f32 %v103, %v789
    %v791 = vpop.f32.mrf.mxu0
    %792 = vdwg.mxu0
    %vm793 = vcmask 261120
    %v795 = vsel %vm793, 0.0, 0
    %797 = vmatprep.subr.mxu0 0.0
    %798 = vmatpush1.msra.mxu0 0.0
    %799 = vmatprep.subr.mxu0 0.0
    %800 = vmatpush1.msra.mxu0 0.0
    %801 = vmatprep.subr.mxu0 0.0
    %802 = vmatpush1.msra.mxu0 0.0
    %803 = vmatprep.subr.mxu0 0.0
    %804 = vmatpush1.msra.mxu0 0.0
    %805 = vmatprep.subr.mxu0 0.0
    %806 = vmatpush1.msra.mxu0 0.0
    %807 = vmatprep.subr.mxu0 0.0
    %808 = vmatpush1.msra.mxu0 0.0
    %809 = vmatprep.subr.mxu0 0.0
    %810 = vmatpush1.msra.mxu0 0.0
    %811 = vmatprep.subr.mxu0 0.0
    %812 = vmatpush1.msra.mxu0 0.0
    %813 = vmatprep.subr.mxu0 0.0
    %814 = vmatpush1.msra.mxu0 0.0
    %815 = vmatprep.subr.mxu0 0.0
    %816 = vmatpush1.msra.mxu0 0.0
    %817 = vmatprep.subr.mxu0 0.0
    %818 = vmatpush1.msra.mxu0 0.0
    %819 = vmatprep.subr.mxu0 0.0
    %820 = vmatpush1.msra.mxu0 0.0
    %821 = vmatprep.subr.mxu0 0.0
    %822 = vmatpush1.msra.mxu0 %v83
    %823 = vmatprep.subr.mxu0 0.0
    %824 = vmatpush1.msra.mxu0 %v82
    %825 = vmatprep.subr.mxu0 0.0
    %826 = vmatpush1.msra.mxu0 %v81
    %827 = vmatprep.subr.mxu0 0.0
    %828 = vmatpush1.msra.mxu0 %v80
    %829 = vmatprep.subr.mxu0 0.0
    %830 = vmatpush2.msra.mxu0 0.0
    %831 = vmatprep.subr.mxu0 0.0
    %832 = vmatpush2.msra.mxu0 0.0
    %833 = vmatprep.subr.mxu0 0.0
    %834 = vmatpush2.msra.mxu0 0.0
    %835 = vmatprep.subr.mxu0 0.0
    %836 = vmatpush2.msra.mxu0 0.0
    %837 = vmatprep.subr.mxu0 0.0
    %838 = vmatpush2.msra.mxu0 0.0
    %839 = vmatprep.subr.mxu0 0.0
    %840 = vmatpush2.msra.mxu0 0.0
    %841 = vmatprep.subr.mxu0 0.0
    %842 = vmatpush2.msra.mxu0 0.0
    %843 = vmatprep.subr.mxu0 0.0
    %844 = vmatpush2.msra.mxu0 0.0
    %845 = vmatprep.subr.mxu0 0.0
    %846 = vmatpush2.msra.mxu0 0.0
    %847 = vmatprep.subr.mxu0 0.0
    %848 = vmatpush2.msra.mxu0 0.0
    %849 = vmatprep.subr.mxu0 0.0
    %850 = vmatpush2.msra.mxu0 0.0
    %851 = vmatprep.subr.mxu0 0.0
    %852 = vmatpush2.msra.mxu0 0.0
    %853 = vmatprep.subr.mxu0 0.0
    %854 = vmatpush2.msra.mxu0 0.0
    %855 = vmatprep.subr.mxu0 0.0
    %856 = vmatpush2.msra.mxu0 0.0
    %857 = vmatprep.subr.mxu0 0.0
    %858 = vmatpush2.msra.mxu0 0.0
    %859 = vmatprep.subr.mxu0 0.0
    %860 = vmatpush2.msra.mxu0 0.0
    %861 = vmatprep.mubr.f32.mxu0 0.0
    %862 = vmatmul.mubr.f32.gmra.mxu0 %v795
    %v863 = vpop.f32.mrf.mxu0
    %v864 = vadd.f32 0.0, %v863
    %v865 = vpop.f32.mrf.mxu0
    %866 = vdwg.mxu0
    %v867 = vadd.f32 %v188, %v864
    %v868 = vxor.u32 %v867, 2147483648
    %v869 = vmul.f32 %v868, 1.442695
    %v870 = vpow.pop %v869
    %v871 = vadd.f32 %v870, 1.0
    %v872 = vrcp.pop %v871
    %v873 = vmul.f32 1.0, %v872
    %v874 = vmul.f32 %v873, 2.0
    %v875 = vsub.f32 %v874, 1.0
    %v876 = vmul.f32 %v873, 0.0
    %878 = vrot.lane.b32.xlu0 %v875, 64
    %v879 = vpop.permute.xlu0 %878
    %v881 = vmul.f32 %v873, %v879
    %883 = vrot.lane.b32.xlu0 %v881, 32
    %v884 = vpop.permute.xlu0 %883
    %v886 = vadd.f32 %v876, %v884
    %v887 = vtanh.pop %v886
    %889 = vrot.lane.b32.xlu0 %v887, 64
    %v890 = vpop.permute.xlu0 %889
    %v892 = vmul.f32 %v873, %v890
    %893 = vmatprep.subr.mxu0 0.0
    %894 = vmatpush1.msra.mxu0 0.0
    %895 = vmatprep.subr.mxu0 0.0
    %896 = vmatpush1.msra.mxu0 0.0
    %897 = vmatprep.subr.mxu0 0.0
    %898 = vmatpush1.msra.mxu0 0.0
    %899 = vmatprep.subr.mxu0 0.0
    %900 = vmatpush1.msra.mxu0 0.0
    %901 = vmatprep.subr.mxu0 0.0
    %902 = vmatpush1.msra.mxu0 0.0
    %903 = vmatprep.subr.mxu0 0.0
    %904 = vmatpush1.msra.mxu0 0.0
    %905 = vmatprep.subr.mxu0 0.0
    %906 = vmatpush1.msra.mxu0 0.0
    %907 = vmatprep.subr.mxu0 0.0
    %908 = vmatpush1.msra.mxu0 0.0
    %909 = vmatprep.subr.mxu0 0.0
    %910 = vmatpush1.msra.mxu0 0.0
    %911 = vmatprep.subr.mxu0 0.0
    %912 = vmatpush1.msra.mxu0 0.0
    %913 = vmatprep.subr.mxu0 0.0
    %914 = vmatpush1.msra.mxu0 0.0
    %915 = vmatprep.subr.mxu0 0.0
    %916 = vmatpush1.msra.mxu0 0.0
    %917 = vmatprep.subr.mxu0 0.0
    %918 = vmatpush1.msra.mxu0 %v87
    %919 = vmatprep.subr.mxu0 0.0
    %920 = vmatpush1.msra.mxu0 %v86
    %921 = vmatprep.subr.mxu0 0.0
    %922 = vmatpush1.msra.mxu0 %v85
    %923 = vmatprep.subr.mxu0 0.0
    %924 = vmatpush1.msra.mxu0 %v84
    %925 = vmatprep.subr.mxu0 0.0
    %926 = vmatpush2.msra.mxu0 0.0
    %927 = vmatprep.subr.mxu0 0.0
    %928 = vmatpush2.msra.mxu0 0.0
    %929 = vmatprep.subr.mxu0 0.0
    %930 = vmatpush2.msra.mxu0 0.0
    %931 = vmatprep.subr.mxu0 0.0
    %932 = vmatpush2.msra.mxu0 0.0
    %933 = vmatprep.subr.mxu0 0.0
    %934 = vmatpush2.msra.mxu0 0.0
    %935 = vmatprep.subr.mxu0 0.0
    %936 = vmatpush2.msra.mxu0 0.0
    %937 = vmatprep.subr.mxu0 0.0
    %938 = vmatpush2.msra.mxu0 0.0
    %939 = vmatprep.subr.mxu0 0.0
    %940 = vmatpush2.msra.mxu0 0.0
    %941 = vmatprep.subr.mxu0 0.0
    %942 = vmatpush2.msra.mxu0 0.0
    %943 = vmatprep.subr.mxu0 0.0
    %944 = vmatpush2.msra.mxu0 0.0
    %945 = vmatprep.subr.mxu0 0.0
    %946 = vmatpush2.msra.mxu0 0.0
    %947 = vmatprep.subr.mxu0 0.0
    %948 = vmatpush2.msra.mxu0 0.0
    %949 = vmatprep.subr.mxu0 0.0
    %950 = vmatpush2.msra.mxu0 0.0
    %951 = vmatprep.subr.mxu0 0.0
    %952 = vmatpush2.msra.mxu0 0.0
    %953 = vmatprep.subr.mxu0 0.0
    %954 = vmatpush2.msra.mxu0 0.0
    %955 = vmatprep.subr.mxu0 0.0
    %956 = vmatpush2.msra.mxu0 0.0
    %957 = vmatprep.mubr.f32.mxu0 0.0
    %958 = vmatmul.mubr.f32.gmra.mxu0 %v795
    %v959 = vpop.f32.mrf.mxu0
    %v960 = vadd.f32 0.0, %v959
    %v961 = vpop.f32.mrf.mxu0
    %962 = vdwg.mxu0
    %964 = vrot.lane.b32.xlu0 %v892, 32
    %v965 = vpop.permute.xlu0 %964
    %v966 = vsel %vm793, %v965, 0
    %968 = vmatprep.subr.mxu0 0.0
    %969 = vmatpush1.msra.mxu0 0.0
    %970 = vmatprep.subr.mxu0 0.0
    %971 = vmatpush1.msra.mxu0 0.0
    %972 = vmatprep.subr.mxu0 0.0
    %973 = vmatpush1.msra.mxu0 0.0
    %974 = vmatprep.subr.mxu0 0.0
    %975 = vmatpush1.msra.mxu0 0.0
    %976 = vmatprep.subr.mxu0 0.0
    %977 = vmatpush1.msra.mxu0 0.0
    %978 = vmatprep.subr.mxu0 0.0
    %979 = vmatpush1.msra.mxu0 0.0
    %980 = vmatprep.subr.mxu0 0.0
    %981 = vmatpush1.msra.mxu0 0.0
    %982 = vmatprep.subr.mxu0 0.0
    %983 = vmatpush1.msra.mxu0 0.0
    %984 = vmatprep.subr.mxu0 0.0
    %985 = vmatpush1.msra.mxu0 0.0
    %986 = vmatprep.subr.mxu0 0.0
    %987 = vmatpush1.msra.mxu0 0.0
    %988 = vmatprep.subr.mxu0 0.0
    %989 = vmatpush1.msra.mxu0 0.0
    %990 = vmatprep.subr.mxu0 0.0
    %991 = vmatpush1.msra.mxu0 0.0
    %992 = vmatprep.subr.mxu0 0.0
    %993 = vmatpush1.msra.mxu0 %v79
    %994 = vmatprep.subr.mxu0 0.0
    %995 = vmatpush1.msra.mxu0 %v78
    %996 = vmatprep.subr.mxu0 0.0
    %997 = vmatpush1.msra.mxu0 %v77
    %998 = vmatprep.subr.mxu0 0.0
    %999 = vmatpush1.msra.mxu0 %v76
    %1000 = vmatprep.subr.mxu0 0.0
    %1001 = vmatpush2.msra.mxu0 0.0
    %1002 = vmatprep.subr.mxu0 0.0
    %1003 = vmatpush2.msra.mxu0 0.0
    %1004 = vmatprep.subr.mxu0 0.0
    %1005 = vmatpush2.msra.mxu0 0.0
    %1006 = vmatprep.subr.mxu0 0.0
    %1007 = vmatpush2.msra.mxu0 0.0
    %1008 = vmatprep.subr.mxu0 0.0
    %1009 = vmatpush2.msra.mxu0 0.0
    %1010 = vmatprep.subr.mxu0 0.0
    %1011 = vmatpush2.msra.mxu0 0.0
    %1012 = vmatprep.subr.mxu0 0.0
    %1013 = vmatpush2.msra.mxu0 0.0
    %1014 = vmatprep.subr.mxu0 0.0
    %1015 = vmatpush2.msra.mxu0 0.0
    %1016 = vmatprep.subr.mxu0 0.0
    %1017 = vmatpush2.msra.mxu0 0.0
    %1018 = vmatprep.subr.mxu0 0.0
    %1019 = vmatpush2.msra.mxu0 0.0
    %1020 = vmatprep.subr.mxu0 0.0
    %1021 = vmatpush2.msra.mxu0 0.0
    %1022 = vmatprep.subr.mxu0 0.0
    %1023 = vmatpush2.msra.mxu0 0.0
    %1024 = vmatprep.subr.mxu0 0.0
    %1025 = vmatpush2.msra.mxu0 0.0
    %1026 = vmatprep.subr.mxu0 0.0
    %1027 = vmatpush2.msra.mxu0 0.0
    %1028 = vmatprep.subr.mxu0 0.0
    %1029 = vmatpush2.msra.mxu0 0.0
    %1030 = vmatprep.subr.mxu0 0.0
    %1031 = vmatpush2.msra.mxu0 0.0
    %1032 = vmatprep.mubr.f32.mxu0 0.0
    %1033 = vmatmul.mubr.f32.gmra.mxu0 %v966
    %v1034 = vpop.f32.mrf.mxu0
    %v1035 = vadd.f32 %v960, %v1034
    %v1036 = vpop.f32.mrf.mxu0
    %1037 = vdwg.mxu0
    %v1039 = vlaneseq
    %v1040 = vshrl.u32 %v1039, 7
    %v1041 = vsub.s32 0, %v1040
    %v1042 = vrot.slane %v89, %v1041
    %v1044 = vadd.f32 %v1035, %v1042
    %v1045 = vxor.u32 %v1044, 2147483648
    %v1046 = vmul.f32 %v1045, 1.442695
    %v1047 = vpow.pop %v1046
    %v1048 = vadd.f32 %v1047, 1.0
    %v1049 = vrcp.pop %v1048
    %v1050 = vmul.f32 1.0, %v1049
    %v1051 = vmul.f32 %v1050, 2.0
    %v1052 = vsub.f32 %v1051, 1.0
    %v1053 = vmul.f32 %v1050, 0.0
    %1055 = vrot.lane.b32.xlu0 %v1052, 64
    %v1056 = vpop.permute.xlu0 %1055
    %v1058 = vmul.f32 %v1050, %v1056
    %1060 = vrot.lane.b32.xlu0 %v1058, 32
    %v1061 = vpop.permute.xlu0 %1060
    %v1063 = vadd.f32 %v1053, %v1061
    %v1064 = vtanh.pop %v1063
    %1066 = vrot.lane.b32.xlu0 %v1064, 64
    %v1067 = vpop.permute.xlu0 %1066
    %v1069 = vmul.f32 %v1050, %v1067
    %1070 = vmatprep.subr.mxu0 0.0
    %1071 = vmatpush1.msra.mxu0 0.0
    %1072 = vmatprep.subr.mxu0 0.0
    %1073 = vmatpush1.msra.mxu0 0.0
    %1074 = vmatprep.subr.mxu0 0.0
    %1075 = vmatpush1.msra.mxu0 0.0
    %1076 = vmatprep.subr.mxu0 0.0
    %1077 = vmatpush1.msra.mxu0 0.0
    %1078 = vmatprep.subr.mxu0 0.0
    %1079 = vmatpush1.msra.mxu0 0.0
    %1080 = vmatprep.subr.mxu0 0.0
    %1081 = vmatpush1.msra.mxu0 0.0
    %1082 = vmatprep.subr.mxu0 0.0
    %1083 = vmatpush1.msra.mxu0 0.0
    %1084 = vmatprep.subr.mxu0 0.0
    %1085 = vmatpush1.msra.mxu0 0.0
    %1086 = vmatprep.subr.mxu0 0.0
    %1087 = vmatpush1.msra.mxu0 0.0
    %1088 = vmatprep.subr.mxu0 0.0
    %1089 = vmatpush1.msra.mxu0 0.0
    %1090 = vmatprep.subr.mxu0 0.0
    %1091 = vmatpush1.msra.mxu0 0.0
    %1092 = vmatprep.subr.mxu0 0.0
    %1093 = vmatpush1.msra.mxu0 0.0
    %1094 = vmatprep.subr.mxu0 0.0
    %1095 = vmatpush1.msra.mxu0 %v83
    %1096 = vmatprep.subr.mxu0 0.0
    %1097 = vmatpush1.msra.mxu0 %v82
    %1098 = vmatprep.subr.mxu0 0.0
    %1099 = vmatpush1.msra.mxu0 %v81
    %1100 = vmatprep.subr.mxu0 0.0
    %1101 = vmatpush1.msra.mxu0 %v80
    %1102 = vmatprep.subr.mxu0 0.0
    %1103 = vmatpush2.msra.mxu0 0.0
    %1104 = vmatprep.subr.mxu0 0.0
    %1105 = vmatpush2.msra.mxu0 0.0
    %1106 = vmatprep.subr.mxu0 0.0
    %1107 = vmatpush2.msra.mxu0 0.0
    %1108 = vmatprep.subr.mxu0 0.0
    %1109 = vmatpush2.msra.mxu0 0.0
    %1110 = vmatprep.subr.mxu0 0.0
    %1111 = vmatpush2.msra.mxu0 0.0
    %1112 = vmatprep.subr.mxu0 0.0
    %1113 = vmatpush2.msra.mxu0 0.0
    %1114 = vmatprep.subr.mxu0 0.0
    %1115 = vmatpush2.msra.mxu0 0.0
    %1116 = vmatprep.subr.mxu0 0.0
    %1117 = vmatpush2.msra.mxu0 0.0
    %1118 = vmatprep.subr.mxu0 0.0
    %1119 = vmatpush2.msra.mxu0 0.0
    %1120 = vmatprep.subr.mxu0 0.0
    %1121 = vmatpush2.msra.mxu0 0.0
    %1122 = vmatprep.subr.mxu0 0.0
    %1123 = vmatpush2.msra.mxu0 0.0
    %1124 = vmatprep.subr.mxu0 0.0
    %1125 = vmatpush2.msra.mxu0 0.0
    %1126 = vmatprep.subr.mxu0 0.0
    %1127 = vmatpush2.msra.mxu0 0.0
    %1128 = vmatprep.subr.mxu0 0.0
    %1129 = vmatpush2.msra.mxu0 0.0
    %1130 = vmatprep.subr.mxu0 0.0
    %1131 = vmatpush2.msra.mxu0 0.0
    %1132 = vmatprep.subr.mxu0 0.0
    %1133 = vmatpush2.msra.mxu0 0.0
    %1134 = vmatprep.mubr.f32.mxu0 0.0
    %1135 = vmatmul.mubr.f32.gmra.mxu0 %v966
    %v1136 = vpop.f32.mrf.mxu0
    %v1137 = vadd.f32 0.0, %v1136
    %v1138 = vpop.f32.mrf.mxu0
    %1139 = vdwg.mxu0
    %v1140 = vadd.f32 %v274, %v1137
    %v1141 = vxor.u32 %v1140, 2147483648
    %v1142 = vmul.f32 %v1141, 1.442695
    %v1143 = vpow.pop %v1142
    %v1144 = vadd.f32 %v1143, 1.0
    %v1145 = vrcp.pop %v1144
    %v1146 = vmul.f32 1.0, %v1145
    %v1147 = vmul.f32 %v1146, 2.0
    %v1148 = vsub.f32 %v1147, 1.0
    %v1149 = vmul.f32 %v1146, %v886
    %1151 = vrot.lane.b32.xlu0 %v1148, 64
    %v1152 = vpop.permute.xlu0 %1151
    %v1154 = vmul.f32 %v1146, %v1152
    %1156 = vrot.lane.b32.xlu0 %v1154, 32
    %v1157 = vpop.permute.xlu0 %1156
    %v1159 = vadd.f32 %v1149, %v1157
    %v1160 = vtanh.pop %v1159
    %1162 = vrot.lane.b32.xlu0 %v1160, 64
    %v1163 = vpop.permute.xlu0 %1162
    %v1165 = vmul.f32 %v1146, %v1163
    %1167 = vrot.lane.b32.xlu0 %v1069, 32
    %v1168 = vpop.permute.xlu0 %1167
    %v1169 = vsel %vm793, %v1168, 0
    %1171 = vmatprep.subr.mxu0 0.0
    %1172 = vmatpush1.msra.mxu0 0.0
    %1173 = vmatprep.subr.mxu0 0.0
    %1174 = vmatpush1.msra.mxu0 0.0
    %1175 = vmatprep.subr.mxu0 0.0
    %1176 = vmatpush1.msra.mxu0 0.0
    %1177 = vmatprep.subr.mxu0 0.0
    %1178 = vmatpush1.msra.mxu0 0.0
    %1179 = vmatprep.subr.mxu0 0.0
    %1180 = vmatpush1.msra.mxu0 0.0
    %1181 = vmatprep.subr.mxu0 0.0
    %1182 = vmatpush1.msra.mxu0 0.0
    %1183 = vmatprep.subr.mxu0 0.0
    %1184 = vmatpush1.msra.mxu0 0.0
    %1185 = vmatprep.subr.mxu0 0.0
    %1186 = vmatpush1.msra.mxu0 0.0
    %1187 = vmatprep.subr.mxu0 0.0
    %1188 = vmatpush1.msra.mxu0 0.0
    %1189 = vmatprep.subr.mxu0 0.0
    %1190 = vmatpush1.msra.mxu0 0.0
    %1191 = vmatprep.subr.mxu0 0.0
    %1192 = vmatpush1.msra.mxu0 0.0
    %1193 = vmatprep.subr.mxu0 0.0
    %1194 = vmatpush1.msra.mxu0 0.0
    %1195 = vmatprep.subr.mxu0 0.0
    %1196 = vmatpush1.msra.mxu0 %v87
    %1197 = vmatprep.subr.mxu0 0.0
    %1198 = vmatpush1.msra.mxu0 %v86
    %1199 = vmatprep.subr.mxu0 0.0
    %1200 = vmatpush1.msra.mxu0 %v85
    %1201 = vmatprep.subr.mxu0 0.0
    %1202 = vmatpush1.msra.mxu0 %v84
    %1203 = vmatprep.subr.mxu0 0.0
    %1204 = vmatpush2.msra.mxu0 0.0
    %1205 = vmatprep.subr.mxu0 0.0
    %1206 = vmatpush2.msra.mxu0 0.0
    %1207 = vmatprep.subr.mxu0 0.0
    %1208 = vmatpush2.msra.mxu0 0.0
    %1209 = vmatprep.subr.mxu0 0.0
    %1210 = vmatpush2.msra.mxu0 0.0
    %1211 = vmatprep.subr.mxu0 0.0
    %1212 = vmatpush2.msra.mxu0 0.0
    %1213 = vmatprep.subr.mxu0 0.0
    %1214 = vmatpush2.msra.mxu0 0.0
    %1215 = vmatprep.subr.mxu0 0.0
    %1216 = vmatpush2.msra.mxu0 0.0
    %1217 = vmatprep.subr.mxu0 0.0
    %1218 = vmatpush2.msra.mxu0 0.0
    %1219 = vmatprep.subr.mxu0 0.0
    %1220 = vmatpush2.msra.mxu0 0.0
    %1221 = vmatprep.subr.mxu0 0.0
    %1222 = vmatpush2.msra.mxu0 0.0
    %1223 = vmatprep.subr.mxu0 0.0
    %1224 = vmatpush2.msra.mxu0 0.0
    %1225 = vmatprep.subr.mxu0 0.0
    %1226 = vmatpush2.msra.mxu0 0.0
    %1227 = vmatprep.subr.mxu0 0.0
    %1228 = vmatpush2.msra.mxu0 0.0
    %1229 = vmatprep.subr.mxu0 0.0
    %1230 = vmatpush2.msra.mxu0 0.0
    %1231 = vmatprep.subr.mxu0 0.0
    %1232 = vmatpush2.msra.mxu0 0.0
    %1233 = vmatprep.subr.mxu0 0.0
    %1234 = vmatpush2.msra.mxu0 0.0
    %1235 = vmatprep.mubr.f32.mxu0 0.0
    %1236 = vmatmul.mubr.f32.gmra.mxu0 %v1169
    %v1237 = vpop.f32.mrf.mxu0
    %v1238 = vadd.f32 0.0, %v1237
    %v1239 = vpop.f32.mrf.mxu0
    %1240 = vdwg.mxu0
    %1242 = vrot.lane.b32.xlu0 %v1165, 32
    %v1243 = vpop.permute.xlu0 %1242
    %v1244 = vsel %vm793, %v1243, 0
    %1246 = vmatprep.subr.mxu0 0.0
    %1247 = vmatpush1.msra.mxu0 0.0
    %1248 = vmatprep.subr.mxu0 0.0
    %1249 = vmatpush1.msra.mxu0 0.0
    %1250 = vmatprep.subr.mxu0 0.0
    %1251 = vmatpush1.msra.mxu0 0.0
    %1252 = vmatprep.subr.mxu0 0.0
    %1253 = vmatpush1.msra.mxu0 0.0
    %1254 = vmatprep.subr.mxu0 0.0
    %1255 = vmatpush1.msra.mxu0 0.0
    %1256 = vmatprep.subr.mxu0 0.0
    %1257 = vmatpush1.msra.mxu0 0.0
    %1258 = vmatprep.subr.mxu0 0.0
    %1259 = vmatpush1.msra.mxu0 0.0
    %1260 = vmatprep.subr.mxu0 0.0
    %1261 = vmatpush1.msra.mxu0 0.0
    %1262 = vmatprep.subr.mxu0 0.0
    %1263 = vmatpush1.msra.mxu0 0.0
    %1264 = vmatprep.subr.mxu0 0.0
    %1265 = vmatpush1.msra.mxu0 0.0
    %1266 = vmatprep.subr.mxu0 0.0
    %1267 = vmatpush1.msra.mxu0 0.0
    %1268 = vmatprep.subr.mxu0 0.0
    %1269 = vmatpush1.msra.mxu0 0.0
    %1270 = vmatprep.subr.mxu0 0.0
    %1271 = vmatpush1.msra.mxu0 %v79
    %1272 = vmatprep.subr.mxu0 0.0
    %1273 = vmatpush1.msra.mxu0 %v78
    %1274 = vmatprep.subr.mxu0 0.0
    %1275 = vmatpush1.msra.mxu0 %v77
    %1276 = vmatprep.subr.mxu0 0.0
    %1277 = vmatpush1.msra.mxu0 %v76
    %1278 = vmatprep.subr.mxu0 0.0
    %1279 = vmatpush2.msra.mxu0 0.0
    %1280 = vmatprep.subr.mxu0 0.0
    %1281 = vmatpush2.msra.mxu0 0.0
    %1282 = vmatprep.subr.mxu0 0.0
    %1283 = vmatpush2.msra.mxu0 0.0
    %1284 = vmatprep.subr.mxu0 0.0
    %1285 = vmatpush2.msra.mxu0 0.0
    %1286 = vmatprep.subr.mxu0 0.0
    %1287 = vmatpush2.msra.mxu0 0.0
    %1288 = vmatprep.subr.mxu0 0.0
    %1289 = vmatpush2.msra.mxu0 0.0
    %1290 = vmatprep.subr.mxu0 0.0
    %1291 = vmatpush2.msra.mxu0 0.0
    %1292 = vmatprep.subr.mxu0 0.0
    %1293 = vmatpush2.msra.mxu0 0.0
    %1294 = vmatprep.subr.mxu0 0.0
    %1295 = vmatpush2.msra.mxu0 0.0
    %1296 = vmatprep.subr.mxu0 0.0
    %1297 = vmatpush2.msra.mxu0 0.0
    %1298 = vmatprep.subr.mxu0 0.0
    %1299 = vmatpush2.msra.mxu0 0.0
    %1300 = vmatprep.subr.mxu0 0.0
    %1301 = vmatpush2.msra.mxu0 0.0
    %1302 = vmatprep.subr.mxu0 0.0
    %1303 = vmatpush2.msra.mxu0 0.0
    %1304 = vmatprep.subr.mxu0 0.0
    %1305 = vmatpush2.msra.mxu0 0.0
    %1306 = vmatprep.subr.mxu0 0.0
    %1307 = vmatpush2.msra.mxu0 0.0
    %1308 = vmatprep.subr.mxu0 0.0
    %1309 = vmatpush2.msra.mxu0 0.0
    %1310 = vmatprep.mubr.f32.mxu0 0.0
    %1311 = vmatmul.mubr.f32.gmra.mxu0 %v1244
    %v1312 = vpop.f32.mrf.mxu0
    %v1313 = vadd.f32 %v1238, %v1312
    %v1314 = vpop.f32.mrf.mxu0
    %1315 = vdwg.mxu0
    %v1316 = vadd.f32 %v1313, %v1042
    %v1317 = vxor.u32 %v1316, 2147483648
    %v1318 = vmul.f32 %v1317, 1.442695
    %v1319 = vpow.pop %v1318
    %v1320 = vadd.f32 %v1319, 1.0
    %v1321 = vrcp.pop %v1320
    %v1322 = vmul.f32 1.0, %v1321
    %v1323 = vmul.f32 %v1322, 2.0
    %v1324 = vsub.f32 %v1323, 1.0
    %v1325 = vmul.f32 %v1322, %v1063
    %1327 = vrot.lane.b32.xlu0 %v1324, 64
    %v1328 = vpop.permute.xlu0 %1327
    %v1330 = vmul.f32 %v1322, %v1328
    %1332 = vrot.lane.b32.xlu0 %v1330, 32
    %v1333 = vpop.permute.xlu0 %1332
    %v1335 = vadd.f32 %v1325, %v1333
    %v1336 = vtanh.pop %v1335
    %1338 = vrot.lane.b32.xlu0 %v1336, 64
    %v1339 = vpop.permute.xlu0 %1338
    %v1341 = vmul.f32 %v1322, %v1339
    %1342 = vmatprep.subr.mxu0 0.0
    %1343 = vmatpush1.msra.mxu0 0.0
    %1344 = vmatprep.subr.mxu0 0.0
    %1345 = vmatpush1.msra.mxu0 0.0
    %1346 = vmatprep.subr.mxu0 0.0
    %1347 = vmatpush1.msra.mxu0 0.0
    %1348 = vmatprep.subr.mxu0 0.0
    %1349 = vmatpush1.msra.mxu0 0.0
    %1350 = vmatprep.subr.mxu0 0.0
    %1351 = vmatpush1.msra.mxu0 0.0
    %1352 = vmatprep.subr.mxu0 0.0
    %1353 = vmatpush1.msra.mxu0 0.0
    %1354 = vmatprep.subr.mxu0 0.0
    %1355 = vmatpush1.msra.mxu0 0.0
    %1356 = vmatprep.subr.mxu0 0.0
    %1357 = vmatpush1.msra.mxu0 0.0
    %1358 = vmatprep.subr.mxu0 0.0
    %1359 = vmatpush1.msra.mxu0 0.0
    %1360 = vmatprep.subr.mxu0 0.0
    %1361 = vmatpush1.msra.mxu0 0.0
    %1362 = vmatprep.subr.mxu0 0.0
    %1363 = vmatpush1.msra.mxu0 0.0
    %1364 = vmatprep.subr.mxu0 0.0
    %1365 = vmatpush1.msra.mxu0 0.0
    %1366 = vmatprep.subr.mxu0 0.0
    %1367 = vmatpush1.msra.mxu0 %v83
    %1368 = vmatprep.subr.mxu0 0.0
    %1369 = vmatpush1.msra.mxu0 %v82
    %1370 = vmatprep.subr.mxu0 0.0
    %1371 = vmatpush1.msra.mxu0 %v81
    %1372 = vmatprep.subr.mxu0 0.0
    %1373 = vmatpush1.msra.mxu0 %v80
    %1374 = vmatprep.subr.mxu0 0.0
    %1375 = vmatpush2.msra.mxu0 0.0
    %1376 = vmatprep.subr.mxu0 0.0
    %1377 = vmatpush2.msra.mxu0 0.0
    %1378 = vmatprep.subr.mxu0 0.0
    %1379 = vmatpush2.msra.mxu0 0.0
    %1380 = vmatprep.subr.mxu0 0.0
    %1381 = vmatpush2.msra.mxu0 0.0
    %1382 = vmatprep.subr.mxu0 0.0
    %1383 = vmatpush2.msra.mxu0 0.0
    %1384 = vmatprep.subr.mxu0 0.0
    %1385 = vmatpush2.msra.mxu0 0.0
    %1386 = vmatprep.subr.mxu0 0.0
    %1387 = vmatpush2.msra.mxu0 0.0
    %1388 = vmatprep.subr.mxu0 0.0
    %1389 = vmatpush2.msra.mxu0 0.0
    %1390 = vmatprep.subr.mxu0 0.0
    %1391 = vmatpush2.msra.mxu0 0.0
    %1392 = vmatprep.subr.mxu0 0.0
    %1393 = vmatpush2.msra.mxu0 0.0
    %1394 = vmatprep.subr.mxu0 0.0
    %1395 = vmatpush2.msra.mxu0 0.0
    %1396 = vmatprep.subr.mxu0 0.0
    %1397 = vmatpush2.msra.mxu0 0.0
    %1398 = vmatprep.subr.mxu0 0.0
    %1399 = vmatpush2.msra.mxu0 0.0
    %1400 = vmatprep.subr.mxu0 0.0
    %1401 = vmatpush2.msra.mxu0 0.0
    %1402 = vmatprep.subr.mxu0 0.0
    %1403 = vmatpush2.msra.mxu0 0.0
    %1404 = vmatprep.subr.mxu0 0.0
    %1405 = vmatpush2.msra.mxu0 0.0
    %1406 = vmatprep.mubr.f32.mxu0 0.0
    %1407 = vmatmul.mubr.f32.gmra.mxu0 %v1244
    %v1408 = vpop.f32.mrf.mxu0
    %v1409 = vadd.f32 0.0, %v1408
    %v1410 = vpop.f32.mrf.mxu0
    %1411 = vdwg.mxu0
    %v1412 = vadd.f32 %v360, %v1409
    %v1413 = vxor.u32 %v1412, 2147483648
    %v1414 = vmul.f32 %v1413, 1.442695
    %v1415 = vpow.pop %v1414
    %v1416 = vadd.f32 %v1415, 1.0
    %v1417 = vrcp.pop %v1416
    %v1418 = vmul.f32 1.0, %v1417
    %v1419 = vmul.f32 %v1418, 2.0
    %v1420 = vsub.f32 %v1419, 1.0
    %v1421 = vmul.f32 %v1418, %v1159
    %1423 = vrot.lane.b32.xlu0 %v1420, 64
    %v1424 = vpop.permute.xlu0 %1423
    %v1426 = vmul.f32 %v1418, %v1424
    %1428 = vrot.lane.b32.xlu0 %v1426, 32
    %v1429 = vpop.permute.xlu0 %1428
    %v1431 = vadd.f32 %v1421, %v1429
    %v1432 = vtanh.pop %v1431
    %1434 = vrot.lane.b32.xlu0 %v1432, 64
    %v1435 = vpop.permute.xlu0 %1434
    %v1437 = vmul.f32 %v1418, %v1435
    %1439 = vrot.lane.b32.xlu0 %v1341, 32
    %v1440 = vpop.permute.xlu0 %1439
    %v1441 = vsel %vm793, %v1440, 0
    %1443 = vmatprep.subr.mxu0 0.0
    %1444 = vmatpush1.msra.mxu0 0.0
    %1445 = vmatprep.subr.mxu0 0.0
    %1446 = vmatpush1.msra.mxu0 0.0
    %1447 = vmatprep.subr.mxu0 0.0
    %1448 = vmatpush1.msra.mxu0 0.0
    %1449 = vmatprep.subr.mxu0 0.0
    %1450 = vmatpush1.msra.mxu0 0.0
    %1451 = vmatprep.subr.mxu0 0.0
    %1452 = vmatpush1.msra.mxu0 0.0
    %1453 = vmatprep.subr.mxu0 0.0
    %1454 = vmatpush1.msra.mxu0 0.0
    %1455 = vmatprep.subr.mxu0 0.0
    %1456 = vmatpush1.msra.mxu0 0.0
    %1457 = vmatprep.subr.mxu0 0.0
    %1458 = vmatpush1.msra.mxu0 0.0
    %1459 = vmatprep.subr.mxu0 0.0
    %1460 = vmatpush1.msra.mxu0 0.0
    %1461 = vmatprep.subr.mxu0 0.0
    %1462 = vmatpush1.msra.mxu0 0.0
    %1463 = vmatprep.subr.mxu0 0.0
    %1464 = vmatpush1.msra.mxu0 0.0
    %1465 = vmatprep.subr.mxu0 0.0
    %1466 = vmatpush1.msra.mxu0 0.0
    %1467 = vmatprep.subr.mxu0 0.0
    %1468 = vmatpush1.msra.mxu0 %v87
    %1469 = vmatprep.subr.mxu0 0.0
    %1470 = vmatpush1.msra.mxu0 %v86
    %1471 = vmatprep.subr.mxu0 0.0
    %1472 = vmatpush1.msra.mxu0 %v85
    %1473 = vmatprep.subr.mxu0 0.0
    %1474 = vmatpush1.msra.mxu0 %v84
    %1475 = vmatprep.subr.mxu0 0.0
    %1476 = vmatpush2.msra.mxu0 0.0
    %1477 = vmatprep.subr.mxu0 0.0
    %1478 = vmatpush2.msra.mxu0 0.0
    %1479 = vmatprep.subr.mxu0 0.0
    %1480 = vmatpush2.msra.mxu0 0.0
    %1481 = vmatprep.subr.mxu0 0.0
    %1482 = vmatpush2.msra.mxu0 0.0
    %1483 = vmatprep.subr.mxu0 0.0
    %1484 = vmatpush2.msra.mxu0 0.0
    %1485 = vmatprep.subr.mxu0 0.0
    %1486 = vmatpush2.msra.mxu0 0.0
    %1487 = vmatprep.subr.mxu0 0.0
    %1488 = vmatpush2.msra.mxu0 0.0
    %1489 = vmatprep.subr.mxu0 0.0
    %1490 = vmatpush2.msra.mxu0 0.0
    %1491 = vmatprep.subr.mxu0 0.0
    %1492 = vmatpush2.msra.mxu0 0.0
    %1493 = vmatprep.subr.mxu0 0.0
    %1494 = vmatpush2.msra.mxu0 0.0
    %1495 = vmatprep.subr.mxu0 0.0
    %1496 = vmatpush2.msra.mxu0 0.0
    %1497 = vmatprep.subr.mxu0 0.0
    %1498 = vmatpush2.msra.mxu0 0.0
    %1499 = vmatprep.subr.mxu0 0.0
    %1500 = vmatpush2.msra.mxu0 0.0
    %1501 = vmatprep.subr.mxu0 0.0
    %1502 = vmatpush2.msra.mxu0 0.0
    %1503 = vmatprep.subr.mxu0 0.0
    %1504 = vmatpush2.msra.mxu0 0.0
    %1505 = vmatprep.subr.mxu0 0.0
    %1506 = vmatpush2.msra.mxu0 0.0
    %1507 = vmatprep.mubr.f32.mxu0 0.0
    %1508 = vmatmul.mubr.f32.gmra.mxu0 %v1441
    %v1509 = vpop.f32.mrf.mxu0
    %v1510 = vadd.f32 0.0, %v1509
    %v1511 = vpop.f32.mrf.mxu0
    %1512 = vdwg.mxu0
    %1514 = vrot.lane.b32.xlu0 %v1437, 32
    %v1515 = vpop.permute.xlu0 %1514
    %v1516 = vsel %vm793, %v1515, 0
    %1518 = vmatprep.subr.mxu0 0.0
    %1519 = vmatpush1.msra.mxu0 0.0
    %1520 = vmatprep.subr.mxu0 0.0
    %1521 = vmatpush1.msra.mxu0 0.0
    %1522 = vmatprep.subr.mxu0 0.0
    %1523 = vmatpush1.msra.mxu0 0.0
    %1524 = vmatprep.subr.mxu0 0.0
    %1525 = vmatpush1.msra.mxu0 0.0
    %1526 = vmatprep.subr.mxu0 0.0
    %1527 = vmatpush1.msra.mxu0 0.0
    %1528 = vmatprep.subr.mxu0 0.0
    %1529 = vmatpush1.msra.mxu0 0.0
    %1530 = vmatprep.subr.mxu0 0.0
    %1531 = vmatpush1.msra.mxu0 0.0
    %1532 = vmatprep.subr.mxu0 0.0
    %1533 = vmatpush1.msra.mxu0 0.0
    %1534 = vmatprep.subr.mxu0 0.0
    %1535 = vmatpush1.msra.mxu0 0.0
    %1536 = vmatprep.subr.mxu0 0.0
    %1537 = vmatpush1.msra.mxu0 0.0
    %1538 = vmatprep.subr.mxu0 0.0
    %1539 = vmatpush1.msra.mxu0 0.0
    %1540 = vmatprep.subr.mxu0 0.0
    %1541 = vmatpush1.msra.mxu0 0.0
    %1542 = vmatprep.subr.mxu0 0.0
    %1543 = vmatpush1.msra.mxu0 %v79
    %1544 = vmatprep.subr.mxu0 0.0
    %1545 = vmatpush1.msra.mxu0 %v78
    %1546 = vmatprep.subr.mxu0 0.0
    %1547 = vmatpush1.msra.mxu0 %v77
    %1548 = vmatprep.subr.mxu0 0.0
    %1549 = vmatpush1.msra.mxu0 %v76
    %1550 = vmatprep.subr.mxu0 0.0
    %1551 = vmatpush2.msra.mxu0 0.0
    %1552 = vmatprep.subr.mxu0 0.0
    %1553 = vmatpush2.msra.mxu0 0.0
    %1554 = vmatprep.subr.mxu0 0.0
    %1555 = vmatpush2.msra.mxu0 0.0
    %1556 = vmatprep.subr.mxu0 0.0
    %1557 = vmatpush2.msra.mxu0 0.0
    %1558 = vmatprep.subr.mxu0 0.0
    %1559 = vmatpush2.msra.mxu0 0.0
    %1560 = vmatprep.subr.mxu0 0.0
    %1561 = vmatpush2.msra.mxu0 0.0
    %1562 = vmatprep.subr.mxu0 0.0
    %1563 = vmatpush2.msra.mxu0 0.0
    %1564 = vmatprep.subr.mxu0 0.0
    %1565 = vmatpush2.msra.mxu0 0.0
    %1566 = vmatprep.subr.mxu0 0.0
    %1567 = vmatpush2.msra.mxu0 0.0
    %1568 = vmatprep.subr.mxu0 0.0
    %1569 = vmatpush2.msra.mxu0 0.0
    %1570 = vmatprep.subr.mxu0 0.0
    %1571 = vmatpush2.msra.mxu0 0.0
    %1572 = vmatprep.subr.mxu0 0.0
    %1573 = vmatpush2.msra.mxu0 0.0
    %1574 = vmatprep.subr.mxu0 0.0
    %1575 = vmatpush2.msra.mxu0 0.0
    %1576 = vmatprep.subr.mxu0 0.0
    %1577 = vmatpush2.msra.mxu0 0.0
    %1578 = vmatprep.subr.mxu0 0.0
    %1579 = vmatpush2.msra.mxu0 0.0
    %1580 = vmatprep.subr.mxu0 0.0
    %1581 = vmatpush2.msra.mxu0 0.0
    %1582 = vmatprep.mubr.f32.mxu0 0.0
    %1583 = vmatmul.mubr.f32.gmra.mxu0 %v1516
    %v1584 = vpop.f32.mrf.mxu0
    %v1585 = vadd.f32 %v1510, %v1584
    %v1586 = vpop.f32.mrf.mxu0
    %1587 = vdwg.mxu0
    %v1588 = vadd.f32 %v1585, %v1042
    %v1589 = vxor.u32 %v1588, 2147483648
    %v1590 = vmul.f32 %v1589, 1.442695
    %v1591 = vpow.pop %v1590
    %v1592 = vadd.f32 %v1591, 1.0
    %v1593 = vrcp.pop %v1592
    %v1594 = vmul.f32 1.0, %v1593
    %v1595 = vmul.f32 %v1594, 2.0
    %v1596 = vsub.f32 %v1595, 1.0
    %v1597 = vmul.f32 %v1594, %v1335
    %1599 = vrot.lane.b32.xlu0 %v1596, 64
    %v1600 = vpop.permute.xlu0 %1599
    %v1602 = vmul.f32 %v1594, %v1600
    %1604 = vrot.lane.b32.xlu0 %v1602, 32
    %v1605 = vpop.permute.xlu0 %1604
    %v1607 = vadd.f32 %v1597, %v1605
    %v1608 = vtanh.pop %v1607
    %1610 = vrot.lane.b32.xlu0 %v1608, 64
    %v1611 = vpop.permute.xlu0 %1610
    %v1613 = vmul.f32 %v1594, %v1611
    %1614 = vmatprep.subr.mxu0 0.0
    %1615 = vmatpush1.msra.mxu0 0.0
    %1616 = vmatprep.subr.mxu0 0.0
    %1617 = vmatpush1.msra.mxu0 0.0
    %1618 = vmatprep.subr.mxu0 0.0
    %1619 = vmatpush1.msra.mxu0 0.0
    %1620 = vmatprep.subr.mxu0 0.0
    %1621 = vmatpush1.msra.mxu0 0.0
    %1622 = vmatprep.subr.mxu0 0.0
    %1623 = vmatpush1.msra.mxu0 0.0
    %1624 = vmatprep.subr.mxu0 0.0
    %1625 = vmatpush1.msra.mxu0 0.0
    %1626 = vmatprep.subr.mxu0 0.0
    %1627 = vmatpush1.msra.mxu0 0.0
    %1628 = vmatprep.subr.mxu0 0.0
    %1629 = vmatpush1.msra.mxu0 0.0
    %1630 = vmatprep.subr.mxu0 0.0
    %1631 = vmatpush1.msra.mxu0 0.0
    %1632 = vmatprep.subr.mxu0 0.0
    %1633 = vmatpush1.msra.mxu0 0.0
    %1634 = vmatprep.subr.mxu0 0.0
    %1635 = vmatpush1.msra.mxu0 0.0
    %1636 = vmatprep.subr.mxu0 0.0
    %1637 = vmatpush1.msra.mxu0 0.0
    %1638 = vmatprep.subr.mxu0 0.0
    %1639 = vmatpush1.msra.mxu0 %v83
    %1640 = vmatprep.subr.mxu0 0.0
    %1641 = vmatpush1.msra.mxu0 %v82
    %1642 = vmatprep.subr.mxu0 0.0
    %1643 = vmatpush1.msra.mxu0 %v81
    %1644 = vmatprep.subr.mxu0 0.0
    %1645 = vmatpush1.msra.mxu0 %v80
    %1646 = vmatprep.subr.mxu0 0.0
    %1647 = vmatpush2.msra.mxu0 0.0
    %1648 = vmatprep.subr.mxu0 0.0
    %1649 = vmatpush2.msra.mxu0 0.0
    %1650 = vmatprep.subr.mxu0 0.0
    %1651 = vmatpush2.msra.mxu0 0.0
    %1652 = vmatprep.subr.mxu0 0.0
    %1653 = vmatpush2.msra.mxu0 0.0
    %1654 = vmatprep.subr.mxu0 0.0
    %1655 = vmatpush2.msra.mxu0 0.0
    %1656 = vmatprep.subr.mxu0 0.0
    %1657 = vmatpush2.msra.mxu0 0.0
    %1658 = vmatprep.subr.mxu0 0.0
    %1659 = vmatpush2.msra.mxu0 0.0
    %1660 = vmatprep.subr.mxu0 0.0
    %1661 = vmatpush2.msra.mxu0 0.0
    %1662 = vmatprep.subr.mxu0 0.0
    %1663 = vmatpush2.msra.mxu0 0.0
    %1664 = vmatprep.subr.mxu0 0.0
    %1665 = vmatpush2.msra.mxu0 0.0
    %1666 = vmatprep.subr.mxu0 0.0
    %1667 = vmatpush2.msra.mxu0 0.0
    %1668 = vmatprep.subr.mxu0 0.0
    %1669 = vmatpush2.msra.mxu0 0.0
    %1670 = vmatprep.subr.mxu0 0.0
    %1671 = vmatpush2.msra.mxu0 0.0
    %1672 = vmatprep.subr.mxu0 0.0
    %1673 = vmatpush2.msra.mxu0 0.0
    %1674 = vmatprep.subr.mxu0 0.0
    %1675 = vmatpush2.msra.mxu0 0.0
    %1676 = vmatprep.subr.mxu0 0.0
    %1677 = vmatpush2.msra.mxu0 0.0
    %1678 = vmatprep.mubr.f32.mxu0 0.0
    %1679 = vmatmul.mubr.f32.gmra.mxu0 %v1516
    %v1680 = vpop.f32.mrf.mxu0
    %v1681 = vadd.f32 0.0, %v1680
    %v1682 = vpop.f32.mrf.mxu0
    %1683 = vdwg.mxu0
    %v1684 = vadd.f32 %v446, %v1681
    %v1685 = vxor.u32 %v1684, 2147483648
    %v1686 = vmul.f32 %v1685, 1.442695
    %v1687 = vpow.pop %v1686
    %v1688 = vadd.f32 %v1687, 1.0
    %v1689 = vrcp.pop %v1688
    %v1690 = vmul.f32 1.0, %v1689
    %v1691 = vmul.f32 %v1690, 2.0
    %v1692 = vsub.f32 %v1691, 1.0
    %v1693 = vmul.f32 %v1690, %v1431
    %1695 = vrot.lane.b32.xlu0 %v1692, 64
    %v1696 = vpop.permute.xlu0 %1695
    %v1698 = vmul.f32 %v1690, %v1696
    %1700 = vrot.lane.b32.xlu0 %v1698, 32
    %v1701 = vpop.permute.xlu0 %1700
    %v1703 = vadd.f32 %v1693, %v1701
    %v1704 = vtanh.pop %v1703
    %1706 = vrot.lane.b32.xlu0 %v1704, 64
    %v1707 = vpop.permute.xlu0 %1706
    %v1709 = vmul.f32 %v1690, %v1707
    %1711 = vrot.lane.b32.xlu0 %v1613, 32
    %v1712 = vpop.permute.xlu0 %1711
    %v1713 = vsel %vm793, %v1712, 0
    %1715 = vmatprep.subr.mxu0 0.0
    %1716 = vmatpush1.msra.mxu0 0.0
    %1717 = vmatprep.subr.mxu0 0.0
    %1718 = vmatpush1.msra.mxu0 0.0
    %1719 = vmatprep.subr.mxu0 0.0
    %1720 = vmatpush1.msra.mxu0 0.0
    %1721 = vmatprep.subr.mxu0 0.0
    %1722 = vmatpush1.msra.mxu0 0.0
    %1723 = vmatprep.subr.mxu0 0.0
    %1724 = vmatpush1.msra.mxu0 0.0
    %1725 = vmatprep.subr.mxu0 0.0
    %1726 = vmatpush1.msra.mxu0 0.0
    %1727 = vmatprep.subr.mxu0 0.0
    %1728 = vmatpush1.msra.mxu0 0.0
    %1729 = vmatprep.subr.mxu0 0.0
    %1730 = vmatpush1.msra.mxu0 0.0
    %1731 = vmatprep.subr.mxu0 0.0
    %1732 = vmatpush1.msra.mxu0 0.0
    %1733 = vmatprep.subr.mxu0 0.0
    %1734 = vmatpush1.msra.mxu0 0.0
    %1735 = vmatprep.subr.mxu0 0.0
    %1736 = vmatpush1.msra.mxu0 0.0
    %1737 = vmatprep.subr.mxu0 0.0
    %1738 = vmatpush1.msra.mxu0 0.0
    %1739 = vmatprep.subr.mxu0 0.0
    %1740 = vmatpush1.msra.mxu0 %v87
    %1741 = vmatprep.subr.mxu0 0.0
    %1742 = vmatpush1.msra.mxu0 %v86
    %1743 = vmatprep.subr.mxu0 0.0
    %1744 = vmatpush1.msra.mxu0 %v85
    %1745 = vmatprep.subr.mxu0 0.0
    %1746 = vmatpush1.msra.mxu0 %v84
    %1747 = vmatprep.subr.mxu0 0.0
    %1748 = vmatpush2.msra.mxu0 0.0
    %1749 = vmatprep.subr.mxu0 0.0
    %1750 = vmatpush2.msra.mxu0 0.0
    %1751 = vmatprep.subr.mxu0 0.0
    %1752 = vmatpush2.msra.mxu0 0.0
    %1753 = vmatprep.subr.mxu0 0.0
    %1754 = vmatpush2.msra.mxu0 0.0
    %1755 = vmatprep.subr.mxu0 0.0
    %1756 = vmatpush2.msra.mxu0 0.0
    %1757 = vmatprep.subr.mxu0 0.0
    %1758 = vmatpush2.msra.mxu0 0.0
    %1759 = vmatprep.subr.mxu0 0.0
    %1760 = vmatpush2.msra.mxu0 0.0
    %1761 = vmatprep.subr.mxu0 0.0
    %1762 = vmatpush2.msra.mxu0 0.0
    %1763 = vmatprep.subr.mxu0 0.0
    %1764 = vmatpush2.msra.mxu0 0.0
    %1765 = vmatprep.subr.mxu0 0.0
    %1766 = vmatpush2.msra.mxu0 0.0
    %1767 = vmatprep.subr.mxu0 0.0
    %1768 = vmatpush2.msra.mxu0 0.0
    %1769 = vmatprep.subr.mxu0 0.0
    %1770 = vmatpush2.msra.mxu0 0.0
    %1771 = vmatprep.subr.mxu0 0.0
    %1772 = vmatpush2.msra.mxu0 0.0
    %1773 = vmatprep.subr.mxu0 0.0
    %1774 = vmatpush2.msra.mxu0 0.0
    %1775 = vmatprep.subr.mxu0 0.0
    %1776 = vmatpush2.msra.mxu0 0.0
    %1777 = vmatprep.subr.mxu0 0.0
    %1778 = vmatpush2.msra.mxu0 0.0
    %1779 = vmatprep.mubr.f32.mxu0 0.0
    %1780 = vmatmul.mubr.f32.gmra.mxu0 %v1713
    %v1781 = vpop.f32.mrf.mxu0
    %v1782 = vadd.f32 0.0, %v1781
    %v1783 = vpop.f32.mrf.mxu0
    %1784 = vdwg.mxu0
    %1786 = vrot.lane.b32.xlu0 %v1709, 32
    %v1787 = vpop.permute.xlu0 %1786
    %v1788 = vsel %vm793, %v1787, 0
    %1790 = vmatprep.subr.mxu0 0.0
    %1791 = vmatpush1.msra.mxu0 0.0
    %1792 = vmatprep.subr.mxu0 0.0
    %1793 = vmatpush1.msra.mxu0 0.0
    %1794 = vmatprep.subr.mxu0 0.0
    %1795 = vmatpush1.msra.mxu0 0.0
    %1796 = vmatprep.subr.mxu0 0.0
    %1797 = vmatpush1.msra.mxu0 0.0
    %1798 = vmatprep.subr.mxu0 0.0
    %1799 = vmatpush1.msra.mxu0 0.0
    %1800 = vmatprep.subr.mxu0 0.0
    %1801 = vmatpush1.msra.mxu0 0.0
    %1802 = vmatprep.subr.mxu0 0.0
    %1803 = vmatpush1.msra.mxu0 0.0
    %1804 = vmatprep.subr.mxu0 0.0
    %1805 = vmatpush1.msra.mxu0 0.0
    %1806 = vmatprep.subr.mxu0 0.0
    %1807 = vmatpush1.msra.mxu0 0.0
    %1808 = vmatprep.subr.mxu0 0.0
    %1809 = vmatpush1.msra.mxu0 0.0
    %1810 = vmatprep.subr.mxu0 0.0
    %1811 = vmatpush1.msra.mxu0 0.0
    %1812 = vmatprep.subr.mxu0 0.0
    %1813 = vmatpush1.msra.mxu0 0.0
    %1814 = vmatprep.subr.mxu0 0.0
    %1815 = vmatpush1.msra.mxu0 %v79
    %1816 = vmatprep.subr.mxu0 0.0
    %1817 = vmatpush1.msra.mxu0 %v78
    %1818 = vmatprep.subr.mxu0 0.0
    %1819 = vmatpush1.msra.mxu0 %v77
    %1820 = vmatprep.subr.mxu0 0.0
    %1821 = vmatpush1.msra.mxu0 %v76
    %1822 = vmatprep.subr.mxu0 0.0
    %1823 = vmatpush2.msra.mxu0 0.0
    %1824 = vmatprep.subr.mxu0 0.0
    %1825 = vmatpush2.msra.mxu0 0.0
    %1826 = vmatprep.subr.mxu0 0.0
    %1827 = vmatpush2.msra.mxu0 0.0
    %1828 = vmatprep.subr.mxu0 0.0
    %1829 = vmatpush2.msra.mxu0 0.0
    %1830 = vmatprep.subr.mxu0 0.0
    %1831 = vmatpush2.msra.mxu0 0.0
    %1832 = vmatprep.subr.mxu0 0.0
    %1833 = vmatpush2.msra.mxu0 0.0
    %1834 = vmatprep.subr.mxu0 0.0
    %1835 = vmatpush2.msra.mxu0 0.0
    %1836 = vmatprep.subr.mxu0 0.0
    %1837 = vmatpush2.msra.mxu0 0.0
    %1838 = vmatprep.subr.mxu0 0.0
    %1839 = vmatpush2.msra.mxu0 0.0
    %1840 = vmatprep.subr.mxu0 0.0
    %1841 = vmatpush2.msra.mxu0 0.0
    %1842 = vmatprep.subr.mxu0 0.0
    %1843 = vmatpush2.msra.mxu0 0.0
    %1844 = vmatprep.subr.mxu0 0.0
    %1845 = vmatpush2.msra.mxu0 0.0
    %1846 = vmatprep.subr.mxu0 0.0
    %1847 = vmatpush2.msra.mxu0 0.0
    %1848 = vmatprep.subr.mxu0 0.0
    %1849 = vmatpush2.msra.mxu0 0.0
    %1850 = vmatprep.subr.mxu0 0.0
    %1851 = vmatpush2.msra.mxu0 0.0
    %1852 = vmatprep.subr.mxu0 0.0
    %1853 = vmatpush2.msra.mxu0 0.0
    %1854 = vmatprep.mubr.f32.mxu0 0.0
    %1855 = vmatmul.mubr.f32.gmra.mxu0 %v1788
    %v1856 = vpop.f32.mrf.mxu0
    %v1857 = vadd.f32 %v1782, %v1856
    %v1858 = vpop.f32.mrf.mxu0
    %1859 = vdwg.mxu0
    %v1860 = vadd.f32 %v1857, %v1042
    %v1861 = vxor.u32 %v1860, 2147483648
    %v1862 = vmul.f32 %v1861, 1.442695
    %v1863 = vpow.pop %v1862
    %v1864 = vadd.f32 %v1863, 1.0
    %v1865 = vrcp.pop %v1864
    %v1866 = vmul.f32 1.0, %v1865
    %v1867 = vmul.f32 %v1866, 2.0
    %v1868 = vsub.f32 %v1867, 1.0
    %v1869 = vmul.f32 %v1866, %v1607
    %1871 = vrot.lane.b32.xlu0 %v1868, 64
    %v1872 = vpop.permute.xlu0 %1871
    %v1874 = vmul.f32 %v1866, %v1872
    %1876 = vrot.lane.b32.xlu0 %v1874, 32
    %v1877 = vpop.permute.xlu0 %1876
    %v1879 = vadd.f32 %v1869, %v1877
    %v1880 = vtanh.pop %v1879
    %1882 = vrot.lane.b32.xlu0 %v1880, 64
    %v1883 = vpop.permute.xlu0 %1882
    %v1885 = vmul.f32 %v1866, %v1883
    %1886 = vmatprep.subr.mxu0 0.0
    %1887 = vmatpush1.msra.mxu0 0.0
    %1888 = vmatprep.subr.mxu0 0.0
    %1889 = vmatpush1.msra.mxu0 0.0
    %1890 = vmatprep.subr.mxu0 0.0
    %1891 = vmatpush1.msra.mxu0 0.0
    %1892 = vmatprep.subr.mxu0 0.0
    %1893 = vmatpush1.msra.mxu0 0.0
    %1894 = vmatprep.subr.mxu0 0.0
    %1895 = vmatpush1.msra.mxu0 0.0
    %1896 = vmatprep.subr.mxu0 0.0
    %1897 = vmatpush1.msra.mxu0 0.0
    %1898 = vmatprep.subr.mxu0 0.0
    %1899 = vmatpush1.msra.mxu0 0.0
    %1900 = vmatprep.subr.mxu0 0.0
    %1901 = vmatpush1.msra.mxu0 0.0
    %1902 = vmatprep.subr.mxu0 0.0
    %1903 = vmatpush1.msra.mxu0 0.0
    %1904 = vmatprep.subr.mxu0 0.0
    %1905 = vmatpush1.msra.mxu0 0.0
    %1906 = vmatprep.subr.mxu0 0.0
    %1907 = vmatpush1.msra.mxu0 0.0
    %1908 = vmatprep.subr.mxu0 0.0
    %1909 = vmatpush1.msra.mxu0 0.0
    %1910 = vmatprep.subr.mxu0 0.0
    %1911 = vmatpush1.msra.mxu0 %v83
    %1912 = vmatprep.subr.mxu0 0.0
    %1913 = vmatpush1.msra.mxu0 %v82
    %1914 = vmatprep.subr.mxu0 0.0
    %1915 = vmatpush1.msra.mxu0 %v81
    %1916 = vmatprep.subr.mxu0 0.0
    %1917 = vmatpush1.msra.mxu0 %v80
    %1918 = vmatprep.subr.mxu0 0.0
    %1919 = vmatpush2.msra.mxu0 0.0
    %1920 = vmatprep.subr.mxu0 0.0
    %1921 = vmatpush2.msra.mxu0 0.0
    %1922 = vmatprep.subr.mxu0 0.0
    %1923 = vmatpush2.msra.mxu0 0.0
    %1924 = vmatprep.subr.mxu0 0.0
    %1925 = vmatpush2.msra.mxu0 0.0
    %1926 = vmatprep.subr.mxu0 0.0
    %1927 = vmatpush2.msra.mxu0 0.0
    %1928 = vmatprep.subr.mxu0 0.0
    %1929 = vmatpush2.msra.mxu0 0.0
    %1930 = vmatprep.subr.mxu0 0.0
    %1931 = vmatpush2.msra.mxu0 0.0
    %1932 = vmatprep.subr.mxu0 0.0
    %1933 = vmatpush2.msra.mxu0 0.0
    %1934 = vmatprep.subr.mxu0 0.0
    %1935 = vmatpush2.msra.mxu0 0.0
    %1936 = vmatprep.subr.mxu0 0.0
    %1937 = vmatpush2.msra.mxu0 0.0
    %1938 = vmatprep.subr.mxu0 0.0
    %1939 = vmatpush2.msra.mxu0 0.0
    %1940 = vmatprep.subr.mxu0 0.0
    %1941 = vmatpush2.msra.mxu0 0.0
    %1942 = vmatprep.subr.mxu0 0.0
    %1943 = vmatpush2.msra.mxu0 0.0
    %1944 = vmatprep.subr.mxu0 0.0
    %1945 = vmatpush2.msra.mxu0 0.0
    %1946 = vmatprep.subr.mxu0 0.0
    %1947 = vmatpush2.msra.mxu0 0.0
    %1948 = vmatprep.subr.mxu0 0.0
    %1949 = vmatpush2.msra.mxu0 0.0
    %1950 = vmatprep.mubr.f32.mxu0 0.0
    %1951 = vmatmul.mubr.f32.gmra.mxu0 %v1788
    %v1952 = vpop.f32.mrf.mxu0
    %v1953 = vadd.f32 0.0, %v1952
    %v1954 = vpop.f32.mrf.mxu0
    %1955 = vdwg.mxu0
    %v1956 = vadd.f32 %v532, %v1953
    %v1957 = vxor.u32 %v1956, 2147483648
    %v1958 = vmul.f32 %v1957, 1.442695
    %v1959 = vpow.pop %v1958
    %v1960 = vadd.f32 %v1959, 1.0
    %v1961 = vrcp.pop %v1960
    %v1962 = vmul.f32 1.0, %v1961
    %v1963 = vmul.f32 %v1962, 2.0
    %v1964 = vsub.f32 %v1963, 1.0
    %v1965 = vmul.f32 %v1962, %v1703
    %1967 = vrot.lane.b32.xlu0 %v1964, 64
    %v1968 = vpop.permute.xlu0 %1967
    %v1970 = vmul.f32 %v1962, %v1968
    %1972 = vrot.lane.b32.xlu0 %v1970, 32
    %v1973 = vpop.permute.xlu0 %1972
    %v1975 = vadd.f32 %v1965, %v1973
    %v1976 = vtanh.pop %v1975
    %1978 = vrot.lane.b32.xlu0 %v1976, 64
    %v1979 = vpop.permute.xlu0 %1978
    %v1981 = vmul.f32 %v1962, %v1979
    %1983 = vrot.lane.b32.xlu0 %v1885, 32
    %v1984 = vpop.permute.xlu0 %1983
    %v1985 = vsel %vm793, %v1984, 0
    %1987 = vmatprep.subr.mxu0 0.0
    %1988 = vmatpush1.msra.mxu0 0.0
    %1989 = vmatprep.subr.mxu0 0.0
    %1990 = vmatpush1.msra.mxu0 0.0
    %1991 = vmatprep.subr.mxu0 0.0
    %1992 = vmatpush1.msra.mxu0 0.0
    %1993 = vmatprep.subr.mxu0 0.0
    %1994 = vmatpush1.msra.mxu0 0.0
    %1995 = vmatprep.subr.mxu0 0.0
    %1996 = vmatpush1.msra.mxu0 0.0
    %1997 = vmatprep.subr.mxu0 0.0
    %1998 = vmatpush1.msra.mxu0 0.0
    %1999 = vmatprep.subr.mxu0 0.0
    %2000 = vmatpush1.msra.mxu0 0.0
    %2001 = vmatprep.subr.mxu0 0.0
    %2002 = vmatpush1.msra.mxu0 0.0
    %2003 = vmatprep.subr.mxu0 0.0
    %2004 = vmatpush1.msra.mxu0 0.0
    %2005 = vmatprep.subr.mxu0 0.0
    %2006 = vmatpush1.msra.mxu0 0.0
    %2007 = vmatprep.subr.mxu0 0.0
    %2008 = vmatpush1.msra.mxu0 0.0
    %2009 = vmatprep.subr.mxu0 0.0
    %2010 = vmatpush1.msra.mxu0 0.0
    %2011 = vmatprep.subr.mxu0 0.0
    %2012 = vmatpush1.msra.mxu0 %v87
    %2013 = vmatprep.subr.mxu0 0.0
    %2014 = vmatpush1.msra.mxu0 %v86
    %2015 = vmatprep.subr.mxu0 0.0
    %2016 = vmatpush1.msra.mxu0 %v85
    %2017 = vmatprep.subr.mxu0 0.0
    %2018 = vmatpush1.msra.mxu0 %v84
    %2019 = vmatprep.subr.mxu0 0.0
    %2020 = vmatpush2.msra.mxu0 0.0
    %2021 = vmatprep.subr.mxu0 0.0
    %2022 = vmatpush2.msra.mxu0 0.0
    %2023 = vmatprep.subr.mxu0 0.0
    %2024 = vmatpush2.msra.mxu0 0.0
    %2025 = vmatprep.subr.mxu0 0.0
    %2026 = vmatpush2.msra.mxu0 0.0
    %2027 = vmatprep.subr.mxu0 0.0
    %2028 = vmatpush2.msra.mxu0 0.0
    %2029 = vmatprep.subr.mxu0 0.0
    %2030 = vmatpush2.msra.mxu0 0.0
    %2031 = vmatprep.subr.mxu0 0.0
    %2032 = vmatpush2.msra.mxu0 0.0
    %2033 = vmatprep.subr.mxu0 0.0
    %2034 = vmatpush2.msra.mxu0 0.0
    %2035 = vmatprep.subr.mxu0 0.0
    %2036 = vmatpush2.msra.mxu0 0.0
    %2037 = vmatprep.subr.mxu0 0.0
    %2038 = vmatpush2.msra.mxu0 0.0
    %2039 = vmatprep.subr.mxu0 0.0
    %2040 = vmatpush2.msra.mxu0 0.0
    %2041 = vmatprep.subr.mxu0 0.0
    %2042 = vmatpush2.msra.mxu0 0.0
    %2043 = vmatprep.subr.mxu0 0.0
    %2044 = vmatpush2.msra.mxu0 0.0
    %2045 = vmatprep.subr.mxu0 0.0
    %2046 = vmatpush2.msra.mxu0 0.0
    %2047 = vmatprep.subr.mxu0 0.0
    %2048 = vmatpush2.msra.mxu0 0.0
    %2049 = vmatprep.subr.mxu0 0.0
    %2050 = vmatpush2.msra.mxu0 0.0
    %2051 = vmatprep.mubr.f32.mxu0 0.0
    %2052 = vmatmul.mubr.f32.gmra.mxu0 %v1985
    %v2053 = vpop.f32.mrf.mxu0
    %v2054 = vadd.f32 0.0, %v2053
    %v2055 = vpop.f32.mrf.mxu0
    %2056 = vdwg.mxu0
    %2058 = vrot.lane.b32.xlu0 %v1981, 32
    %v2059 = vpop.permute.xlu0 %2058
    %v2060 = vsel %vm793, %v2059, 0
    %2062 = vmatprep.subr.mxu0 0.0
    %2063 = vmatpush1.msra.mxu0 0.0
    %2064 = vmatprep.subr.mxu0 0.0
    %2065 = vmatpush1.msra.mxu0 0.0
    %2066 = vmatprep.subr.mxu0 0.0
    %2067 = vmatpush1.msra.mxu0 0.0
    %2068 = vmatprep.subr.mxu0 0.0
    %2069 = vmatpush1.msra.mxu0 0.0
    %2070 = vmatprep.subr.mxu0 0.0
    %2071 = vmatpush1.msra.mxu0 0.0
    %2072 = vmatprep.subr.mxu0 0.0
    %2073 = vmatpush1.msra.mxu0 0.0
    %2074 = vmatprep.subr.mxu0 0.0
    %2075 = vmatpush1.msra.mxu0 0.0
    %2076 = vmatprep.subr.mxu0 0.0
    %2077 = vmatpush1.msra.mxu0 0.0
    %2078 = vmatprep.subr.mxu0 0.0
    %2079 = vmatpush1.msra.mxu0 0.0
    %2080 = vmatprep.subr.mxu0 0.0
    %2081 = vmatpush1.msra.mxu0 0.0
    %2082 = vmatprep.subr.mxu0 0.0
    %2083 = vmatpush1.msra.mxu0 0.0
    %2084 = vmatprep.subr.mxu0 0.0
    %2085 = vmatpush1.msra.mxu0 0.0
    %2086 = vmatprep.subr.mxu0 0.0
    %2087 = vmatpush1.msra.mxu0 %v79
    %2088 = vmatprep.subr.mxu0 0.0
    %2089 = vmatpush1.msra.mxu0 %v78
    %2090 = vmatprep.subr.mxu0 0.0
    %2091 = vmatpush1.msra.mxu0 %v77
    %2092 = vmatprep.subr.mxu0 0.0
    %2093 = vmatpush1.msra.mxu0 %v76
    %2094 = vmatprep.subr.mxu0 0.0
    %2095 = vmatpush2.msra.mxu0 0.0
    %2096 = vmatprep.subr.mxu0 0.0
    %2097 = vmatpush2.msra.mxu0 0.0
    %2098 = vmatprep.subr.mxu0 0.0
    %2099 = vmatpush2.msra.mxu0 0.0
    %2100 = vmatprep.subr.mxu0 0.0
    %2101 = vmatpush2.msra.mxu0 0.0
    %2102 = vmatprep.subr.mxu0 0.0
    %2103 = vmatpush2.msra.mxu0 0.0
    %2104 = vmatprep.subr.mxu0 0.0
    %2105 = vmatpush2.msra.mxu0 0.0
    %2106 = vmatprep.subr.mxu0 0.0
    %2107 = vmatpush2.msra.mxu0 0.0
    %2108 = vmatprep.subr.mxu0 0.0
    %2109 = vmatpush2.msra.mxu0 0.0
    %2110 = vmatprep.subr.mxu0 0.0
    %2111 = vmatpush2.msra.mxu0 0.0
    %2112 = vmatprep.subr.mxu0 0.0
    %2113 = vmatpush2.msra.mxu0 0.0
    %2114 = vmatprep.subr.mxu0 0.0
    %2115 = vmatpush2.msra.mxu0 0.0
    %2116 = vmatprep.subr.mxu0 0.0
    %2117 = vmatpush2.msra.mxu0 0.0
    %2118 = vmatprep.subr.mxu0 0.0
    %2119 = vmatpush2.msra.mxu0 0.0
    %2120 = vmatprep.subr.mxu0 0.0
    %2121 = vmatpush2.msra.mxu0 0.0
    %2122 = vmatprep.subr.mxu0 0.0
    %2123 = vmatpush2.msra.mxu0 0.0
    %2124 = vmatprep.subr.mxu0 0.0
    %2125 = vmatpush2.msra.mxu0 0.0
    %2126 = vmatprep.mubr.f32.mxu0 0.0
    %2127 = vmatmul.mubr.f32.gmra.mxu0 %v2060
    %v2128 = vpop.f32.mrf.mxu0
    %v2129 = vadd.f32 %v2054, %v2128
    %v2130 = vpop.f32.mrf.mxu0
    %2131 = vdwg.mxu0
    %v2132 = vadd.f32 %v2129, %v1042
    %v2133 = vxor.u32 %v2132, 2147483648
    %v2134 = vmul.f32 %v2133, 1.442695
    %v2135 = vpow.pop %v2134
    %v2136 = vadd.f32 %v2135, 1.0
    %v2137 = vrcp.pop %v2136
    %v2138 = vmul.f32 1.0, %v2137
    %v2139 = vmul.f32 %v2138, 2.0
    %v2140 = vsub.f32 %v2139, 1.0
    %v2141 = vmul.f32 %v2138, %v1879
    %2143 = vrot.lane.b32.xlu0 %v2140, 64
    %v2144 = vpop.permute.xlu0 %2143
    %v2146 = vmul.f32 %v2138, %v2144
    %2148 = vrot.lane.b32.xlu0 %v2146, 32
    %v2149 = vpop.permute.xlu0 %2148
    %v2151 = vadd.f32 %v2141, %v2149
    %v2152 = vtanh.pop %v2151
    %2154 = vrot.lane.b32.xlu0 %v2152, 64
    %v2155 = vpop.permute.xlu0 %2154
    %v2157 = vmul.f32 %v2138, %v2155
    %2158 = vmatprep.subr.mxu0 0.0
    %2159 = vmatpush1.msra.mxu0 0.0
    %2160 = vmatprep.subr.mxu0 0.0
    %2161 = vmatpush1.msra.mxu0 0.0
    %2162 = vmatprep.subr.mxu0 0.0
    %2163 = vmatpush1.msra.mxu0 0.0
    %2164 = vmatprep.subr.mxu0 0.0
    %2165 = vmatpush1.msra.mxu0 0.0
    %2166 = vmatprep.subr.mxu0 0.0
    %2167 = vmatpush1.msra.mxu0 0.0
    %2168 = vmatprep.subr.mxu0 0.0
    %2169 = vmatpush1.msra.mxu0 0.0
    %2170 = vmatprep.subr.mxu0 0.0
    %2171 = vmatpush1.msra.mxu0 0.0
    %2172 = vmatprep.subr.mxu0 0.0
    %2173 = vmatpush1.msra.mxu0 0.0
    %2174 = vmatprep.subr.mxu0 0.0
    %2175 = vmatpush1.msra.mxu0 0.0
    %2176 = vmatprep.subr.mxu0 0.0
    %2177 = vmatpush1.msra.mxu0 0.0
    %2178 = vmatprep.subr.mxu0 0.0
    %2179 = vmatpush1.msra.mxu0 0.0
    %2180 = vmatprep.subr.mxu0 0.0
    %2181 = vmatpush1.msra.mxu0 0.0
    %2182 = vmatprep.subr.mxu0 0.0
    %2183 = vmatpush1.msra.mxu0 %v83
    %2184 = vmatprep.subr.mxu0 0.0
    %2185 = vmatpush1.msra.mxu0 %v82
    %2186 = vmatprep.subr.mxu0 0.0
    %2187 = vmatpush1.msra.mxu0 %v81
    %2188 = vmatprep.subr.mxu0 0.0
    %2189 = vmatpush1.msra.mxu0 %v80
    %2190 = vmatprep.subr.mxu0 0.0
    %2191 = vmatpush2.msra.mxu0 0.0
    %2192 = vmatprep.subr.mxu0 0.0
    %2193 = vmatpush2.msra.mxu0 0.0
    %2194 = vmatprep.subr.mxu0 0.0
    %2195 = vmatpush2.msra.mxu0 0.0
    %2196 = vmatprep.subr.mxu0 0.0
    %2197 = vmatpush2.msra.mxu0 0.0
    %2198 = vmatprep.subr.mxu0 0.0
    %2199 = vmatpush2.msra.mxu0 0.0
    %2200 = vmatprep.subr.mxu0 0.0
    %2201 = vmatpush2.msra.mxu0 0.0
    %2202 = vmatprep.subr.mxu0 0.0
    %2203 = vmatpush2.msra.mxu0 0.0
    %2204 = vmatprep.subr.mxu0 0.0
    %2205 = vmatpush2.msra.mxu0 0.0
    %2206 = vmatprep.subr.mxu0 0.0
    %2207 = vmatpush2.msra.mxu0 0.0
    %2208 = vmatprep.subr.mxu0 0.0
    %2209 = vmatpush2.msra.mxu0 0.0
    %2210 = vmatprep.subr.mxu0 0.0
    %2211 = vmatpush2.msra.mxu0 0.0
    %2212 = vmatprep.subr.mxu0 0.0
    %2213 = vmatpush2.msra.mxu0 0.0
    %2214 = vmatprep.subr.mxu0 0.0
    %2215 = vmatpush2.msra.mxu0 0.0
    %2216 = vmatprep.subr.mxu0 0.0
    %2217 = vmatpush2.msra.mxu0 0.0
    %2218 = vmatprep.subr.mxu0 0.0
    %2219 = vmatpush2.msra.mxu0 0.0
    %2220 = vmatprep.subr.mxu0 0.0
    %2221 = vmatpush2.msra.mxu0 0.0
    %2222 = vmatprep.mubr.f32.mxu0 0.0
    %2223 = vmatmul.mubr.f32.gmra.mxu0 %v2060
    %v2224 = vpop.f32.mrf.mxu0
    %v2225 = vadd.f32 0.0, %v2224
    %v2226 = vpop.f32.mrf.mxu0
    %2227 = vdwg.mxu0
    %v2228 = vadd.f32 %v618, %v2225
    %v2229 = vxor.u32 %v2228, 2147483648
    %v2230 = vmul.f32 %v2229, 1.442695
    %v2231 = vpow.pop %v2230
    %v2232 = vadd.f32 %v2231, 1.0
    %v2233 = vrcp.pop %v2232
    %v2234 = vmul.f32 1.0, %v2233
    %v2235 = vmul.f32 %v2234, 2.0
    %v2236 = vsub.f32 %v2235, 1.0
    %v2237 = vmul.f32 %v2234, %v1975
    %2239 = vrot.lane.b32.xlu0 %v2236, 64
    %v2240 = vpop.permute.xlu0 %2239
    %v2242 = vmul.f32 %v2234, %v2240
    %2244 = vrot.lane.b32.xlu0 %v2242, 32
    %v2245 = vpop.permute.xlu0 %2244
    %v2247 = vadd.f32 %v2237, %v2245
    %v2248 = vtanh.pop %v2247
    %2250 = vrot.lane.b32.xlu0 %v2248, 64
    %v2251 = vpop.permute.xlu0 %2250
    %v2253 = vmul.f32 %v2234, %v2251
    %2255 = vrot.lane.b32.xlu0 %v2157, 32
    %v2256 = vpop.permute.xlu0 %2255
    %v2257 = vsel %vm793, %v2256, 0
    %2259 = vmatprep.subr.mxu0 0.0
    %2260 = vmatpush1.msra.mxu0 0.0
    %2261 = vmatprep.subr.mxu0 0.0
    %2262 = vmatpush1.msra.mxu0 0.0
    %2263 = vmatprep.subr.mxu0 0.0
    %2264 = vmatpush1.msra.mxu0 0.0
    %2265 = vmatprep.subr.mxu0 0.0
    %2266 = vmatpush1.msra.mxu0 0.0
    %2267 = vmatprep.subr.mxu0 0.0
    %2268 = vmatpush1.msra.mxu0 0.0
    %2269 = vmatprep.subr.mxu0 0.0
    %2270 = vmatpush1.msra.mxu0 0.0
    %2271 = vmatprep.subr.mxu0 0.0
    %2272 = vmatpush1.msra.mxu0 0.0
    %2273 = vmatprep.subr.mxu0 0.0
    %2274 = vmatpush1.msra.mxu0 0.0
    %2275 = vmatprep.subr.mxu0 0.0
    %2276 = vmatpush1.msra.mxu0 0.0
    %2277 = vmatprep.subr.mxu0 0.0
    %2278 = vmatpush1.msra.mxu0 0.0
    %2279 = vmatprep.subr.mxu0 0.0
    %2280 = vmatpush1.msra.mxu0 0.0
    %2281 = vmatprep.subr.mxu0 0.0
    %2282 = vmatpush1.msra.mxu0 0.0
    %2283 = vmatprep.subr.mxu0 0.0
    %2284 = vmatpush1.msra.mxu0 %v87
    %2285 = vmatprep.subr.mxu0 0.0
    %2286 = vmatpush1.msra.mxu0 %v86
    %2287 = vmatprep.subr.mxu0 0.0
    %2288 = vmatpush1.msra.mxu0 %v85
    %2289 = vmatprep.subr.mxu0 0.0
    %2290 = vmatpush1.msra.mxu0 %v84
    %2291 = vmatprep.subr.mxu0 0.0
    %2292 = vmatpush2.msra.mxu0 0.0
    %2293 = vmatprep.subr.mxu0 0.0
    %2294 = vmatpush2.msra.mxu0 0.0
    %2295 = vmatprep.subr.mxu0 0.0
    %2296 = vmatpush2.msra.mxu0 0.0
    %2297 = vmatprep.subr.mxu0 0.0
    %2298 = vmatpush2.msra.mxu0 0.0
    %2299 = vmatprep.subr.mxu0 0.0
    %2300 = vmatpush2.msra.mxu0 0.0
    %2301 = vmatprep.subr.mxu0 0.0
    %2302 = vmatpush2.msra.mxu0 0.0
    %2303 = vmatprep.subr.mxu0 0.0
    %2304 = vmatpush2.msra.mxu0 0.0
    %2305 = vmatprep.subr.mxu0 0.0
    %2306 = vmatpush2.msra.mxu0 0.0
    %2307 = vmatprep.subr.mxu0 0.0
    %2308 = vmatpush2.msra.mxu0 0.0
    %2309 = vmatprep.subr.mxu0 0.0
    %2310 = vmatpush2.msra.mxu0 0.0
    %2311 = vmatprep.subr.mxu0 0.0
    %2312 = vmatpush2.msra.mxu0 0.0
    %2313 = vmatprep.subr.mxu0 0.0
    %2314 = vmatpush2.msra.mxu0 0.0
    %2315 = vmatprep.subr.mxu0 0.0
    %2316 = vmatpush2.msra.mxu0 0.0
    %2317 = vmatprep.subr.mxu0 0.0
    %2318 = vmatpush2.msra.mxu0 0.0
    %2319 = vmatprep.subr.mxu0 0.0
    %2320 = vmatpush2.msra.mxu0 0.0
    %2321 = vmatprep.subr.mxu0 0.0
    %2322 = vmatpush2.msra.mxu0 0.0
    %2323 = vmatprep.mubr.f32.mxu0 0.0
    %2324 = vmatmul.mubr.f32.gmra.mxu0 %v2257
    %v2325 = vpop.f32.mrf.mxu0
    %v2326 = vadd.f32 0.0, %v2325
    %v2327 = vpop.f32.mrf.mxu0
    %2328 = vdwg.mxu0
    %2330 = vrot.lane.b32.xlu0 %v2253, 32
    %v2331 = vpop.permute.xlu0 %2330
    %v2332 = vsel %vm793, %v2331, 0
    %2334 = vmatprep.subr.mxu0 0.0
    %2335 = vmatpush1.msra.mxu0 0.0
    %2336 = vmatprep.subr.mxu0 0.0
    %2337 = vmatpush1.msra.mxu0 0.0
    %2338 = vmatprep.subr.mxu0 0.0
    %2339 = vmatpush1.msra.mxu0 0.0
    %2340 = vmatprep.subr.mxu0 0.0
    %2341 = vmatpush1.msra.mxu0 0.0
    %2342 = vmatprep.subr.mxu0 0.0
    %2343 = vmatpush1.msra.mxu0 0.0
    %2344 = vmatprep.subr.mxu0 0.0
    %2345 = vmatpush1.msra.mxu0 0.0
    %2346 = vmatprep.subr.mxu0 0.0
    %2347 = vmatpush1.msra.mxu0 0.0
    %2348 = vmatprep.subr.mxu0 0.0
    %2349 = vmatpush1.msra.mxu0 0.0
    %2350 = vmatprep.subr.mxu0 0.0
    %2351 = vmatpush1.msra.mxu0 0.0
    %2352 = vmatprep.subr.mxu0 0.0
    %2353 = vmatpush1.msra.mxu0 0.0
    %2354 = vmatprep.subr.mxu0 0.0
    %2355 = vmatpush1.msra.mxu0 0.0
    %2356 = vmatprep.subr.mxu0 0.0
    %2357 = vmatpush1.msra.mxu0 0.0
    %2358 = vmatprep.subr.mxu0 0.0
    %2359 = vmatpush1.msra.mxu0 %v79
    %2360 = vmatprep.subr.mxu0 0.0
    %2361 = vmatpush1.msra.mxu0 %v78
    %2362 = vmatprep.subr.mxu0 0.0
    %2363 = vmatpush1.msra.mxu0 %v77
    %2364 = vmatprep.subr.mxu0 0.0
    %2365 = vmatpush1.msra.mxu0 %v76
    %2366 = vmatprep.subr.mxu0 0.0
    %2367 = vmatpush2.msra.mxu0 0.0
    %2368 = vmatprep.subr.mxu0 0.0
    %2369 = vmatpush2.msra.mxu0 0.0
    %2370 = vmatprep.subr.mxu0 0.0
    %2371 = vmatpush2.msra.mxu0 0.0
    %2372 = vmatprep.subr.mxu0 0.0
    %2373 = vmatpush2.msra.mxu0 0.0
    %2374 = vmatprep.subr.mxu0 0.0
    %2375 = vmatpush2.msra.mxu0 0.0
    %2376 = vmatprep.subr.mxu0 0.0
    %2377 = vmatpush2.msra.mxu0 0.0
    %2378 = vmatprep.subr.mxu0 0.0
    %2379 = vmatpush2.msra.mxu0 0.0
    %2380 = vmatprep.subr.mxu0 0.0
    %2381 = vmatpush2.msra.mxu0 0.0
    %2382 = vmatprep.subr.mxu0 0.0
    %2383 = vmatpush2.msra.mxu0 0.0
    %2384 = vmatprep.subr.mxu0 0.0
    %2385 = vmatpush2.msra.mxu0 0.0
    %2386 = vmatprep.subr.mxu0 0.0
    %2387 = vmatpush2.msra.mxu0 0.0
    %2388 = vmatprep.subr.mxu0 0.0
    %2389 = vmatpush2.msra.mxu0 0.0
    %2390 = vmatprep.subr.mxu0 0.0
    %2391 = vmatpush2.msra.mxu0 0.0
    %2392 = vmatprep.subr.mxu0 0.0
    %2393 = vmatpush2.msra.mxu0 0.0
    %2394 = vmatprep.subr.mxu0 0.0
    %2395 = vmatpush2.msra.mxu0 0.0
    %2396 = vmatprep.subr.mxu0 0.0
    %2397 = vmatpush2.msra.mxu0 0.0
    %2398 = vmatprep.mubr.f32.mxu0 0.0
    %2399 = vmatmul.mubr.f32.gmra.mxu0 %v2332
    %v2400 = vpop.f32.mrf.mxu0
    %v2401 = vadd.f32 %v2326, %v2400
    %v2402 = vpop.f32.mrf.mxu0
    %2403 = vdwg.mxu0
    %v2404 = vadd.f32 %v2401, %v1042
    %v2405 = vxor.u32 %v2404, 2147483648
    %v2406 = vmul.f32 %v2405, 1.442695
    %v2407 = vpow.pop %v2406
    %v2408 = vadd.f32 %v2407, 1.0
    %v2409 = vrcp.pop %v2408
    %v2410 = vmul.f32 1.0, %v2409
    %v2411 = vmul.f32 %v2410, 2.0
    %v2412 = vsub.f32 %v2411, 1.0
    %v2413 = vmul.f32 %v2410, %v2151
    %2415 = vrot.lane.b32.xlu0 %v2412, 64
    %v2416 = vpop.permute.xlu0 %2415
    %v2418 = vmul.f32 %v2410, %v2416
    %2420 = vrot.lane.b32.xlu0 %v2418, 32
    %v2421 = vpop.permute.xlu0 %2420
    %v2423 = vadd.f32 %v2413, %v2421
    %v2424 = vtanh.pop %v2423
    %2426 = vrot.lane.b32.xlu0 %v2424, 64
    %v2427 = vpop.permute.xlu0 %2426
    %v2429 = vmul.f32 %v2410, %v2427
    %2430 = vmatprep.subr.mxu0 0.0
    %2431 = vmatpush1.msra.mxu0 0.0
    %2432 = vmatprep.subr.mxu0 0.0
    %2433 = vmatpush1.msra.mxu0 0.0
    %2434 = vmatprep.subr.mxu0 0.0
    %2435 = vmatpush1.msra.mxu0 0.0
    %2436 = vmatprep.subr.mxu0 0.0
    %2437 = vmatpush1.msra.mxu0 0.0
    %2438 = vmatprep.subr.mxu0 0.0
    %2439 = vmatpush1.msra.mxu0 0.0
    %2440 = vmatprep.subr.mxu0 0.0
    %2441 = vmatpush1.msra.mxu0 0.0
    %2442 = vmatprep.subr.mxu0 0.0
    %2443 = vmatpush1.msra.mxu0 0.0
    %2444 = vmatprep.subr.mxu0 0.0
    %2445 = vmatpush1.msra.mxu0 0.0
    %2446 = vmatprep.subr.mxu0 0.0
    %2447 = vmatpush1.msra.mxu0 0.0
    %2448 = vmatprep.subr.mxu0 0.0
    %2449 = vmatpush1.msra.mxu0 0.0
    %2450 = vmatprep.subr.mxu0 0.0
    %2451 = vmatpush1.msra.mxu0 0.0
    %2452 = vmatprep.subr.mxu0 0.0
    %2453 = vmatpush1.msra.mxu0 0.0
    %2454 = vmatprep.subr.mxu0 0.0
    %2455 = vmatpush1.msra.mxu0 %v83
    %2456 = vmatprep.subr.mxu0 0.0
    %2457 = vmatpush1.msra.mxu0 %v82
    %2458 = vmatprep.subr.mxu0 0.0
    %2459 = vmatpush1.msra.mxu0 %v81
    %2460 = vmatprep.subr.mxu0 0.0
    %2461 = vmatpush1.msra.mxu0 %v80
    %2462 = vmatprep.subr.mxu0 0.0
    %2463 = vmatpush2.msra.mxu0 0.0
    %2464 = vmatprep.subr.mxu0 0.0
    %2465 = vmatpush2.msra.mxu0 0.0
    %2466 = vmatprep.subr.mxu0 0.0
    %2467 = vmatpush2.msra.mxu0 0.0
    %2468 = vmatprep.subr.mxu0 0.0
    %2469 = vmatpush2.msra.mxu0 0.0
    %2470 = vmatprep.subr.mxu0 0.0
    %2471 = vmatpush2.msra.mxu0 0.0
    %2472 = vmatprep.subr.mxu0 0.0
    %2473 = vmatpush2.msra.mxu0 0.0
    %2474 = vmatprep.subr.mxu0 0.0
    %2475 = vmatpush2.msra.mxu0 0.0
    %2476 = vmatprep.subr.mxu0 0.0
    %2477 = vmatpush2.msra.mxu0 0.0
    %2478 = vmatprep.subr.mxu0 0.0
    %2479 = vmatpush2.msra.mxu0 0.0
    %2480 = vmatprep.subr.mxu0 0.0
    %2481 = vmatpush2.msra.mxu0 0.0
    %2482 = vmatprep.subr.mxu0 0.0
    %2483 = vmatpush2.msra.mxu0 0.0
    %2484 = vmatprep.subr.mxu0 0.0
    %2485 = vmatpush2.msra.mxu0 0.0
    %2486 = vmatprep.subr.mxu0 0.0
    %2487 = vmatpush2.msra.mxu0 0.0
    %2488 = vmatprep.subr.mxu0 0.0
    %2489 = vmatpush2.msra.mxu0 0.0
    %2490 = vmatprep.subr.mxu0 0.0
    %2491 = vmatpush2.msra.mxu0 0.0
    %2492 = vmatprep.subr.mxu0 0.0
    %2493 = vmatpush2.msra.mxu0 0.0
    %2494 = vmatprep.mubr.f32.mxu0 0.0
    %2495 = vmatmul.mubr.f32.gmra.mxu0 %v2332
    %v2496 = vpop.f32.mrf.mxu0
    %v2497 = vadd.f32 0.0, %v2496
    %v2498 = vpop.f32.mrf.mxu0
    %2499 = vdwg.mxu0
    %v2500 = vadd.f32 %v704, %v2497
    %v2501 = vxor.u32 %v2500, 2147483648
    %v2502 = vmul.f32 %v2501, 1.442695
    %v2503 = vpow.pop %v2502
    %v2504 = vadd.f32 %v2503, 1.0
    %v2505 = vrcp.pop %v2504
    %v2506 = vmul.f32 1.0, %v2505
    %v2507 = vmul.f32 %v2506, 2.0
    %v2508 = vsub.f32 %v2507, 1.0
    %v2509 = vmul.f32 %v2506, %v2247
    %2511 = vrot.lane.b32.xlu0 %v2508, 64
    %v2512 = vpop.permute.xlu0 %2511
    %v2514 = vmul.f32 %v2506, %v2512
    %2516 = vrot.lane.b32.xlu0 %v2514, 32
    %v2517 = vpop.permute.xlu0 %2516
    %v2519 = vadd.f32 %v2509, %v2517
    %v2520 = vtanh.pop %v2519
    %2522 = vrot.lane.b32.xlu0 %v2520, 64
    %v2523 = vpop.permute.xlu0 %2522
    %v2525 = vmul.f32 %v2506, %v2523
    %2527 = vrot.lane.b32.xlu0 %v2429, 32
    %v2528 = vpop.permute.xlu0 %2527
    %v2529 = vsel %vm793, %v2528, 0
    %2531 = vmatprep.subr.mxu0 0.0
    %2532 = vmatpush1.msra.mxu0 0.0
    %2533 = vmatprep.subr.mxu0 0.0
    %2534 = vmatpush1.msra.mxu0 0.0
    %2535 = vmatprep.subr.mxu0 0.0
    %2536 = vmatpush1.msra.mxu0 0.0
    %2537 = vmatprep.subr.mxu0 0.0
    %2538 = vmatpush1.msra.mxu0 0.0
    %2539 = vmatprep.subr.mxu0 0.0
    %2540 = vmatpush1.msra.mxu0 0.0
    %2541 = vmatprep.subr.mxu0 0.0
    %2542 = vmatpush1.msra.mxu0 0.0
    %2543 = vmatprep.subr.mxu0 0.0
    %2544 = vmatpush1.msra.mxu0 0.0
    %2545 = vmatprep.subr.mxu0 0.0
    %2546 = vmatpush1.msra.mxu0 0.0
    %2547 = vmatprep.subr.mxu0 0.0
    %2548 = vmatpush1.msra.mxu0 0.0
    %2549 = vmatprep.subr.mxu0 0.0
    %2550 = vmatpush1.msra.mxu0 0.0
    %2551 = vmatprep.subr.mxu0 0.0
    %2552 = vmatpush1.msra.mxu0 0.0
    %2553 = vmatprep.subr.mxu0 0.0
    %2554 = vmatpush1.msra.mxu0 0.0
    %2555 = vmatprep.subr.mxu0 0.0
    %2556 = vmatpush1.msra.mxu0 %v87
    %2557 = vmatprep.subr.mxu0 0.0
    %2558 = vmatpush1.msra.mxu0 %v86
    %2559 = vmatprep.subr.mxu0 0.0
    %2560 = vmatpush1.msra.mxu0 %v85
    %2561 = vmatprep.subr.mxu0 0.0
    %2562 = vmatpush1.msra.mxu0 %v84
    %2563 = vmatprep.subr.mxu0 0.0
    %2564 = vmatpush2.msra.mxu0 0.0
    %2565 = vmatprep.subr.mxu0 0.0
    %2566 = vmatpush2.msra.mxu0 0.0
    %2567 = vmatprep.subr.mxu0 0.0
    %2568 = vmatpush2.msra.mxu0 0.0
    %2569 = vmatprep.subr.mxu0 0.0
    %2570 = vmatpush2.msra.mxu0 0.0
    %2571 = vmatprep.subr.mxu0 0.0
    %2572 = vmatpush2.msra.mxu0 0.0
    %2573 = vmatprep.subr.mxu0 0.0
    %2574 = vmatpush2.msra.mxu0 0.0
    %2575 = vmatprep.subr.mxu0 0.0
    %2576 = vmatpush2.msra.mxu0 0.0
    %2577 = vmatprep.subr.mxu0 0.0
    %2578 = vmatpush2.msra.mxu0 0.0
    %2579 = vmatprep.subr.mxu0 0.0
    %2580 = vmatpush2.msra.mxu0 0.0
    %2581 = vmatprep.subr.mxu0 0.0
    %2582 = vmatpush2.msra.mxu0 0.0
    %2583 = vmatprep.subr.mxu0 0.0
    %2584 = vmatpush2.msra.mxu0 0.0
    %2585 = vmatprep.subr.mxu0 0.0
    %2586 = vmatpush2.msra.mxu0 0.0
    %2587 = vmatprep.subr.mxu0 0.0
    %2588 = vmatpush2.msra.mxu0 0.0
    %2589 = vmatprep.subr.mxu0 0.0
    %2590 = vmatpush2.msra.mxu0 0.0
    %2591 = vmatprep.subr.mxu0 0.0
    %2592 = vmatpush2.msra.mxu0 0.0
    %2593 = vmatprep.subr.mxu0 0.0
    %2594 = vmatpush2.msra.mxu0 0.0
    %2595 = vmatprep.mubr.f32.mxu0 0.0
    %2596 = vmatmul.mubr.f32.gmra.mxu0 %v2529
    %v2597 = vpop.f32.mrf.mxu0
    %v2598 = vadd.f32 0.0, %v2597
    %v2599 = vpop.f32.mrf.mxu0
    %2600 = vdwg.mxu0
    %2602 = vrot.lane.b32.xlu0 %v2525, 32
    %v2603 = vpop.permute.xlu0 %2602
    %v2604 = vsel %vm793, %v2603, 0
    %2606 = vmatprep.subr.mxu0 0.0
    %2607 = vmatpush1.msra.mxu0 0.0
    %2608 = vmatprep.subr.mxu0 0.0
    %2609 = vmatpush1.msra.mxu0 0.0
    %2610 = vmatprep.subr.mxu0 0.0
    %2611 = vmatpush1.msra.mxu0 0.0
    %2612 = vmatprep.subr.mxu0 0.0
    %2613 = vmatpush1.msra.mxu0 0.0
    %2614 = vmatprep.subr.mxu0 0.0
    %2615 = vmatpush1.msra.mxu0 0.0
    %2616 = vmatprep.subr.mxu0 0.0
    %2617 = vmatpush1.msra.mxu0 0.0
    %2618 = vmatprep.subr.mxu0 0.0
    %2619 = vmatpush1.msra.mxu0 0.0
    %2620 = vmatprep.subr.mxu0 0.0
    %2621 = vmatpush1.msra.mxu0 0.0
    %2622 = vmatprep.subr.mxu0 0.0
    %2623 = vmatpush1.msra.mxu0 0.0
    %2624 = vmatprep.subr.mxu0 0.0
    %2625 = vmatpush1.msra.mxu0 0.0
    %2626 = vmatprep.subr.mxu0 0.0
    %2627 = vmatpush1.msra.mxu0 0.0
    %2628 = vmatprep.subr.mxu0 0.0
    %2629 = vmatpush1.msra.mxu0 0.0
    %2630 = vmatprep.subr.mxu0 0.0
    %2631 = vmatpush1.msra.mxu0 %v79
    %2632 = vmatprep.subr.mxu0 0.0
    %2633 = vmatpush1.msra.mxu0 %v78
    %2634 = vmatprep.subr.mxu0 0.0
    %2635 = vmatpush1.msra.mxu0 %v77
    %2636 = vmatprep.subr.mxu0 0.0
    %2637 = vmatpush1.msra.mxu0 %v76
    %2638 = vmatprep.subr.mxu0 0.0
    %2639 = vmatpush2.msra.mxu0 0.0
    %2640 = vmatprep.subr.mxu0 0.0
    %2641 = vmatpush2.msra.mxu0 0.0
    %2642 = vmatprep.subr.mxu0 0.0
    %2643 = vmatpush2.msra.mxu0 0.0
    %2644 = vmatprep.subr.mxu0 0.0
    %2645 = vmatpush2.msra.mxu0 0.0
    %2646 = vmatprep.subr.mxu0 0.0
    %2647 = vmatpush2.msra.mxu0 0.0
    %2648 = vmatprep.subr.mxu0 0.0
    %2649 = vmatpush2.msra.mxu0 0.0
    %2650 = vmatprep.subr.mxu0 0.0
    %2651 = vmatpush2.msra.mxu0 0.0
    %2652 = vmatprep.subr.mxu0 0.0
    %2653 = vmatpush2.msra.mxu0 0.0
    %2654 = vmatprep.subr.mxu0 0.0
    %2655 = vmatpush2.msra.mxu0 0.0
    %2656 = vmatprep.subr.mxu0 0.0
    %2657 = vmatpush2.msra.mxu0 0.0
    %2658 = vmatprep.subr.mxu0 0.0
    %2659 = vmatpush2.msra.mxu0 0.0
    %2660 = vmatprep.subr.mxu0 0.0
    %2661 = vmatpush2.msra.mxu0 0.0
    %2662 = vmatprep.subr.mxu0 0.0
    %2663 = vmatpush2.msra.mxu0 0.0
    %2664 = vmatprep.subr.mxu0 0.0
    %2665 = vmatpush2.msra.mxu0 0.0
    %2666 = vmatprep.subr.mxu0 0.0
    %2667 = vmatpush2.msra.mxu0 0.0
    %2668 = vmatprep.subr.mxu0 0.0
    %2669 = vmatpush2.msra.mxu0 0.0
    %2670 = vmatprep.mubr.f32.mxu0 0.0
    %2671 = vmatmul.mubr.f32.gmra.mxu0 %v2604
    %v2672 = vpop.f32.mrf.mxu0
    %v2673 = vadd.f32 %v2598, %v2672
    %v2674 = vpop.f32.mrf.mxu0
    %2675 = vdwg.mxu0
    %v2676 = vadd.f32 %v2673, %v1042
    %v2677 = vxor.u32 %v2676, 2147483648
    %v2678 = vmul.f32 %v2677, 1.442695
    %v2679 = vpow.pop %v2678
    %v2680 = vadd.f32 %v2679, 1.0
    %v2681 = vrcp.pop %v2680
    %v2682 = vmul.f32 1.0, %v2681
    %v2683 = vmul.f32 %v2682, 2.0
    %v2684 = vsub.f32 %v2683, 1.0
    %v2685 = vmul.f32 %v2682, %v2423
    %2687 = vrot.lane.b32.xlu0 %v2684, 64
    %v2688 = vpop.permute.xlu0 %2687
    %v2690 = vmul.f32 %v2682, %v2688
    %2692 = vrot.lane.b32.xlu0 %v2690, 32
    %v2693 = vpop.permute.xlu0 %2692
    %v2695 = vadd.f32 %v2685, %v2693
    %v2696 = vtanh.pop %v2695
    %2698 = vrot.lane.b32.xlu0 %v2696, 64
    %v2699 = vpop.permute.xlu0 %2698
    %v2701 = vmul.f32 %v2682, %v2699
    %2702 = vmatprep.subr.mxu0 0.0
    %2703 = vmatpush1.msra.mxu0 0.0
    %2704 = vmatprep.subr.mxu0 0.0
    %2705 = vmatpush1.msra.mxu0 0.0
    %2706 = vmatprep.subr.mxu0 0.0
    %2707 = vmatpush1.msra.mxu0 0.0
    %2708 = vmatprep.subr.mxu0 0.0
    %2709 = vmatpush1.msra.mxu0 0.0
    %2710 = vmatprep.subr.mxu0 0.0
    %2711 = vmatpush1.msra.mxu0 0.0
    %2712 = vmatprep.subr.mxu0 0.0
    %2713 = vmatpush1.msra.mxu0 0.0
    %2714 = vmatprep.subr.mxu0 0.0
    %2715 = vmatpush1.msra.mxu0 0.0
    %2716 = vmatprep.subr.mxu0 0.0
    %2717 = vmatpush1.msra.mxu0 0.0
    %2718 = vmatprep.subr.mxu0 0.0
    %2719 = vmatpush1.msra.mxu0 0.0
    %2720 = vmatprep.subr.mxu0 0.0
    %2721 = vmatpush1.msra.mxu0 0.0
    %2722 = vmatprep.subr.mxu0 0.0
    %2723 = vmatpush1.msra.mxu0 0.0
    %2724 = vmatprep.subr.mxu0 0.0
    %2725 = vmatpush1.msra.mxu0 0.0
    %2726 = vmatprep.subr.mxu0 0.0
    %2727 = vmatpush1.msra.mxu0 %v83
    %2728 = vmatprep.subr.mxu0 0.0
    %2729 = vmatpush1.msra.mxu0 %v82
    %2730 = vmatprep.subr.mxu0 0.0
    %2731 = vmatpush1.msra.mxu0 %v81
    %2732 = vmatprep.subr.mxu0 0.0
    %2733 = vmatpush1.msra.mxu0 %v80
    %2734 = vmatprep.subr.mxu0 0.0
    %2735 = vmatpush2.msra.mxu0 0.0
    %2736 = vmatprep.subr.mxu0 0.0
    %2737 = vmatpush2.msra.mxu0 0.0
    %2738 = vmatprep.subr.mxu0 0.0
    %2739 = vmatpush2.msra.mxu0 0.0
    %2740 = vmatprep.subr.mxu0 0.0
    %2741 = vmatpush2.msra.mxu0 0.0
    %2742 = vmatprep.subr.mxu0 0.0
    %2743 = vmatpush2.msra.mxu0 0.0
    %2744 = vmatprep.subr.mxu0 0.0
    %2745 = vmatpush2.msra.mxu0 0.0
    %2746 = vmatprep.subr.mxu0 0.0
    %2747 = vmatpush2.msra.mxu0 0.0
    %2748 = vmatprep.subr.mxu0 0.0
    %2749 = vmatpush2.msra.mxu0 0.0
    %2750 = vmatprep.subr.mxu0 0.0
    %2751 = vmatpush2.msra.mxu0 0.0
    %2752 = vmatprep.subr.mxu0 0.0
    %2753 = vmatpush2.msra.mxu0 0.0
    %2754 = vmatprep.subr.mxu0 0.0
    %2755 = vmatpush2.msra.mxu0 0.0
    %2756 = vmatprep.subr.mxu0 0.0
    %2757 = vmatpush2.msra.mxu0 0.0
    %2758 = vmatprep.subr.mxu0 0.0
    %2759 = vmatpush2.msra.mxu0 0.0
    %2760 = vmatprep.subr.mxu0 0.0
    %2761 = vmatpush2.msra.mxu0 0.0
    %2762 = vmatprep.subr.mxu0 0.0
    %2763 = vmatpush2.msra.mxu0 0.0
    %2764 = vmatprep.subr.mxu0 0.0
    %2765 = vmatpush2.msra.mxu0 0.0
    %2766 = vmatprep.mubr.f32.mxu0 0.0
    %2767 = vmatmul.mubr.f32.gmra.mxu0 %v2604
    %v2768 = vpop.f32.mrf.mxu0
    %v2769 = vadd.f32 0.0, %v2768
    %v2770 = vpop.f32.mrf.mxu0
    %2771 = vdwg.mxu0
    %v2772 = vadd.f32 %v790, %v2769
    %v2773 = vxor.u32 %v2772, 2147483648
    %v2774 = vmul.f32 %v2773, 1.442695
    %v2775 = vpow.pop %v2774
    %v2776 = vadd.f32 %v2775, 1.0
    %v2777 = vrcp.pop %v2776
    %v2778 = vmul.f32 1.0, %v2777
    %v2779 = vmul.f32 %v2778, 2.0
    %v2780 = vsub.f32 %v2779, 1.0
    %v2781 = vmul.f32 %v2778, %v2519
    %2783 = vrot.lane.b32.xlu0 %v2780, 64
    %v2784 = vpop.permute.xlu0 %2783
    %v2786 = vmul.f32 %v2778, %v2784
    %2788 = vrot.lane.b32.xlu0 %v2786, 32
    %v2789 = vpop.permute.xlu0 %2788
    %v2791 = vadd.f32 %v2781, %v2789
    %v2792 = vtanh.pop %v2791
    %2794 = vrot.lane.b32.xlu0 %v2792, 64
    %v2795 = vpop.permute.xlu0 %2794
    %v2797 = vmul.f32 %v2778, %v2795
    %2799 = vrot.lane.b32.xlu0 %v2701, 32
    %v2800 = vpop.permute.xlu0 %2799
    %v2801 = vsel %vm793, %v2800, 0
    %2803 = vmatprep.subr.mxu0 0.0
    %2804 = vmatpush1.msra.mxu0 0.0
    %2805 = vmatprep.subr.mxu0 0.0
    %2806 = vmatpush1.msra.mxu0 0.0
    %2807 = vmatprep.subr.mxu0 0.0
    %2808 = vmatpush1.msra.mxu0 0.0
    %2809 = vmatprep.subr.mxu0 0.0
    %2810 = vmatpush1.msra.mxu0 0.0
    %2811 = vmatprep.subr.mxu0 0.0
    %2812 = vmatpush1.msra.mxu0 0.0
    %2813 = vmatprep.subr.mxu0 0.0
    %2814 = vmatpush1.msra.mxu0 0.0
    %2815 = vmatprep.subr.mxu0 0.0
    %2816 = vmatpush1.msra.mxu0 0.0
    %2817 = vmatprep.subr.mxu0 0.0
    %2818 = vmatpush1.msra.mxu0 0.0
    %2819 = vmatprep.subr.mxu0 0.0
    %2820 = vmatpush1.msra.mxu0 0.0
    %2821 = vmatprep.subr.mxu0 0.0
    %2822 = vmatpush1.msra.mxu0 0.0
    %2823 = vmatprep.subr.mxu0 0.0
    %2824 = vmatpush1.msra.mxu0 0.0
    %2825 = vmatprep.subr.mxu0 0.0
    %2826 = vmatpush1.msra.mxu0 0.0
    %2827 = vmatprep.subr.mxu0 0.0
    %2828 = vmatpush1.msra.mxu0 %v87
    %2829 = vmatprep.subr.mxu0 0.0
    %2830 = vmatpush1.msra.mxu0 %v86
    %2831 = vmatprep.subr.mxu0 0.0
    %2832 = vmatpush1.msra.mxu0 %v85
    %2833 = vmatprep.subr.mxu0 0.0
    %2834 = vmatpush1.msra.mxu0 %v84
    %2835 = vmatprep.subr.mxu0 0.0
    %2836 = vmatpush2.msra.mxu0 0.0
    %2837 = vmatprep.subr.mxu0 0.0
    %2838 = vmatpush2.msra.mxu0 0.0
    %2839 = vmatprep.subr.mxu0 0.0
    %2840 = vmatpush2.msra.mxu0 0.0
    %2841 = vmatprep.subr.mxu0 0.0
    %2842 = vmatpush2.msra.mxu0 0.0
    %2843 = vmatprep.subr.mxu0 0.0
    %2844 = vmatpush2.msra.mxu0 0.0
    %2845 = vmatprep.subr.mxu0 0.0
    %2846 = vmatpush2.msra.mxu0 0.0
    %2847 = vmatprep.subr.mxu0 0.0
    %2848 = vmatpush2.msra.mxu0 0.0
    %2849 = vmatprep.subr.mxu0 0.0
    %2850 = vmatpush2.msra.mxu0 0.0
    %2851 = vmatprep.subr.mxu0 0.0
    %2852 = vmatpush2.msra.mxu0 0.0
    %2853 = vmatprep.subr.mxu0 0.0
    %2854 = vmatpush2.msra.mxu0 0.0
    %2855 = vmatprep.subr.mxu0 0.0
    %2856 = vmatpush2.msra.mxu0 0.0
    %2857 = vmatprep.subr.mxu0 0.0
    %2858 = vmatpush2.msra.mxu0 0.0
    %2859 = vmatprep.subr.mxu0 0.0
    %2860 = vmatpush2.msra.mxu0 0.0
    %2861 = vmatprep.subr.mxu0 0.0
    %2862 = vmatpush2.msra.mxu0 0.0
    %2863 = vmatprep.subr.mxu0 0.0
    %2864 = vmatpush2.msra.mxu0 0.0
    %2865 = vmatprep.subr.mxu0 0.0
    %2866 = vmatpush2.msra.mxu0 0.0
    %2867 = vmatprep.mubr.f32.mxu0 0.0
    %2868 = vmatmul.mubr.f32.gmra.mxu0 %v2801
    %v2869 = vpop.f32.mrf.mxu0
    %v2870 = vadd.f32 0.0, %v2869
    %v2871 = vpop.f32.mrf.mxu0
    %2872 = vdwg.mxu0
    %2874 = vrot.lane.b32.xlu0 %v2797, 32
    %v2875 = vpop.permute.xlu0 %2874
    %v2876 = vsel %vm793, %v2875, 0
    %2878 = vmatprep.subr.mxu0 0.0
    %2879 = vmatpush1.msra.mxu0 0.0
    %2880 = vmatprep.subr.mxu0 0.0
    %2881 = vmatpush1.msra.mxu0 0.0
    %2882 = vmatprep.subr.mxu0 0.0
    %2883 = vmatpush1.msra.mxu0 0.0
    %2884 = vmatprep.subr.mxu0 0.0
    %2885 = vmatpush1.msra.mxu0 0.0
    %2886 = vmatprep.subr.mxu0 0.0
    %2887 = vmatpush1.msra.mxu0 0.0
    %2888 = vmatprep.subr.mxu0 0.0
    %2889 = vmatpush1.msra.mxu0 0.0
    %2890 = vmatprep.subr.mxu0 0.0
    %2891 = vmatpush1.msra.mxu0 0.0
    %2892 = vmatprep.subr.mxu0 0.0
    %2893 = vmatpush1.msra.mxu0 0.0
    %2894 = vmatprep.subr.mxu0 0.0
    %2895 = vmatpush1.msra.mxu0 0.0
    %2896 = vmatprep.subr.mxu0 0.0
    %2897 = vmatpush1.msra.mxu0 0.0
    %2898 = vmatprep.subr.mxu0 0.0
    %2899 = vmatpush1.msra.mxu0 0.0
    %2900 = vmatprep.subr.mxu0 0.0
    %2901 = vmatpush1.msra.mxu0 0.0
    %2902 = vmatprep.subr.mxu0 0.0
    %2903 = vmatpush1.msra.mxu0 %v79
    %2904 = vmatprep.subr.mxu0 0.0
    %2905 = vmatpush1.msra.mxu0 %v78
    %2906 = vmatprep.subr.mxu0 0.0
    %2907 = vmatpush1.msra.mxu0 %v77
    %2908 = vmatprep.subr.mxu0 0.0
    %2909 = vmatpush1.msra.mxu0 %v76
    %2910 = vmatprep.subr.mxu0 0.0
    %2911 = vmatpush2.msra.mxu0 0.0
    %2912 = vmatprep.subr.mxu0 0.0
    %2913 = vmatpush2.msra.mxu0 0.0
    %2914 = vmatprep.subr.mxu0 0.0
    %2915 = vmatpush2.msra.mxu0 0.0
    %2916 = vmatprep.subr.mxu0 0.0
    %2917 = vmatpush2.msra.mxu0 0.0
    %2918 = vmatprep.subr.mxu0 0.0
    %2919 = vmatpush2.msra.mxu0 0.0
    %2920 = vmatprep.subr.mxu0 0.0
    %2921 = vmatpush2.msra.mxu0 0.0
    %2922 = vmatprep.subr.mxu0 0.0
    %2923 = vmatpush2.msra.mxu0 0.0
    %2924 = vmatprep.subr.mxu0 0.0
    %2925 = vmatpush2.msra.mxu0 0.0
    %2926 = vmatprep.subr.mxu0 0.0
    %2927 = vmatpush2.msra.mxu0 0.0
    %2928 = vmatprep.subr.mxu0 0.0
    %2929 = vmatpush2.msra.mxu0 0.0
    %2930 = vmatprep.subr.mxu0 0.0
    %2931 = vmatpush2.msra.mxu0 0.0
    %2932 = vmatprep.subr.mxu0 0.0
    %2933 = vmatpush2.msra.mxu0 0.0
    %2934 = vmatprep.subr.mxu0 0.0
    %2935 = vmatpush2.msra.mxu0 0.0
    %2936 = vmatprep.subr.mxu0 0.0
    %2937 = vmatpush2.msra.mxu0 0.0
    %2938 = vmatprep.subr.mxu0 0.0
    %2939 = vmatpush2.msra.mxu0 0.0
    %2940 = vmatprep.subr.mxu0 0.0
    %2941 = vmatpush2.msra.mxu0 0.0
    %2942 = vmatprep.mubr.f32.mxu0 0.0
    %2943 = vmatmul.mubr.f32.gmra.mxu0 %v2876
    %v2944 = vpop.f32.mrf.mxu0
    %v2945 = vadd.f32 %v2870, %v2944
    %v2946 = vpop.f32.mrf.mxu0
    %2947 = vdwg.mxu0
    %v2948 = vadd.f32 %v2945, %v1042
    %v2949 = vxor.u32 %v2948, 2147483648
    %v2950 = vmul.f32 %v2949, 1.442695
    %v2951 = vpow.pop %v2950
    %v2952 = vadd.f32 %v2951, 1.0
    %v2953 = vrcp.pop %v2952
    %v2954 = vmul.f32 1.0, %v2953
    %v2955 = vmul.f32 %v2954, 2.0
    %v2956 = vsub.f32 %v2955, 1.0
    %v2957 = vmul.f32 %v2954, %v2695
    %2959 = vrot.lane.b32.xlu0 %v2956, 64
    %v2960 = vpop.permute.xlu0 %2959
    %v2962 = vmul.f32 %v2954, %v2960
    %2964 = vrot.lane.b32.xlu0 %v2962, 32
    %v2965 = vpop.permute.xlu0 %2964
    %v2967 = vadd.f32 %v2957, %v2965
    %v2968 = vtanh.pop %v2967
    %2970 = vrot.lane.b32.xlu0 %v2968, 64
    %v2971 = vpop.permute.xlu0 %2970
    %v2973 = vmul.f32 %v2954, %v2971
    %v2975 = vlaneseq
    %v2976 = vshrl.u32 %v2975, 7
    %v2977 = vsub.s32 0, %v2976
    %v2978 = vrot.slane %v94, %v2977
    %2981 = vrot.lane.b32.xlu0 %v2973, 32
    %v2982 = vpop.permute.xlu0 %2981
    %v2983 = vsel %vm793, %v2982, 0
    %2985 = vmatprep.subr.mxu0 0.0
    %2986 = vmatpush1.msra.mxu0 0.0
    %2987 = vmatprep.subr.mxu0 0.0
    %2988 = vmatpush1.msra.mxu0 0.0
    %2989 = vmatprep.subr.mxu0 0.0
    %2990 = vmatpush1.msra.mxu0 0.0
    %2991 = vmatprep.subr.mxu0 0.0
    %2992 = vmatpush1.msra.mxu0 0.0
    %2993 = vmatprep.subr.mxu0 0.0
    %2994 = vmatpush1.msra.mxu0 0.0
    %2995 = vmatprep.subr.mxu0 0.0
    %2996 = vmatpush1.msra.mxu0 0.0
    %2997 = vmatprep.subr.mxu0 0.0
    %2998 = vmatpush1.msra.mxu0 0.0
    %2999 = vmatprep.subr.mxu0 0.0
    %3000 = vmatpush1.msra.mxu0 0.0
    %3001 = vmatprep.subr.mxu0 0.0
    %3002 = vmatpush1.msra.mxu0 0.0
    %3003 = vmatprep.subr.mxu0 0.0
    %3004 = vmatpush1.msra.mxu0 0.0
    %3005 = vmatprep.subr.mxu0 0.0
    %3006 = vmatpush1.msra.mxu0 0.0
    %3007 = vmatprep.subr.mxu0 0.0
    %3008 = vmatpush1.msra.mxu0 0.0
    %3009 = vmatprep.subr.mxu0 0.0
    %3010 = vmatpush1.msra.mxu0 %v93
    %3011 = vmatprep.subr.mxu0 0.0
    %3012 = vmatpush1.msra.mxu0 %v92
    %3013 = vmatprep.subr.mxu0 0.0
    %3014 = vmatpush1.msra.mxu0 %v91
    %3015 = vmatprep.subr.mxu0 0.0
    %3016 = vmatpush1.msra.mxu0 %v90
    %3017 = vmatprep.subr.mxu0 0.0
    %3018 = vmatpush2.msra.mxu0 0.0
    %3019 = vmatprep.subr.mxu0 0.0
    %3020 = vmatpush2.msra.mxu0 0.0
    %3021 = vmatprep.subr.mxu0 0.0
    %3022 = vmatpush2.msra.mxu0 0.0
    %3023 = vmatprep.subr.mxu0 0.0
    %3024 = vmatpush2.msra.mxu0 0.0
    %3025 = vmatprep.subr.mxu0 0.0
    %3026 = vmatpush2.msra.mxu0 0.0
    %3027 = vmatprep.subr.mxu0 0.0
    %3028 = vmatpush2.msra.mxu0 0.0
    %3029 = vmatprep.subr.mxu0 0.0
    %3030 = vmatpush2.msra.mxu0 0.0
    %3031 = vmatprep.subr.mxu0 0.0
    %3032 = vmatpush2.msra.mxu0 0.0
    %3033 = vmatprep.subr.mxu0 0.0
    %3034 = vmatpush2.msra.mxu0 0.0
    %3035 = vmatprep.subr.mxu0 0.0
    %3036 = vmatpush2.msra.mxu0 0.0
    %3037 = vmatprep.subr.mxu0 0.0
    %3038 = vmatpush2.msra.mxu0 0.0
    %3039 = vmatprep.subr.mxu0 0.0
    %3040 = vmatpush2.msra.mxu0 0.0
    %3041 = vmatprep.subr.mxu0 0.0
    %3042 = vmatpush2.msra.mxu0 0.0
    %3043 = vmatprep.subr.mxu0 0.0
    %3044 = vmatpush2.msra.mxu0 0.0
    %3045 = vmatprep.subr.mxu0 0.0
    %3046 = vmatpush2.msra.mxu0 0.0
    %3047 = vmatprep.subr.mxu0 0.0
    %3048 = vmatpush2.msra.mxu0 0.0
    %3049 = vmatprep.mubr.f32.mxu0 0.0
    %3050 = vmatmul.mubr.f32.gmra.mxu0 %v2983
    %v3051 = vpop.f32.mrf.mxu0
    %v3052 = vadd.f32 %v2978, %v3051
    %v3053 = vpop.f32.mrf.mxu0
    %3054 = vdwg.mxu0
    %vm3055 = vcmask 60416
    %3056 = vst.msk [vmem:[#allocation8] sm:$0xf] %vm3055, %v3052
    // Predicated region
    $region50: #{lstm_model_forward.1} parent=1 // pred_check
      _
    $region51: #{lstm_model_forward.1} parent=1 // pred_check_branch
      %3058 = sbr.rel (0) target = $region53
    $region52: #{lstm_model_forward.1} parent=1 // pred_region
      %s3060 = ssub.s32 64, 64
      %3061 = vsyncadd [#allocation4], %s3060
      %s3063 = sshll.u32 [#allocation8], 4
      %s3064 = int_to_ptr.vmem [resolvable:$true] %s3063
      %3066 = dma.vmem_to_hbm [thread:$0]  %s3064, 64, %s9, [#allocation4]
    $region53: #{lstm_model_forward.1} parent=1 // pred_fallthru
      _
    // Predicated region
    $region54: #{lstm_model_forward.1} parent=1 // pred_check
      _
    $region55: #{lstm_model_forward.1} parent=1 // pred_check_branch
      %3068 = sbr.rel (0) target = $region57
    $region56: #{lstm_model_forward.1} parent=1 // pred_region
      %3069 = dma.done [#allocation4], 64
    $region57: #{lstm_model_forward.1} parent=1 // pred_fallthru
      _
    %3070 = vsyncpa [#allocation3], 1
    %3071 = vsyncpa [#allocation6], 1
    %3072 = vsyncpa [#allocation4], 1

</llo_original>
